<compile_context>
chip_gen: v7x
topology: tpu7x:2x2x1
jax: 0.10.0
libtpu: 0.0.40
codegen_flags: <defaults>
</compile_context>

<pallas_src>
import math

import jax
import jax.numpy as jnp
from jax import lax
from jax.experimental import pallas as pl
from jax.experimental.pallas import tpu as pltpu

# ----------------------------- model config ---------------------------------
B = 2            # batch
S = 16           # seq len
D = 128          # d_model
H = 4            # n_heads
HD = D // H      # head dim
FF = 256         # feed-forward hidden size (SwiGLU)
V = 256          # vocab size
N_LAYERS = 2
EPS = 1e-5
ROPE_THETA = 10000.0
BS = B * S       # batch folded into the matmul M dimension
HB = H * BS      # packed (head, key) lane dimension (= 128 here)
SCALE = 1.0 / math.sqrt(HD)


# ----------------------------- kernel helpers --------------------------------
def _rmsnorm(x, w):
    # x: (BS, D) f32, w: (1, D) f32
    var = jnp.mean(x * x, axis=-1, keepdims=True)
    return x * lax.rsqrt(var + EPS) * w


def _rope(x, cos, sin_first, sin_second):
    # Full-width rotate-half RoPE on (BS, D) without per-head slicing:
    #   out[j] = x[j]*cos[j] - x[j+HD/2]*sin[j]   (first half of each head)
    #   out[j] = x[j]*cos[j] + x[j-HD/2]*sin[j]   (second half of each head)
    # sin_first / sin_second carry the +-sign and half-selection masks (exact
    # zeros prevent cross-head mixing), so only two XLU rolls + VPU FMAs remain.
    fwd = pltpu.roll(x, D - HD // 2, 1)   # out[j] = x[(j + HD/2) % D]
    bwd = pltpu.roll(x, HD // 2, 1)       # out[j] = x[(j - HD/2) % D]
    return x * cos + fwd * sin_first + bwd * sin_second


# ----------------------------- fused forward kernel --------------------------
def _fwd_kernel(ids_ref, emb_ref,
                an_ref, wq_ref, wk_ref, wv_ref, wo_ref,
                fn_ref, w1_ref, w2_ref, w3_ref,
                cos_ref, sin1_ref, sin2_ref, bias_ref, hmask_ref,
                fnw_ref, wout_ref,
                logits_ref, h_ref, emb_sems):
    l = pl.program_id(0)

    # ---- embedding (layer 0 only): scalar-prefetched DMA row gather ----
    # ids live in SMEM; each token's f32 embedding row is DMA'd from HBM
    # directly into the resident activation scratch.  No one-hot matmul, no
    # (V, D) table resident in VMEM.
    @pl.when(l == 0)
    def _():
        def row_copy(r, src_row):
            return pltpu.make_async_copy(
                emb_ref.at[pl.ds(src_row, 1), :],
                h_ref.at[pl.ds(r, 1), :],
                emb_sems.at[r])

        for r in range(BS):                       # issue all gathers
            row_copy(r, ids_ref[r]).start()
        for r in range(BS):                       # drain them
            row_copy(r, 0).wait()

    x = h_ref[...]                                # (BS, D) f32

    # ---- attention (head-packed, lane-dense) ----
    xn = _rmsnorm(x, an_ref[...])
    xnb = xn.astype(jnp.bfloat16)
    q = jnp.dot(xnb, wq_ref[...], preferred_element_type=jnp.float32)
    k = jnp.dot(xnb, wk_ref[...], preferred_element_type=jnp.float32)
    v = jnp.dot(xnb, wv_ref[...], preferred_element_type=jnp.float32)

    cos = cos_ref[...].astype(jnp.float32)
    sin1 = sin1_ref[...].astype(jnp.float32)
    sin2 = sin2_ref[...].astype(jnp.float32)
    q = _rope(q, cos, sin1, sin2)
    k = _rope(k, cos, sin1, sin2)

    # Head-packed K/V: row h*BS+j keeps only head h's 32 feature lanes of
    # key/value j.  This replaces H per-head (32x32x32) matmuls + unaligned
    # lane slices with full-K (BS,128)x(128,128) matmuls.
    hmask = hmask_ref[...]                                          # (HB, D)
    hmask_b = hmask.astype(jnp.bfloat16)
    kb = (jnp.concatenate([k] * H, axis=0) * hmask).astype(jnp.bfloat16)
    vb = (jnp.concatenate([v] * H, axis=0) * hmask).astype(jnp.bfloat16)
    qb = q.astype(jnp.bfloat16)

    # Packed per-head scores: s[i, h*BS + j] = <q_h[i], k_h[j]>   -> (BS, HB)
    s = lax.dot_general(qb, kb, (((1,), (1,)), ((), ())),
                        preferred_element_type=jnp.float32) * SCALE + bias_ref[...]

    # Lane-dense softmax over the packed (32,128) block.  One per-row max is a
    # valid shift for every head segment (softmax is shift-invariant); the
    # per-head normalizers come from a single P @ head_mask matmul, broadcast
    # onto each head's feature lanes, and are applied after the PV matmul.
    p = jnp.exp(s - jnp.max(s, axis=-1, keepdims=True))
    pb = p.astype(jnp.bfloat16)
    num = jnp.dot(pb, vb, preferred_element_type=jnp.float32)       # (BS, D)
    den = jnp.dot(pb, hmask_b, preferred_element_type=jnp.float32)  # (BS, D)
    attn = num * pl.reciprocal(den, approx=True)   # head-concat layout already
    h1 = x + jnp.dot(attn.astype(jnp.bfloat16), wo_ref[...],
                     preferred_element_type=jnp.float32)            # one K=128 dot

    # ---- SwiGLU feed-forward ----
    hn = _rmsnorm(h1, fn_ref[...])
    hnb = hn.astype(jnp.bfloat16)
    g = jnp.dot(hnb, w1_ref[...], preferred_element_type=jnp.float32)
    u = jnp.dot(hnb, w3_ref[...], preferred_element_type=jnp.float32)
    ff = jnp.dot((jax.nn.silu(g) * u).astype(jnp.bfloat16), w2_ref[...],
                 preferred_element_type=jnp.float32)
    h_new = h1 + ff
    h_ref[...] = h_new                                              # carry to next layer

    # ---- lm_head (last layer only) ----
    @pl.when(l == pl.num_programs(0) - 1)
    def _():
        fn = _rmsnorm(h_new, fnw_ref[...])
        logits_ref[...] = jnp.dot(fn.astype(jnp.bfloat16), wout_ref[...],
                                  preferred_element_type=jnp.float32)


# ----------------------------- pallas_call wrapper ----------------------------
def _const(shape):
    n = len(shape)
    return pl.BlockSpec(shape, lambda l, ids, n=n: (0,) * n)


def _per_layer(shape12):
    # stacked (N_LAYERS, d0, d1); grid axis selects the layer (auto-prefetch)
    return pl.BlockSpec((None,) + shape12, lambda l, ids: (l, 0, 0))


@jax.jit
def transformer_forward(input_ids, params, cos_b, sin1_b, sin2_b,
                        bias_packed, hmask):
    ids = input_ids.reshape(BS).astype(jnp.int32)
    logits = pl.pallas_call(
        _fwd_kernel,
        out_shape=jax.ShapeDtypeStruct((BS, V), jnp.float32),
        grid_spec=pltpu.PrefetchScalarGridSpec(
            num_scalar_prefetch=1,                  # ids -> SMEM before the grid
            grid=(N_LAYERS,),
            in_specs=[
                pl.BlockSpec(memory_space=pl.ANY),   # embedding table stays in HBM
                _per_layer((1, D)),                  # attn norm
                _per_layer((D, D)), _per_layer((D, D)),   # Wq, Wk
                _per_layer((D, D)), _per_layer((D, D)),   # Wv, Wo
                _per_layer((1, D)),                  # ff norm
                _per_layer((D, FF)), _per_layer((FF, D)), _per_layer((D, FF)),
                _const((BS, D)), _const((BS, D)), _const((BS, D)),  # rope (bf16)
                _const((BS, HB)),                    # packed causal bias (f32)
                _const((HB, D)),                     # head mask (f32)
                _const((1, D)),                      # final norm
                _const((D, V)),                      # w_out (bf16)
            ],
            out_specs=pl.BlockSpec((BS, V), lambda l, ids: (0, 0)),
            scratch_shapes=[
                pltpu.VMEM((BS, D), jnp.float32),    # resident activations
                pltpu.SemaphoreType.DMA((BS,)),      # embedding gather sems
            ]),
        compiler_params=pltpu.CompilerParams(
            dimension_semantics=("arbitrary",),      # layer axis carries h
            vmem_limit_bytes=32 * 1024 * 1024),
    )(ids, params["embeddings"],
      params["attn_norm"], params["wq"], params["wk"], params["wv"], params["wo"],
      params["ff_norm"], params["w1"], params["w2"], params["w3"],
      cos_b, sin1_b, sin2_b, bias_packed, hmask,
      params["final_norm"], params["w_out"])
    return logits.reshape(B, S, V)


# ----------------------------- parameter init --------------------------------
def init_params(key):
    def nrm(k, shape, std=0.02, dtype=jnp.bfloat16):
        return (std * jax.random.normal(k, shape)).astype(dtype)

    keys = jax.random.split(key, 2 + N_LAYERS)
    params = {
        # f32 table (module default dtype) so the DMA row gather needs no cast
        "embeddings": nrm(keys[0], (V, D), dtype=jnp.float32),
        "final_norm": jnp.ones((1, D), jnp.float32),
        "w_out": nrm(keys[1], (D, V)),
        "attn_norm": jnp.ones((N_LAYERS, 1, D), jnp.float32),
        "ff_norm": jnp.ones((N_LAYERS, 1, D), jnp.float32),
    }
    wq, wk, wv, wo, w1, w2, w3 = ([] for _ in range(7))
    for li in range(N_LAYERS):
        bk = jax.random.split(keys[2 + li], 7)
        wq.append(nrm(bk[0], (D, D)))
        wk.append(nrm(bk[1], (D, D)))
        wv.append(nrm(bk[2], (D, D)))
        wo.append(nrm(bk[3], (D, D)))
        w1.append(nrm(bk[4], (D, FF)))
        w2.append(nrm(bk[5], (FF, D)))
        w3.append(nrm(bk[6], (D, FF)))
    params.update({
        "wq": jnp.stack(wq), "wk": jnp.stack(wk),
        "wv": jnp.stack(wv), "wo": jnp.stack(wo),
        "w1": jnp.stack(w1), "w2": jnp.stack(w2), "w3": jnp.stack(w3),
    })
    return params


def rope_cache():
    inv_freq = 1.0 / (ROPE_THETA ** (jnp.arange(0, HD, 2, dtype=jnp.float32) / HD))
    pos = jnp.arange(S, dtype=jnp.float32)
    freqs = jnp.outer(pos, inv_freq)                      # (S, HD/2)
    emb = jnp.concatenate([freqs, freqs], axis=-1)        # (S, HD)
    cos_h, sin_h = jnp.cos(emb), jnp.sin(emb)
    zeros = jnp.zeros_like(freqs)
    sin_first_h = jnp.concatenate([-jnp.sin(freqs), zeros], axis=-1)   # -sin, 1st half
    sin_second_h = jnp.concatenate([zeros, jnp.sin(freqs)], axis=-1)   # +sin, 2nd half

    def tile_full(a):  # (S, HD) -> (B*S, D), stored bf16 (exact zeros preserved)
        return jnp.tile(jnp.tile(a, (1, H)), (B, 1)).astype(jnp.bfloat16)

    return (tile_full(cos_h), tile_full(sin_first_h), tile_full(sin_second_h),
            cos_h, sin_h)


def attention_bias_packed():
    # Block-diagonal causal bias for the batch-folded scores, replicated per
    # head along the lane axis: (BS, H*BS) so softmax runs on full 128 lanes.
    idx = jnp.arange(BS)
    row, col = idx[:, None], idx[None, :]
    allowed = (col <= row) & ((row // S) == (col // S))
    bias = jnp.where(allowed, 0.0, -1e30).astype(jnp.float32)    # (BS, BS)
    return jnp.tile(bias, (1, H))                                # (BS, H*BS)


def head_mask():
    # mask[h*BS + j, c] = 1 iff feature column c belongs to head h
    r = jnp.arange(HB)[:, None]
    c = jnp.arange(D)[None, :]
    return ((r // BS) == (c // HD)).astype(jnp.float32)          # (HB, D)


# ----------------------------- pure-JAX reference -----------------------------
def reference_forward(input_ids, params, cos_h, sin_h):
    f32 = lambda a: a.astype(jnp.float32)

    def rms(x, w):
        return x * lax.rsqrt(jnp.mean(x * x, -1, keepdims=True) + EPS) * w

    def rope(x):  # x: (B, S, H, HD)
        x1, x2 = x[..., : HD // 2], x[..., HD // 2:]
        rot = jnp.concatenate([-x2, x1], axis=-1)
        return x * cos_h[None, :, None, :] + rot * sin_h[None, :, None, :]

    h = jnp.take(f32(params["embeddings"]), input_ids, axis=0)
    causal = jnp.tril(jnp.ones((S, S), bool))
    for li in range(N_LAYERS):
        xn = rms(h, params["attn_norm"][li, 0])
        q = (xn @ f32(params["wq"][li])).reshape(B, S, H, HD)
        k = (xn @ f32(params["wk"][li])).reshape(B, S, H, HD)
        v = (xn @ f32(params["wv"][li])).reshape(B, S, H, HD)
        q, k = rope(q), rope(k)
        s = jnp.einsum("bqhd,bkhd->bhqk", q, k) / math.sqrt(HD)
        s = jnp.where(causal[None, None], s, -1e30)
        a = jax.nn.softmax(s, axis=-1)
        o = jnp.einsum("bhqk,bkhd->bqhd", a, v).reshape(B, S, D)
        h = h + o @ f32(params["wo"][li])
        hn = rms(h, params["ff_norm"][li, 0])
        h = h + (jax.nn.silu(hn @ f32(params["w1"][li]))
                 * (hn @ f32(params["w3"][li]))) @ f32(params["w2"][li])
    return rms(h, params["final_norm"][0]) @ f32(params["w_out"])


# ----------------------------- main -------------------------------------------
if __name__ == "__main__":
    key = jax.random.PRNGKey(0)
    k_param, k_ids = jax.random.split(key)
    params = init_params(k_param)
    cos_b, sin1_b, sin2_b, cos_h, sin_h = rope_cache()
    bias_packed = attention_bias_packed()
    hmask = head_mask()
    input_ids = jax.random.randint(k_ids, (B, S), 0, V, dtype=jnp.int32)

    logits = transformer_forward(input_ids, params, cos_b, sin1_b, sin2_b,
                                 bias_packed, hmask)
    logits = jax.block_until_ready(logits)

    assert logits.shape == (B, S, V), logits.shape
    assert bool(jnp.all(jnp.isfinite(logits)))

    ref = reference_forward(input_ids, params, cos_h, sin_h)
    max_err = float(jnp.max(jnp.abs(logits - ref)))
    # bf16 MXU operands + bf16 RoPE tables + approx reciprocal -> loosened tol
    assert bool(jnp.allclose(logits, ref, atol=3e-2, rtol=3e-2)), max_err

    print("KERNEL_OK")
</pallas_src>

<mosaic_0001>
module attributes {stable_mosaic.version = 11 : i64} {
  func.func @_fwd_kernel(%arg0: i32, %arg1: memref<32xi32, #tpu.memory_space<smem>>, %arg2: memref<256x128xf32, #tpu.memory_space<any>>, %arg3: memref<1x1x128xf32, #tpu.memory_space<vmem>>, %arg4: memref<1x128x128xbf16, #tpu.memory_space<vmem>>, %arg5: memref<1x128x128xbf16, #tpu.memory_space<vmem>>, %arg6: memref<1x128x128xbf16, #tpu.memory_space<vmem>>, %arg7: memref<1x128x128xbf16, #tpu.memory_space<vmem>>, %arg8: memref<1x1x128xf32, #tpu.memory_space<vmem>>, %arg9: memref<1x128x256xbf16, #tpu.memory_space<vmem>>, %arg10: memref<1x256x128xbf16, #tpu.memory_space<vmem>>, %arg11: memref<1x128x256xbf16, #tpu.memory_space<vmem>>, %arg12: memref<32x128xbf16, #tpu.memory_space<vmem>>, %arg13: memref<32x128xbf16, #tpu.memory_space<vmem>>, %arg14: memref<32x128xbf16, #tpu.memory_space<vmem>>, %arg15: memref<32x128xf32, #tpu.memory_space<vmem>>, %arg16: memref<128x128xf32, #tpu.memory_space<vmem>>, %arg17: memref<1x128xf32, #tpu.memory_space<vmem>>, %arg18: memref<128x256xbf16, #tpu.memory_space<vmem>>, %arg19: memref<32x256xf32, #tpu.memory_space<vmem>>, %arg20: memref<32x128xf32, #tpu.memory_space<vmem>>, %arg21: memref<32x!tpu.dma_semaphore, #tpu.memory_space<semaphore_mem>>) attributes {dimension_semantics = [#tpu.dimension_semantics<arbitrary>], iteration_bounds = array<i64: 2>, scalar_prefetch = 1 : i64, scratch_operands = 2 : i64, tpu.core_type = #tpu.core_type<tc>, window_params = [{}, {transform_indices = @transform_1, window_bounds = array<i64: 1, 1, 128>}, {transform_indices = @transform_2, window_bounds = array<i64: 1, 128, 128>}, {transform_indices = @transform_3, window_bounds = array<i64: 1, 128, 128>}, {transform_indices = @transform_4, window_bounds = array<i64: 1, 128, 128>}, {transform_indices = @transform_5, window_bounds = array<i64: 1, 128, 128>}, {transform_indices = @transform_6, window_bounds = array<i64: 1, 1, 128>}, {transform_indices = @transform_7, window_bounds = array<i64: 1, 128, 256>}, {transform_indices = @transform_8, window_bounds = array<i64: 1, 256, 128>}, {transform_indices = @transform_9, window_bounds = array<i64: 1, 128, 256>}, {pipeline_mode = #tpu.pipeline_mode<synchronous>, transform_indices = @transform_10, window_bounds = array<i64: 32, 128>}, {pipeline_mode = #tpu.pipeline_mode<synchronous>, transform_indices = @transform_11, window_bounds = array<i64: 32, 128>}, {pipeline_mode = #tpu.pipeline_mode<synchronous>, transform_indices = @transform_12, window_bounds = array<i64: 32, 128>}, {pipeline_mode = #tpu.pipeline_mode<synchronous>, transform_indices = @transform_13, window_bounds = array<i64: 32, 128>}, {pipeline_mode = #tpu.pipeline_mode<synchronous>, transform_indices = @transform_14, window_bounds = array<i64: 128, 128>}, {pipeline_mode = #tpu.pipeline_mode<synchronous>, transform_indices = @transform_15, window_bounds = array<i64: 1, 128>}, {pipeline_mode = #tpu.pipeline_mode<synchronous>, transform_indices = @transform_16, window_bounds = array<i64: 128, 256>}, {pipeline_mode = #tpu.pipeline_mode<synchronous>, transform_indices = @transform_17, window_bounds = array<i64: 32, 256>}]} {
    %c0_i32 = arith.constant 0 : i32
    %0 = arith.cmpi eq, %arg0, %c0_i32 : i32
    %1 = arith.extui %0 : i1 to i32
    %c0_i32_0 = arith.constant 0 : i32
    %2 = arith.cmpi ne, %1, %c0_i32_0 : i32
    scf.if %2 {
      %c0_62 = arith.constant 0 : index
      %114 = memref.load %arg1[%c0_62] : memref<32xi32, #tpu.memory_space<smem>>
      %c0_i32_63 = arith.constant 0 : i32
      %c0_i32_64 = arith.constant 0 : i32
      %115 = tpu.memref_slice %arg2[%114, %c0_i32_64] : memref<256x128xf32, #tpu.memory_space<any>> -> memref<1x128xf32, #tpu.memory_space<any>>
      %c0_i32_65 = arith.constant 0 : i32
      %c0_i32_66 = arith.constant 0 : i32
      %116 = tpu.memref_slice %arg20[%c0_i32_65, %c0_i32_66] : memref<32x128xf32, #tpu.memory_space<vmem>> -> memref<1x128xf32, #tpu.memory_space<vmem>>
      %117 = tpu.memref_slice %arg21[%c0_i32_63] : memref<32x!tpu.dma_semaphore, #tpu.memory_space<semaphore_mem>> -> memref<1x!tpu.dma_semaphore, #tpu.memory_space<semaphore_mem>>
      %118 = tpu.memref_squeeze %117 : memref<1x!tpu.dma_semaphore, #tpu.memory_space<semaphore_mem>> -> memref<!tpu.dma_semaphore, #tpu.memory_space<semaphore_mem>>
      tpu.enqueue_dma source(%115 : memref<1x128xf32, #tpu.memory_space<any>>) target(%116 : memref<1x128xf32, #tpu.memory_space<vmem>>) target_semaphore(%118 : memref<!tpu.dma_semaphore, #tpu.memory_space<semaphore_mem>>)
      %c1 = arith.constant 1 : index
      %119 = memref.load %arg1[%c1] : memref<32xi32, #tpu.memory_space<smem>>
      %c1_i32_67 = arith.constant 1 : i32
      %c0_i32_68 = arith.constant 0 : i32
      %120 = tpu.memref_slice %arg2[%119, %c0_i32_68] : memref<256x128xf32, #tpu.memory_space<any>> -> memref<1x128xf32, #tpu.memory_space<any>>
      %c1_i32_69 = arith.constant 1 : i32
      %c0_i32_70 = arith.constant 0 : i32
      %121 = tpu.memref_slice %arg20[%c1_i32_69, %c0_i32_70] : memref<32x128xf32, #tpu.memory_space<vmem>> -> memref<1x128xf32, #tpu.memory_space<vmem>>
      %122 = tpu.memref_slice %arg21[%c1_i32_67] : memref<32x!tpu.dma_semaphore, #tpu.memory_space<semaphore_mem>> -> memref<1x!tpu.dma_semaphore, #tpu.memory_space<semaphore_mem>>
      %123 = tpu.memref_squeeze %122 : memref<1x!tpu.dma_semaphore, #tpu.memory_space<semaphore_mem>> -> memref<!tpu.dma_semaphore, #tpu.memory_space<semaphore_mem>>
      tpu.enqueue_dma source(%120 : memref<1x128xf32, #tpu.memory_space<any>>) target(%121 : memref<1x128xf32, #tpu.memory_space<vmem>>) target_semaphore(%123 : memref<!tpu.dma_semaphore, #tpu.memory_space<semaphore_mem>>)
      %c2 = arith.constant 2 : index
      %124 = memref.load %arg1[%c2] : memref<32xi32, #tpu.memory_space<smem>>
      %c2_i32 = arith.constant 2 : i32
      %c0_i32_71 = arith.constant 0 : i32
      %125 = tpu.memref_slice %arg2[%124, %c0_i32_71] : memref<256x128xf32, #tpu.memory_space<any>> -> memref<1x128xf32, #tpu.memory_space<any>>
      %c2_i32_72 = arith.constant 2 : i32
      %c0_i32_73 = arith.constant 0 : i32
      %126 = tpu.memref_slice %arg20[%c2_i32_72, %c0_i32_73] : memref<32x128xf32, #tpu.memory_space<vmem>> -> memref<1x128xf32, #tpu.memory_space<vmem>>
      %127 = tpu.memref_slice %arg21[%c2_i32] : memref<32x!tpu.dma_semaphore, #tpu.memory_space<semaphore_mem>> -> memref<1x!tpu.dma_semaphore, #tpu.memory_space<semaphore_mem>>
      %128 = tpu.memref_squeeze %127 : memref<1x!tpu.dma_semaphore, #tpu.memory_space<semaphore_mem>> -> memref<!tpu.dma_semaphore, #tpu.memory_space<semaphore_mem>>
      tpu.enqueue_dma source(%125 : memref<1x128xf32, #tpu.memory_space<any>>) target(%126 : memref<1x128xf32, #tpu.memory_space<vmem>>) target_semaphore(%128 : memref<!tpu.dma_semaphore, #tpu.memory_space<semaphore_mem>>)
      %c3 = arith.constant 3 : index
      %129 = memref.load %arg1[%c3] : memref<32xi32, #tpu.memory_space<smem>>
      %c3_i32 = arith.constant 3 : i32
      %c0_i32_74 = arith.constant 0 : i32
      %130 = tpu.memref_slice %arg2[%129, %c0_i32_74] : memref<256x128xf32, #tpu.memory_space<any>> -> memref<1x128xf32, #tpu.memory_space<any>>
      %c3_i32_75 = arith.constant 3 : i32
      %c0_i32_76 = arith.constant 0 : i32
      %131 = tpu.memref_slice %arg20[%c3_i32_75, %c0_i32_76] : memref<32x128xf32, #tpu.memory_space<vmem>> -> memref<1x128xf32, #tpu.memory_space<vmem>>
      %132 = tpu.memref_slice %arg21[%c3_i32] : memref<32x!tpu.dma_semaphore, #tpu.memory_space<semaphore_mem>> -> memref<1x!tpu.dma_semaphore, #tpu.memory_space<semaphore_mem>>
      %133 = tpu.memref_squeeze %132 : memref<1x!tpu.dma_semaphore, #tpu.memory_space<semaphore_mem>> -> memref<!tpu.dma_semaphore, #tpu.memory_space<semaphore_mem>>
      tpu.enqueue_dma source(%130 : memref<1x128xf32, #tpu.memory_space<any>>) target(%131 : memref<1x128xf32, #tpu.memory_space<vmem>>) target_semaphore(%133 : memref<!tpu.dma_semaphore, #tpu.memory_space<semaphore_mem>>)
      %c4 = arith.constant 4 : index
      %134 = memref.load %arg1[%c4] : memref<32xi32, #tpu.memory_space<smem>>
      %c4_i32 = arith.constant 4 : i32
      %c0_i32_77 = arith.constant 0 : i32
      %135 = tpu.memref_slice %arg2[%134, %c0_i32_77] : memref<256x128xf32, #tpu.memory_space<any>> -> memref<1x128xf32, #tpu.memory_space<any>>
      %c4_i32_78 = arith.constant 4 : i32
      %c0_i32_79 = arith.constant 0 : i32
      %136 = tpu.memref_slice %arg20[%c4_i32_78, %c0_i32_79] : memref<32x128xf32, #tpu.memory_space<vmem>> -> memref<1x128xf32, #tpu.memory_space<vmem>>
      %137 = tpu.memref_slice %arg21[%c4_i32] : memref<32x!tpu.dma_semaphore, #tpu.memory_space<semaphore_mem>> -> memref<1x!tpu.dma_semaphore, #tpu.memory_space<semaphore_mem>>
      %138 = tpu.memref_squeeze %137 : memref<1x!tpu.dma_semaphore, #tpu.memory_space<semaphore_mem>> -> memref<!tpu.dma_semaphore, #tpu.memory_space<semaphore_mem>>
      tpu.enqueue_dma source(%135 : memref<1x128xf32, #tpu.memory_space<any>>) target(%136 : memref<1x128xf32, #tpu.memory_space<vmem>>) target_semaphore(%138 : memref<!tpu.dma_semaphore, #tpu.memory_space<semaphore_mem>>)
      %c5 = arith.constant 5 : index
      %139 = memref.load %arg1[%c5] : memref<32xi32, #tpu.memory_space<smem>>
      %c5_i32 = arith.constant 5 : i32
      %c0_i32_80 = arith.constant 0 : i32
      %140 = tpu.memref_slice %arg2[%139, %c0_i32_80] : memref<256x128xf32, #tpu.memory_space<any>> -> memref<1x128xf32, #tpu.memory_space<any>>
      %c5_i32_81 = arith.constant 5 : i32
      %c0_i32_82 = arith.constant 0 : i32
      %141 = tpu.memref_slice %arg20[%c5_i32_81, %c0_i32_82] : memref<32x128xf32, #tpu.memory_space<vmem>> -> memref<1x128xf32, #tpu.memory_space<vmem>>
      %142 = tpu.memref_slice %arg21[%c5_i32] : memref<32x!tpu.dma_semaphore, #tpu.memory_space<semaphore_mem>> -> memref<1x!tpu.dma_semaphore, #tpu.memory_space<semaphore_mem>>
      %143 = tpu.memref_squeeze %142 : memref<1x!tpu.dma_semaphore, #tpu.memory_space<semaphore_mem>> -> memref<!tpu.dma_semaphore, #tpu.memory_space<semaphore_mem>>
      tpu.enqueue_dma source(%140 : memref<1x128xf32, #tpu.memory_space<any>>) target(%141 : memref<1x128xf32, #tpu.memory_space<vmem>>) target_semaphore(%143 : memref<!tpu.dma_semaphore, #tpu.memory_space<semaphore_mem>>)
      %c6 = arith.constant 6 : index
      %144 = memref.load %arg1[%c6] : memref<32xi32, #tpu.memory_space<smem>>
      %c6_i32 = arith.constant 6 : i32
      %c0_i32_83 = arith.constant 0 : i32
      %145 = tpu.memref_slice %arg2[%144, %c0_i32_83] : memref<256x128xf32, #tpu.memory_space<any>> -> memref<1x128xf32, #tpu.memory_space<any>>
      %c6_i32_84 = arith.constant 6 : i32
      %c0_i32_85 = arith.constant 0 : i32
      %146 = tpu.memref_slice %arg20[%c6_i32_84, %c0_i32_85] : memref<32x128xf32, #tpu.memory_space<vmem>> -> memref<1x128xf32, #tpu.memory_space<vmem>>
      %147 = tpu.memref_slice %arg21[%c6_i32] : memref<32x!tpu.dma_semaphore, #tpu.memory_space<semaphore_mem>> -> memref<1x!tpu.dma_semaphore, #tpu.memory_space<semaphore_mem>>
      %148 = tpu.memref_squeeze %147 : memref<1x!tpu.dma_semaphore, #tpu.memory_space<semaphore_mem>> -> memref<!tpu.dma_semaphore, #tpu.memory_space<semaphore_mem>>
      tpu.enqueue_dma source(%145 : memref<1x128xf32, #tpu.memory_space<any>>) target(%146 : memref<1x128xf32, #tpu.memory_space<vmem>>) target_semaphore(%148 : memref<!tpu.dma_semaphore, #tpu.memory_space<semaphore_mem>>)
      %c7 = arith.constant 7 : index
      %149 = memref.load %arg1[%c7] : memref<32xi32, #tpu.memory_space<smem>>
      %c7_i32 = arith.constant 7 : i32
      %c0_i32_86 = arith.constant 0 : i32
      %150 = tpu.memref_slice %arg2[%149, %c0_i32_86] : memref<256x128xf32, #tpu.memory_space<any>> -> memref<1x128xf32, #tpu.memory_space<any>>
      %c7_i32_87 = arith.constant 7 : i32
      %c0_i32_88 = arith.constant 0 : i32
      %151 = tpu.memref_slice %arg20[%c7_i32_87, %c0_i32_88] : memref<32x128xf32, #tpu.memory_space<vmem>> -> memref<1x128xf32, #tpu.memory_space<vmem>>
      %152 = tpu.memref_slice %arg21[%c7_i32] : memref<32x!tpu.dma_semaphore, #tpu.memory_space<semaphore_mem>> -> memref<1x!tpu.dma_semaphore, #tpu.memory_space<semaphore_mem>>
      %153 = tpu.memref_squeeze %152 : memref<1x!tpu.dma_semaphore, #tpu.memory_space<semaphore_mem>> -> memref<!tpu.dma_semaphore, #tpu.memory_space<semaphore_mem>>
      tpu.enqueue_dma source(%150 : memref<1x128xf32, #tpu.memory_space<any>>) target(%151 : memref<1x128xf32, #tpu.memory_space<vmem>>) target_semaphore(%153 : memref<!tpu.dma_semaphore, #tpu.memory_space<semaphore_mem>>)
      %c8 = arith.constant 8 : index
      %154 = memref.load %arg1[%c8] : memref<32xi32, #tpu.memory_space<smem>>
      %c8_i32 = arith.constant 8 : i32
      %c0_i32_89 = arith.constant 0 : i32
      %155 = tpu.memref_slice %arg2[%154, %c0_i32_89] : memref<256x128xf32, #tpu.memory_space<any>> -> memref<1x128xf32, #tpu.memory_space<any>>
      %c8_i32_90 = arith.constant 8 : i32
      %c0_i32_91 = arith.constant 0 : i32
      %156 = tpu.memref_slice %arg20[%c8_i32_90, %c0_i32_91] : memref<32x128xf32, #tpu.memory_space<vmem>> -> memref<1x128xf32, #tpu.memory_space<vmem>>
      %157 = tpu.memref_slice %arg21[%c8_i32] : memref<32x!tpu.dma_semaphore, #tpu.memory_space<semaphore_mem>> -> memref<1x!tpu.dma_semaphore, #tpu.memory_space<semaphore_mem>>
      %158 = tpu.memref_squeeze %157 : memref<1x!tpu.dma_semaphore, #tpu.memory_space<semaphore_mem>> -> memref<!tpu.dma_semaphore, #tpu.memory_space<semaphore_mem>>
      tpu.enqueue_dma source(%155 : memref<1x128xf32, #tpu.memory_space<any>>) target(%156 : memref<1x128xf32, #tpu.memory_space<vmem>>) target_semaphore(%158 : memref<!tpu.dma_semaphore, #tpu.memory_space<semaphore_mem>>)
      %c9 = arith.constant 9 : index
      %159 = memref.load %arg1[%c9] : memref<32xi32, #tpu.memory_space<smem>>
      %c9_i32 = arith.constant 9 : i32
      %c0_i32_92 = arith.constant 0 : i32
      %160 = tpu.memref_slice %arg2[%159, %c0_i32_92] : memref<256x128xf32, #tpu.memory_space<any>> -> memref<1x128xf32, #tpu.memory_space<any>>
      %c9_i32_93 = arith.constant 9 : i32
      %c0_i32_94 = arith.constant 0 : i32
      %161 = tpu.memref_slice %arg20[%c9_i32_93, %c0_i32_94] : memref<32x128xf32, #tpu.memory_space<vmem>> -> memref<1x128xf32, #tpu.memory_space<vmem>>
      %162 = tpu.memref_slice %arg21[%c9_i32] : memref<32x!tpu.dma_semaphore, #tpu.memory_space<semaphore_mem>> -> memref<1x!tpu.dma_semaphore, #tpu.memory_space<semaphore_mem>>
      %163 = tpu.memref_squeeze %162 : memref<1x!tpu.dma_semaphore, #tpu.memory_space<semaphore_mem>> -> memref<!tpu.dma_semaphore, #tpu.memory_space<semaphore_mem>>
      tpu.enqueue_dma source(%160 : memref<1x128xf32, #tpu.memory_space<any>>) target(%161 : memref<1x128xf32, #tpu.memory_space<vmem>>) target_semaphore(%163 : memref<!tpu.dma_semaphore, #tpu.memory_space<semaphore_mem>>)
      %c10 = arith.constant 10 : index
      %164 = memref.load %arg1[%c10] : memref<32xi32, #tpu.memory_space<smem>>
      %c10_i32 = arith.constant 10 : i32
      %c0_i32_95 = arith.constant 0 : i32
      %165 = tpu.memref_slice %arg2[%164, %c0_i32_95] : memref<256x128xf32, #tpu.memory_space<any>> -> memref<1x128xf32, #tpu.memory_space<any>>
      %c10_i32_96 = arith.constant 10 : i32
      %c0_i32_97 = arith.constant 0 : i32
      %166 = tpu.memref_slice %arg20[%c10_i32_96, %c0_i32_97] : memref<32x128xf32, #tpu.memory_space<vmem>> -> memref<1x128xf32, #tpu.memory_space<vmem>>
      %167 = tpu.memref_slice %arg21[%c10_i32] : memref<32x!tpu.dma_semaphore, #tpu.memory_space<semaphore_mem>> -> memref<1x!tpu.dma_semaphore, #tpu.memory_space<semaphore_mem>>
      %168 = tpu.memref_squeeze %167 : memref<1x!tpu.dma_semaphore, #tpu.memory_space<semaphore_mem>> -> memref<!tpu.dma_semaphore, #tpu.memory_space<semaphore_mem>>
      tpu.enqueue_dma source(%165 : memref<1x128xf32, #tpu.memory_space<any>>) target(%166 : memref<1x128xf32, #tpu.memory_space<vmem>>) target_semaphore(%168 : memref<!tpu.dma_semaphore, #tpu.memory_space<semaphore_mem>>)
      %c11 = arith.constant 11 : index
      %169 = memref.load %arg1[%c11] : memref<32xi32, #tpu.memory_space<smem>>
      %c11_i32 = arith.constant 11 : i32
      %c0_i32_98 = arith.constant 0 : i32
      %170 = tpu.memref_slice %arg2[%169, %c0_i32_98] : memref<256x128xf32, #tpu.memory_space<any>> -> memref<1x128xf32, #tpu.memory_space<any>>
      %c11_i32_99 = arith.constant 11 : i32
      %c0_i32_100 = arith.constant 0 : i32
      %171 = tpu.memref_slice %arg20[%c11_i32_99, %c0_i32_100] : memref<32x128xf32, #tpu.memory_space<vmem>> -> memref<1x128xf32, #tpu.memory_space<vmem>>
      %172 = tpu.memref_slice %arg21[%c11_i32] : memref<32x!tpu.dma_semaphore, #tpu.memory_space<semaphore_mem>> -> memref<1x!tpu.dma_semaphore, #tpu.memory_space<semaphore_mem>>
      %173 = tpu.memref_squeeze %172 : memref<1x!tpu.dma_semaphore, #tpu.memory_space<semaphore_mem>> -> memref<!tpu.dma_semaphore, #tpu.memory_space<semaphore_mem>>
      tpu.enqueue_dma source(%170 : memref<1x128xf32, #tpu.memory_space<any>>) target(%171 : memref<1x128xf32, #tpu.memory_space<vmem>>) target_semaphore(%173 : memref<!tpu.dma_semaphore, #tpu.memory_space<semaphore_mem>>)
      %c12 = arith.constant 12 : index
      %174 = memref.load %arg1[%c12] : memref<32xi32, #tpu.memory_space<smem>>
      %c12_i32 = arith.constant 12 : i32
      %c0_i32_101 = arith.constant 0 : i32
      %175 = tpu.memref_slice %arg2[%174, %c0_i32_101] : memref<256x128xf32, #tpu.memory_space<any>> -> memref<1x128xf32, #tpu.memory_space<any>>
      %c12_i32_102 = arith.constant 12 : i32
      %c0_i32_103 = arith.constant 0 : i32
      %176 = tpu.memref_slice %arg20[%c12_i32_102, %c0_i32_103] : memref<32x128xf32, #tpu.memory_space<vmem>> -> memref<1x128xf32, #tpu.memory_space<vmem>>
      %177 = tpu.memref_slice %arg21[%c12_i32] : memref<32x!tpu.dma_semaphore, #tpu.memory_space<semaphore_mem>> -> memref<1x!tpu.dma_semaphore, #tpu.memory_space<semaphore_mem>>
      %178 = tpu.memref_squeeze %177 : memref<1x!tpu.dma_semaphore, #tpu.memory_space<semaphore_mem>> -> memref<!tpu.dma_semaphore, #tpu.memory_space<semaphore_mem>>
      tpu.enqueue_dma source(%175 : memref<1x128xf32, #tpu.memory_space<any>>) target(%176 : memref<1x128xf32, #tpu.memory_space<vmem>>) target_semaphore(%178 : memref<!tpu.dma_semaphore, #tpu.memory_space<semaphore_mem>>)
      %c13 = arith.constant 13 : index
      %179 = memref.load %arg1[%c13] : memref<32xi32, #tpu.memory_space<smem>>
      %c13_i32 = arith.constant 13 : i32
      %c0_i32_104 = arith.constant 0 : i32
      %180 = tpu.memref_slice %arg2[%179, %c0_i32_104] : memref<256x128xf32, #tpu.memory_space<any>> -> memref<1x128xf32, #tpu.memory_space<any>>
      %c13_i32_105 = arith.constant 13 : i32
      %c0_i32_106 = arith.constant 0 : i32
      %181 = tpu.memref_slice %arg20[%c13_i32_105, %c0_i32_106] : memref<32x128xf32, #tpu.memory_space<vmem>> -> memref<1x128xf32, #tpu.memory_space<vmem>>
      %182 = tpu.memref_slice %arg21[%c13_i32] : memref<32x!tpu.dma_semaphore, #tpu.memory_space<semaphore_mem>> -> memref<1x!tpu.dma_semaphore, #tpu.memory_space<semaphore_mem>>
      %183 = tpu.memref_squeeze %182 : memref<1x!tpu.dma_semaphore, #tpu.memory_space<semaphore_mem>> -> memref<!tpu.dma_semaphore, #tpu.memory_space<semaphore_mem>>
      tpu.enqueue_dma source(%180 : memref<1x128xf32, #tpu.memory_space<any>>) target(%181 : memref<1x128xf32, #tpu.memory_space<vmem>>) target_semaphore(%183 : memref<!tpu.dma_semaphore, #tpu.memory_space<semaphore_mem>>)
      %c14 = arith.constant 14 : index
      %184 = memref.load %arg1[%c14] : memref<32xi32, #tpu.memory_space<smem>>
      %c14_i32 = arith.constant 14 : i32
      %c0_i32_107 = arith.constant 0 : i32
      %185 = tpu.memref_slice %arg2[%184, %c0_i32_107] : memref<256x128xf32, #tpu.memory_space<any>> -> memref<1x128xf32, #tpu.memory_space<any>>
      %c14_i32_108 = arith.constant 14 : i32
      %c0_i32_109 = arith.constant 0 : i32
      %186 = tpu.memref_slice %arg20[%c14_i32_108, %c0_i32_109] : memref<32x128xf32, #tpu.memory_space<vmem>> -> memref<1x128xf32, #tpu.memory_space<vmem>>
      %187 = tpu.memref_slice %arg21[%c14_i32] : memref<32x!tpu.dma_semaphore, #tpu.memory_space<semaphore_mem>> -> memref<1x!tpu.dma_semaphore, #tpu.memory_space<semaphore_mem>>
      %188 = tpu.memref_squeeze %187 : memref<1x!tpu.dma_semaphore, #tpu.memory_space<semaphore_mem>> -> memref<!tpu.dma_semaphore, #tpu.memory_space<semaphore_mem>>
      tpu.enqueue_dma source(%185 : memref<1x128xf32, #tpu.memory_space<any>>) target(%186 : memref<1x128xf32, #tpu.memory_space<vmem>>) target_semaphore(%188 : memref<!tpu.dma_semaphore, #tpu.memory_space<semaphore_mem>>)
      %c15 = arith.constant 15 : index
      %189 = memref.load %arg1[%c15] : memref<32xi32, #tpu.memory_space<smem>>
      %c15_i32 = arith.constant 15 : i32
      %c0_i32_110 = arith.constant 0 : i32
      %190 = tpu.memref_slice %arg2[%189, %c0_i32_110] : memref<256x128xf32, #tpu.memory_space<any>> -> memref<1x128xf32, #tpu.memory_space<any>>
      %c15_i32_111 = arith.constant 15 : i32
      %c0_i32_112 = arith.constant 0 : i32
      %191 = tpu.memref_slice %arg20[%c15_i32_111, %c0_i32_112] : memref<32x128xf32, #tpu.memory_space<vmem>> -> memref<1x128xf32, #tpu.memory_space<vmem>>
      %192 = tpu.memref_slice %arg21[%c15_i32] : memref<32x!tpu.dma_semaphore, #tpu.memory_space<semaphore_mem>> -> memref<1x!tpu.dma_semaphore, #tpu.memory_space<semaphore_mem>>
      %193 = tpu.memref_squeeze %192 : memref<1x!tpu.dma_semaphore, #tpu.memory_space<semaphore_mem>> -> memref<!tpu.dma_semaphore, #tpu.memory_space<semaphore_mem>>
      tpu.enqueue_dma source(%190 : memref<1x128xf32, #tpu.memory_space<any>>) target(%191 : memref<1x128xf32, #tpu.memory_space<vmem>>) target_semaphore(%193 : memref<!tpu.dma_semaphore, #tpu.memory_space<semaphore_mem>>)
      %c16 = arith.constant 16 : index
      %194 = memref.load %arg1[%c16] : memref<32xi32, #tpu.memory_space<smem>>
      %c16_i32_113 = arith.constant 16 : i32
      %c0_i32_114 = arith.constant 0 : i32
      %195 = tpu.memref_slice %arg2[%194, %c0_i32_114] : memref<256x128xf32, #tpu.memory_space<any>> -> memref<1x128xf32, #tpu.memory_space<any>>
      %c16_i32_115 = arith.constant 16 : i32
      %c0_i32_116 = arith.constant 0 : i32
      %196 = tpu.memref_slice %arg20[%c16_i32_115, %c0_i32_116] : memref<32x128xf32, #tpu.memory_space<vmem>> -> memref<1x128xf32, #tpu.memory_space<vmem>>
      %197 = tpu.memref_slice %arg21[%c16_i32_113] : memref<32x!tpu.dma_semaphore, #tpu.memory_space<semaphore_mem>> -> memref<1x!tpu.dma_semaphore, #tpu.memory_space<semaphore_mem>>
      %198 = tpu.memref_squeeze %197 : memref<1x!tpu.dma_semaphore, #tpu.memory_space<semaphore_mem>> -> memref<!tpu.dma_semaphore, #tpu.memory_space<semaphore_mem>>
      tpu.enqueue_dma source(%195 : memref<1x128xf32, #tpu.memory_space<any>>) target(%196 : memref<1x128xf32, #tpu.memory_space<vmem>>) target_semaphore(%198 : memref<!tpu.dma_semaphore, #tpu.memory_space<semaphore_mem>>)
      %c17 = arith.constant 17 : index
      %199 = memref.load %arg1[%c17] : memref<32xi32, #tpu.memory_space<smem>>
      %c17_i32 = arith.constant 17 : i32
      %c0_i32_117 = arith.constant 0 : i32
      %200 = tpu.memref_slice %arg2[%199, %c0_i32_117] : memref<256x128xf32, #tpu.memory_space<any>> -> memref<1x128xf32, #tpu.memory_space<any>>
      %c17_i32_118 = arith.constant 17 : i32
      %c0_i32_119 = arith.constant 0 : i32
      %201 = tpu.memref_slice %arg20[%c17_i32_118, %c0_i32_119] : memref<32x128xf32, #tpu.memory_space<vmem>> -> memref<1x128xf32, #tpu.memory_space<vmem>>
      %202 = tpu.memref_slice %arg21[%c17_i32] : memref<32x!tpu.dma_semaphore, #tpu.memory_space<semaphore_mem>> -> memref<1x!tpu.dma_semaphore, #tpu.memory_space<semaphore_mem>>
      %203 = tpu.memref_squeeze %202 : memref<1x!tpu.dma_semaphore, #tpu.memory_space<semaphore_mem>> -> memref<!tpu.dma_semaphore, #tpu.memory_space<semaphore_mem>>
      tpu.enqueue_dma source(%200 : memref<1x128xf32, #tpu.memory_space<any>>) target(%201 : memref<1x128xf32, #tpu.memory_space<vmem>>) target_semaphore(%203 : memref<!tpu.dma_semaphore, #tpu.memory_space<semaphore_mem>>)
      %c18 = arith.constant 18 : index
      %204 = memref.load %arg1[%c18] : memref<32xi32, #tpu.memory_space<smem>>
      %c18_i32 = arith.constant 18 : i32
      %c0_i32_120 = arith.constant 0 : i32
      %205 = tpu.memref_slice %arg2[%204, %c0_i32_120] : memref<256x128xf32, #tpu.memory_space<any>> -> memref<1x128xf32, #tpu.memory_space<any>>
      %c18_i32_121 = arith.constant 18 : i32
      %c0_i32_122 = arith.constant 0 : i32
      %206 = tpu.memref_slice %arg20[%c18_i32_121, %c0_i32_122] : memref<32x128xf32, #tpu.memory_space<vmem>> -> memref<1x128xf32, #tpu.memory_space<vmem>>
      %207 = tpu.memref_slice %arg21[%c18_i32] : memref<32x!tpu.dma_semaphore, #tpu.memory_space<semaphore_mem>> -> memref<1x!tpu.dma_semaphore, #tpu.memory_space<semaphore_mem>>
      %208 = tpu.memref_squeeze %207 : memref<1x!tpu.dma_semaphore, #tpu.memory_space<semaphore_mem>> -> memref<!tpu.dma_semaphore, #tpu.memory_space<semaphore_mem>>
      tpu.enqueue_dma source(%205 : memref<1x128xf32, #tpu.memory_space<any>>) target(%206 : memref<1x128xf32, #tpu.memory_space<vmem>>) target_semaphore(%208 : memref<!tpu.dma_semaphore, #tpu.memory_space<semaphore_mem>>)
      %c19 = arith.constant 19 : index
      %209 = memref.load %arg1[%c19] : memref<32xi32, #tpu.memory_space<smem>>
      %c19_i32 = arith.constant 19 : i32
      %c0_i32_123 = arith.constant 0 : i32
      %210 = tpu.memref_slice %arg2[%209, %c0_i32_123] : memref<256x128xf32, #tpu.memory_space<any>> -> memref<1x128xf32, #tpu.memory_space<any>>
      %c19_i32_124 = arith.constant 19 : i32
      %c0_i32_125 = arith.constant 0 : i32
      %211 = tpu.memref_slice %arg20[%c19_i32_124, %c0_i32_125] : memref<32x128xf32, #tpu.memory_space<vmem>> -> memref<1x128xf32, #tpu.memory_space<vmem>>
      %212 = tpu.memref_slice %arg21[%c19_i32] : memref<32x!tpu.dma_semaphore, #tpu.memory_space<semaphore_mem>> -> memref<1x!tpu.dma_semaphore, #tpu.memory_space<semaphore_mem>>
      %213 = tpu.memref_squeeze %212 : memref<1x!tpu.dma_semaphore, #tpu.memory_space<semaphore_mem>> -> memref<!tpu.dma_semaphore, #tpu.memory_space<semaphore_mem>>
      tpu.enqueue_dma source(%210 : memref<1x128xf32, #tpu.memory_space<any>>) target(%211 : memref<1x128xf32, #tpu.memory_space<vmem>>) target_semaphore(%213 : memref<!tpu.dma_semaphore, #tpu.memory_space<semaphore_mem>>)
      %c20 = arith.constant 20 : index
      %214 = memref.load %arg1[%c20] : memref<32xi32, #tpu.memory_space<smem>>
      %c20_i32 = arith.constant 20 : i32
      %c0_i32_126 = arith.constant 0 : i32
      %215 = tpu.memref_slice %arg2[%214, %c0_i32_126] : memref<256x128xf32, #tpu.memory_space<any>> -> memref<1x128xf32, #tpu.memory_space<any>>
      %c20_i32_127 = arith.constant 20 : i32
      %c0_i32_128 = arith.constant 0 : i32
      %216 = tpu.memref_slice %arg20[%c20_i32_127, %c0_i32_128] : memref<32x128xf32, #tpu.memory_space<vmem>> -> memref<1x128xf32, #tpu.memory_space<vmem>>
      %217 = tpu.memref_slice %arg21[%c20_i32] : memref<32x!tpu.dma_semaphore, #tpu.memory_space<semaphore_mem>> -> memref<1x!tpu.dma_semaphore, #tpu.memory_space<semaphore_mem>>
      %218 = tpu.memref_squeeze %217 : memref<1x!tpu.dma_semaphore, #tpu.memory_space<semaphore_mem>> -> memref<!tpu.dma_semaphore, #tpu.memory_space<semaphore_mem>>
      tpu.enqueue_dma source(%215 : memref<1x128xf32, #tpu.memory_space<any>>) target(%216 : memref<1x128xf32, #tpu.memory_space<vmem>>) target_semaphore(%218 : memref<!tpu.dma_semaphore, #tpu.memory_space<semaphore_mem>>)
      %c21 = arith.constant 21 : index
      %219 = memref.load %arg1[%c21] : memref<32xi32, #tpu.memory_space<smem>>
      %c21_i32 = arith.constant 21 : i32
      %c0_i32_129 = arith.constant 0 : i32
      %220 = tpu.memref_slice %arg2[%219, %c0_i32_129] : memref<256x128xf32, #tpu.memory_space<any>> -> memref<1x128xf32, #tpu.memory_space<any>>
      %c21_i32_130 = arith.constant 21 : i32
      %c0_i32_131 = arith.constant 0 : i32
      %221 = tpu.memref_slice %arg20[%c21_i32_130, %c0_i32_131] : memref<32x128xf32, #tpu.memory_space<vmem>> -> memref<1x128xf32, #tpu.memory_space<vmem>>
      %222 = tpu.memref_slice %arg21[%c21_i32] : memref<32x!tpu.dma_semaphore, #tpu.memory_space<semaphore_mem>> -> memref<1x!tpu.dma_semaphore, #tpu.memory_space<semaphore_mem>>
      %223 = tpu.memref_squeeze %222 : memref<1x!tpu.dma_semaphore, #tpu.memory_space<semaphore_mem>> -> memref<!tpu.dma_semaphore, #tpu.memory_space<semaphore_mem>>
      tpu.enqueue_dma source(%220 : memref<1x128xf32, #tpu.memory_space<any>>) target(%221 : memref<1x128xf32, #tpu.memory_space<vmem>>) target_semaphore(%223 : memref<!tpu.dma_semaphore, #tpu.memory_space<semaphore_mem>>)
      %c22 = arith.constant 22 : index
      %224 = memref.load %arg1[%c22] : memref<32xi32, #tpu.memory_space<smem>>
      %c22_i32 = arith.constant 22 : i32
      %c0_i32_132 = arith.constant 0 : i32
      %225 = tpu.memref_slice %arg2[%224, %c0_i32_132] : memref<256x128xf32, #tpu.memory_space<any>> -> memref<1x128xf32, #tpu.memory_space<any>>
      %c22_i32_133 = arith.constant 22 : i32
      %c0_i32_134 = arith.constant 0 : i32
      %226 = tpu.memref_slice %arg20[%c22_i32_133, %c0_i32_134] : memref<32x128xf32, #tpu.memory_space<vmem>> -> memref<1x128xf32, #tpu.memory_space<vmem>>
      %227 = tpu.memref_slice %arg21[%c22_i32] : memref<32x!tpu.dma_semaphore, #tpu.memory_space<semaphore_mem>> -> memref<1x!tpu.dma_semaphore, #tpu.memory_space<semaphore_mem>>
      %228 = tpu.memref_squeeze %227 : memref<1x!tpu.dma_semaphore, #tpu.memory_space<semaphore_mem>> -> memref<!tpu.dma_semaphore, #tpu.memory_space<semaphore_mem>>
      tpu.enqueue_dma source(%225 : memref<1x128xf32, #tpu.memory_space<any>>) target(%226 : memref<1x128xf32, #tpu.memory_space<vmem>>) target_semaphore(%228 : memref<!tpu.dma_semaphore, #tpu.memory_space<semaphore_mem>>)
      %c23 = arith.constant 23 : index
      %229 = memref.load %arg1[%c23] : memref<32xi32, #tpu.memory_space<smem>>
      %c23_i32 = arith.constant 23 : i32
      %c0_i32_135 = arith.constant 0 : i32
      %230 = tpu.memref_slice %arg2[%229, %c0_i32_135] : memref<256x128xf32, #tpu.memory_space<any>> -> memref<1x128xf32, #tpu.memory_space<any>>
      %c23_i32_136 = arith.constant 23 : i32
      %c0_i32_137 = arith.constant 0 : i32
      %231 = tpu.memref_slice %arg20[%c23_i32_136, %c0_i32_137] : memref<32x128xf32, #tpu.memory_space<vmem>> -> memref<1x128xf32, #tpu.memory_space<vmem>>
      %232 = tpu.memref_slice %arg21[%c23_i32] : memref<32x!tpu.dma_semaphore, #tpu.memory_space<semaphore_mem>> -> memref<1x!tpu.dma_semaphore, #tpu.memory_space<semaphore_mem>>
      %233 = tpu.memref_squeeze %232 : memref<1x!tpu.dma_semaphore, #tpu.memory_space<semaphore_mem>> -> memref<!tpu.dma_semaphore, #tpu.memory_space<semaphore_mem>>
      tpu.enqueue_dma source(%230 : memref<1x128xf32, #tpu.memory_space<any>>) target(%231 : memref<1x128xf32, #tpu.memory_space<vmem>>) target_semaphore(%233 : memref<!tpu.dma_semaphore, #tpu.memory_space<semaphore_mem>>)
      %c24 = arith.constant 24 : index
      %234 = memref.load %arg1[%c24] : memref<32xi32, #tpu.memory_space<smem>>
      %c24_i32 = arith.constant 24 : i32
      %c0_i32_138 = arith.constant 0 : i32
      %235 = tpu.memref_slice %arg2[%234, %c0_i32_138] : memref<256x128xf32, #tpu.memory_space<any>> -> memref<1x128xf32, #tpu.memory_space<any>>
      %c24_i32_139 = arith.constant 24 : i32
      %c0_i32_140 = arith.constant 0 : i32
      %236 = tpu.memref_slice %arg20[%c24_i32_139, %c0_i32_140] : memref<32x128xf32, #tpu.memory_space<vmem>> -> memref<1x128xf32, #tpu.memory_space<vmem>>
      %237 = tpu.memref_slice %arg21[%c24_i32] : memref<32x!tpu.dma_semaphore, #tpu.memory_space<semaphore_mem>> -> memref<1x!tpu.dma_semaphore, #tpu.memory_space<semaphore_mem>>
      %238 = tpu.memref_squeeze %237 : memref<1x!tpu.dma_semaphore, #tpu.memory_space<semaphore_mem>> -> memref<!tpu.dma_semaphore, #tpu.memory_space<semaphore_mem>>
      tpu.enqueue_dma source(%235 : memref<1x128xf32, #tpu.memory_space<any>>) target(%236 : memref<1x128xf32, #tpu.memory_space<vmem>>) target_semaphore(%238 : memref<!tpu.dma_semaphore, #tpu.memory_space<semaphore_mem>>)
      %c25 = arith.constant 25 : index
      %239 = memref.load %arg1[%c25] : memref<32xi32, #tpu.memory_space<smem>>
      %c25_i32 = arith.constant 25 : i32
      %c0_i32_141 = arith.constant 0 : i32
      %240 = tpu.memref_slice %arg2[%239, %c0_i32_141] : memref<256x128xf32, #tpu.memory_space<any>> -> memref<1x128xf32, #tpu.memory_space<any>>
      %c25_i32_142 = arith.constant 25 : i32
      %c0_i32_143 = arith.constant 0 : i32
      %241 = tpu.memref_slice %arg20[%c25_i32_142, %c0_i32_143] : memref<32x128xf32, #tpu.memory_space<vmem>> -> memref<1x128xf32, #tpu.memory_space<vmem>>
      %242 = tpu.memref_slice %arg21[%c25_i32] : memref<32x!tpu.dma_semaphore, #tpu.memory_space<semaphore_mem>> -> memref<1x!tpu.dma_semaphore, #tpu.memory_space<semaphore_mem>>
      %243 = tpu.memref_squeeze %242 : memref<1x!tpu.dma_semaphore, #tpu.memory_space<semaphore_mem>> -> memref<!tpu.dma_semaphore, #tpu.memory_space<semaphore_mem>>
      tpu.enqueue_dma source(%240 : memref<1x128xf32, #tpu.memory_space<any>>) target(%241 : memref<1x128xf32, #tpu.memory_space<vmem>>) target_semaphore(%243 : memref<!tpu.dma_semaphore, #tpu.memory_space<semaphore_mem>>)
      %c26 = arith.constant 26 : index
      %244 = memref.load %arg1[%c26] : memref<32xi32, #tpu.memory_space<smem>>
      %c26_i32 = arith.constant 26 : i32
      %c0_i32_144 = arith.constant 0 : i32
      %245 = tpu.memref_slice %arg2[%244, %c0_i32_144] : memref<256x128xf32, #tpu.memory_space<any>> -> memref<1x128xf32, #tpu.memory_space<any>>
      %c26_i32_145 = arith.constant 26 : i32
      %c0_i32_146 = arith.constant 0 : i32
      %246 = tpu.memref_slice %arg20[%c26_i32_145, %c0_i32_146] : memref<32x128xf32, #tpu.memory_space<vmem>> -> memref<1x128xf32, #tpu.memory_space<vmem>>
      %247 = tpu.memref_slice %arg21[%c26_i32] : memref<32x!tpu.dma_semaphore, #tpu.memory_space<semaphore_mem>> -> memref<1x!tpu.dma_semaphore, #tpu.memory_space<semaphore_mem>>
      %248 = tpu.memref_squeeze %247 : memref<1x!tpu.dma_semaphore, #tpu.memory_space<semaphore_mem>> -> memref<!tpu.dma_semaphore, #tpu.memory_space<semaphore_mem>>
      tpu.enqueue_dma source(%245 : memref<1x128xf32, #tpu.memory_space<any>>) target(%246 : memref<1x128xf32, #tpu.memory_space<vmem>>) target_semaphore(%248 : memref<!tpu.dma_semaphore, #tpu.memory_space<semaphore_mem>>)
      %c27 = arith.constant 27 : index
      %249 = memref.load %arg1[%c27] : memref<32xi32, #tpu.memory_space<smem>>
      %c27_i32 = arith.constant 27 : i32
      %c0_i32_147 = arith.constant 0 : i32
      %250 = tpu.memref_slice %arg2[%249, %c0_i32_147] : memref<256x128xf32, #tpu.memory_space<any>> -> memref<1x128xf32, #tpu.memory_space<any>>
      %c27_i32_148 = arith.constant 27 : i32
      %c0_i32_149 = arith.constant 0 : i32
      %251 = tpu.memref_slice %arg20[%c27_i32_148, %c0_i32_149] : memref<32x128xf32, #tpu.memory_space<vmem>> -> memref<1x128xf32, #tpu.memory_space<vmem>>
      %252 = tpu.memref_slice %arg21[%c27_i32] : memref<32x!tpu.dma_semaphore, #tpu.memory_space<semaphore_mem>> -> memref<1x!tpu.dma_semaphore, #tpu.memory_space<semaphore_mem>>
      %253 = tpu.memref_squeeze %252 : memref<1x!tpu.dma_semaphore, #tpu.memory_space<semaphore_mem>> -> memref<!tpu.dma_semaphore, #tpu.memory_space<semaphore_mem>>
      tpu.enqueue_dma source(%250 : memref<1x128xf32, #tpu.memory_space<any>>) target(%251 : memref<1x128xf32, #tpu.memory_space<vmem>>) target_semaphore(%253 : memref<!tpu.dma_semaphore, #tpu.memory_space<semaphore_mem>>)
      %c28 = arith.constant 28 : index
      %254 = memref.load %arg1[%c28] : memref<32xi32, #tpu.memory_space<smem>>
      %c28_i32 = arith.constant 28 : i32
      %c0_i32_150 = arith.constant 0 : i32
      %255 = tpu.memref_slice %arg2[%254, %c0_i32_150] : memref<256x128xf32, #tpu.memory_space<any>> -> memref<1x128xf32, #tpu.memory_space<any>>
      %c28_i32_151 = arith.constant 28 : i32
      %c0_i32_152 = arith.constant 0 : i32
      %256 = tpu.memref_slice %arg20[%c28_i32_151, %c0_i32_152] : memref<32x128xf32, #tpu.memory_space<vmem>> -> memref<1x128xf32, #tpu.memory_space<vmem>>
      %257 = tpu.memref_slice %arg21[%c28_i32] : memref<32x!tpu.dma_semaphore, #tpu.memory_space<semaphore_mem>> -> memref<1x!tpu.dma_semaphore, #tpu.memory_space<semaphore_mem>>
      %258 = tpu.memref_squeeze %257 : memref<1x!tpu.dma_semaphore, #tpu.memory_space<semaphore_mem>> -> memref<!tpu.dma_semaphore, #tpu.memory_space<semaphore_mem>>
      tpu.enqueue_dma source(%255 : memref<1x128xf32, #tpu.memory_space<any>>) target(%256 : memref<1x128xf32, #tpu.memory_space<vmem>>) target_semaphore(%258 : memref<!tpu.dma_semaphore, #tpu.memory_space<semaphore_mem>>)
      %c29 = arith.constant 29 : index
      %259 = memref.load %arg1[%c29] : memref<32xi32, #tpu.memory_space<smem>>
      %c29_i32 = arith.constant 29 : i32
      %c0_i32_153 = arith.constant 0 : i32
      %260 = tpu.memref_slice %arg2[%259, %c0_i32_153] : memref<256x128xf32, #tpu.memory_space<any>> -> memref<1x128xf32, #tpu.memory_space<any>>
      %c29_i32_154 = arith.constant 29 : i32
      %c0_i32_155 = arith.constant 0 : i32
      %261 = tpu.memref_slice %arg20[%c29_i32_154, %c0_i32_155] : memref<32x128xf32, #tpu.memory_space<vmem>> -> memref<1x128xf32, #tpu.memory_space<vmem>>
      %262 = tpu.memref_slice %arg21[%c29_i32] : memref<32x!tpu.dma_semaphore, #tpu.memory_space<semaphore_mem>> -> memref<1x!tpu.dma_semaphore, #tpu.memory_space<semaphore_mem>>
      %263 = tpu.memref_squeeze %262 : memref<1x!tpu.dma_semaphore, #tpu.memory_space<semaphore_mem>> -> memref<!tpu.dma_semaphore, #tpu.memory_space<semaphore_mem>>
      tpu.enqueue_dma source(%260 : memref<1x128xf32, #tpu.memory_space<any>>) target(%261 : memref<1x128xf32, #tpu.memory_space<vmem>>) target_semaphore(%263 : memref<!tpu.dma_semaphore, #tpu.memory_space<semaphore_mem>>)
      %c30 = arith.constant 30 : index
      %264 = memref.load %arg1[%c30] : memref<32xi32, #tpu.memory_space<smem>>
      %c30_i32 = arith.constant 30 : i32
      %c0_i32_156 = arith.constant 0 : i32
      %265 = tpu.memref_slice %arg2[%264, %c0_i32_156] : memref<256x128xf32, #tpu.memory_space<any>> -> memref<1x128xf32, #tpu.memory_space<any>>
      %c30_i32_157 = arith.constant 30 : i32
      %c0_i32_158 = arith.constant 0 : i32
      %266 = tpu.memref_slice %arg20[%c30_i32_157, %c0_i32_158] : memref<32x128xf32, #tpu.memory_space<vmem>> -> memref<1x128xf32, #tpu.memory_space<vmem>>
      %267 = tpu.memref_slice %arg21[%c30_i32] : memref<32x!tpu.dma_semaphore, #tpu.memory_space<semaphore_mem>> -> memref<1x!tpu.dma_semaphore, #tpu.memory_space<semaphore_mem>>
      %268 = tpu.memref_squeeze %267 : memref<1x!tpu.dma_semaphore, #tpu.memory_space<semaphore_mem>> -> memref<!tpu.dma_semaphore, #tpu.memory_space<semaphore_mem>>
      tpu.enqueue_dma source(%265 : memref<1x128xf32, #tpu.memory_space<any>>) target(%266 : memref<1x128xf32, #tpu.memory_space<vmem>>) target_semaphore(%268 : memref<!tpu.dma_semaphore, #tpu.memory_space<semaphore_mem>>)
      %c31 = arith.constant 31 : index
      %269 = memref.load %arg1[%c31] : memref<32xi32, #tpu.memory_space<smem>>
      %c31_i32 = arith.constant 31 : i32
      %c0_i32_159 = arith.constant 0 : i32
      %270 = tpu.memref_slice %arg2[%269, %c0_i32_159] : memref<256x128xf32, #tpu.memory_space<any>> -> memref<1x128xf32, #tpu.memory_space<any>>
      %c31_i32_160 = arith.constant 31 : i32
      %c0_i32_161 = arith.constant 0 : i32
      %271 = tpu.memref_slice %arg20[%c31_i32_160, %c0_i32_161] : memref<32x128xf32, #tpu.memory_space<vmem>> -> memref<1x128xf32, #tpu.memory_space<vmem>>
      %272 = tpu.memref_slice %arg21[%c31_i32] : memref<32x!tpu.dma_semaphore, #tpu.memory_space<semaphore_mem>> -> memref<1x!tpu.dma_semaphore, #tpu.memory_space<semaphore_mem>>
      %273 = tpu.memref_squeeze %272 : memref<1x!tpu.dma_semaphore, #tpu.memory_space<semaphore_mem>> -> memref<!tpu.dma_semaphore, #tpu.memory_space<semaphore_mem>>
      tpu.enqueue_dma source(%270 : memref<1x128xf32, #tpu.memory_space<any>>) target(%271 : memref<1x128xf32, #tpu.memory_space<vmem>>) target_semaphore(%273 : memref<!tpu.dma_semaphore, #tpu.memory_space<semaphore_mem>>)
      %c0_i32_162 = arith.constant 0 : i32
      %c0_i32_163 = arith.constant 0 : i32
      %c0_i32_164 = arith.constant 0 : i32
      %274 = tpu.memref_slice %arg2[%c0_i32_163, %c0_i32_164] : memref<256x128xf32, #tpu.memory_space<any>> -> memref<1x128xf32, #tpu.memory_space<any>>
      %c0_i32_165 = arith.constant 0 : i32
      %c0_i32_166 = arith.constant 0 : i32
      %275 = tpu.memref_slice %arg20[%c0_i32_165, %c0_i32_166] : memref<32x128xf32, #tpu.memory_space<vmem>> -> memref<1x128xf32, #tpu.memory_space<vmem>>
      %276 = tpu.memref_slice %arg21[%c0_i32_162] : memref<32x!tpu.dma_semaphore, #tpu.memory_space<semaphore_mem>> -> memref<1x!tpu.dma_semaphore, #tpu.memory_space<semaphore_mem>>
      %277 = tpu.memref_squeeze %276 : memref<1x!tpu.dma_semaphore, #tpu.memory_space<semaphore_mem>> -> memref<!tpu.dma_semaphore, #tpu.memory_space<semaphore_mem>>
      tpu.wait_dma2 semaphore(%277 : memref<!tpu.dma_semaphore, #tpu.memory_space<semaphore_mem>>) src(%274 : memref<1x128xf32, #tpu.memory_space<any>>) dst(%275 : memref<1x128xf32, #tpu.memory_space<vmem>>)
      %c1_i32_167 = arith.constant 1 : i32
      %c0_i32_168 = arith.constant 0 : i32
      %c0_i32_169 = arith.constant 0 : i32
      %278 = tpu.memref_slice %arg2[%c0_i32_168, %c0_i32_169] : memref<256x128xf32, #tpu.memory_space<any>> -> memref<1x128xf32, #tpu.memory_space<any>>
      %c1_i32_170 = arith.constant 1 : i32
      %c0_i32_171 = arith.constant 0 : i32
      %279 = tpu.memref_slice %arg20[%c1_i32_170, %c0_i32_171] : memref<32x128xf32, #tpu.memory_space<vmem>> -> memref<1x128xf32, #tpu.memory_space<vmem>>
      %280 = tpu.memref_slice %arg21[%c1_i32_167] : memref<32x!tpu.dma_semaphore, #tpu.memory_space<semaphore_mem>> -> memref<1x!tpu.dma_semaphore, #tpu.memory_space<semaphore_mem>>
      %281 = tpu.memref_squeeze %280 : memref<1x!tpu.dma_semaphore, #tpu.memory_space<semaphore_mem>> -> memref<!tpu.dma_semaphore, #tpu.memory_space<semaphore_mem>>
      tpu.wait_dma2 semaphore(%281 : memref<!tpu.dma_semaphore, #tpu.memory_space<semaphore_mem>>) src(%278 : memref<1x128xf32, #tpu.memory_space<any>>) dst(%279 : memref<1x128xf32, #tpu.memory_space<vmem>>)
      %c2_i32_172 = arith.constant 2 : i32
      %c0_i32_173 = arith.constant 0 : i32
      %c0_i32_174 = arith.constant 0 : i32
      %282 = tpu.memref_slice %arg2[%c0_i32_173, %c0_i32_174] : memref<256x128xf32, #tpu.memory_space<any>> -> memref<1x128xf32, #tpu.memory_space<any>>
      %c2_i32_175 = arith.constant 2 : i32
      %c0_i32_176 = arith.constant 0 : i32
      %283 = tpu.memref_slice %arg20[%c2_i32_175, %c0_i32_176] : memref<32x128xf32, #tpu.memory_space<vmem>> -> memref<1x128xf32, #tpu.memory_space<vmem>>
      %284 = tpu.memref_slice %arg21[%c2_i32_172] : memref<32x!tpu.dma_semaphore, #tpu.memory_space<semaphore_mem>> -> memref<1x!tpu.dma_semaphore, #tpu.memory_space<semaphore_mem>>
      %285 = tpu.memref_squeeze %284 : memref<1x!tpu.dma_semaphore, #tpu.memory_space<semaphore_mem>> -> memref<!tpu.dma_semaphore, #tpu.memory_space<semaphore_mem>>
      tpu.wait_dma2 semaphore(%285 : memref<!tpu.dma_semaphore, #tpu.memory_space<semaphore_mem>>) src(%282 : memref<1x128xf32, #tpu.memory_space<any>>) dst(%283 : memref<1x128xf32, #tpu.memory_space<vmem>>)
      %c3_i32_177 = arith.constant 3 : i32
      %c0_i32_178 = arith.constant 0 : i32
      %c0_i32_179 = arith.constant 0 : i32
      %286 = tpu.memref_slice %arg2[%c0_i32_178, %c0_i32_179] : memref<256x128xf32, #tpu.memory_space<any>> -> memref<1x128xf32, #tpu.memory_space<any>>
      %c3_i32_180 = arith.constant 3 : i32
      %c0_i32_181 = arith.constant 0 : i32
      %287 = tpu.memref_slice %arg20[%c3_i32_180, %c0_i32_181] : memref<32x128xf32, #tpu.memory_space<vmem>> -> memref<1x128xf32, #tpu.memory_space<vmem>>
      %288 = tpu.memref_slice %arg21[%c3_i32_177] : memref<32x!tpu.dma_semaphore, #tpu.memory_space<semaphore_mem>> -> memref<1x!tpu.dma_semaphore, #tpu.memory_space<semaphore_mem>>
      %289 = tpu.memref_squeeze %288 : memref<1x!tpu.dma_semaphore, #tpu.memory_space<semaphore_mem>> -> memref<!tpu.dma_semaphore, #tpu.memory_space<semaphore_mem>>
      tpu.wait_dma2 semaphore(%289 : memref<!tpu.dma_semaphore, #tpu.memory_space<semaphore_mem>>) src(%286 : memref<1x128xf32, #tpu.memory_space<any>>) dst(%287 : memref<1x128xf32, #tpu.memory_space<vmem>>)
      %c4_i32_182 = arith.constant 4 : i32
      %c0_i32_183 = arith.constant 0 : i32
      %c0_i32_184 = arith.constant 0 : i32
      %290 = tpu.memref_slice %arg2[%c0_i32_183, %c0_i32_184] : memref<256x128xf32, #tpu.memory_space<any>> -> memref<1x128xf32, #tpu.memory_space<any>>
      %c4_i32_185 = arith.constant 4 : i32
      %c0_i32_186 = arith.constant 0 : i32
      %291 = tpu.memref_slice %arg20[%c4_i32_185, %c0_i32_186] : memref<32x128xf32, #tpu.memory_space<vmem>> -> memref<1x128xf32, #tpu.memory_space<vmem>>
      %292 = tpu.memref_slice %arg21[%c4_i32_182] : memref<32x!tpu.dma_semaphore, #tpu.memory_space<semaphore_mem>> -> memref<1x!tpu.dma_semaphore, #tpu.memory_space<semaphore_mem>>
      %293 = tpu.memref_squeeze %292 : memref<1x!tpu.dma_semaphore, #tpu.memory_space<semaphore_mem>> -> memref<!tpu.dma_semaphore, #tpu.memory_space<semaphore_mem>>
      tpu.wait_dma2 semaphore(%293 : memref<!tpu.dma_semaphore, #tpu.memory_space<semaphore_mem>>) src(%290 : memref<1x128xf32, #tpu.memory_space<any>>) dst(%291 : memref<1x128xf32, #tpu.memory_space<vmem>>)
      %c5_i32_187 = arith.constant 5 : i32
      %c0_i32_188 = arith.constant 0 : i32
      %c0_i32_189 = arith.constant 0 : i32
      %294 = tpu.memref_slice %arg2[%c0_i32_188, %c0_i32_189] : memref<256x128xf32, #tpu.memory_space<any>> -> memref<1x128xf32, #tpu.memory_space<any>>
      %c5_i32_190 = arith.constant 5 : i32
      %c0_i32_191 = arith.constant 0 : i32
      %295 = tpu.memref_slice %arg20[%c5_i32_190, %c0_i32_191] : memref<32x128xf32, #tpu.memory_space<vmem>> -> memref<1x128xf32, #tpu.memory_space<vmem>>
      %296 = tpu.memref_slice %arg21[%c5_i32_187] : memref<32x!tpu.dma_semaphore, #tpu.memory_space<semaphore_mem>> -> memref<1x!tpu.dma_semaphore, #tpu.memory_space<semaphore_mem>>
      %297 = tpu.memref_squeeze %296 : memref<1x!tpu.dma_semaphore, #tpu.memory_space<semaphore_mem>> -> memref<!tpu.dma_semaphore, #tpu.memory_space<semaphore_mem>>
      tpu.wait_dma2 semaphore(%297 : memref<!tpu.dma_semaphore, #tpu.memory_space<semaphore_mem>>) src(%294 : memref<1x128xf32, #tpu.memory_space<any>>) dst(%295 : memref<1x128xf32, #tpu.memory_space<vmem>>)
      %c6_i32_192 = arith.constant 6 : i32
      %c0_i32_193 = arith.constant 0 : i32
      %c0_i32_194 = arith.constant 0 : i32
      %298 = tpu.memref_slice %arg2[%c0_i32_193, %c0_i32_194] : memref<256x128xf32, #tpu.memory_space<any>> -> memref<1x128xf32, #tpu.memory_space<any>>
      %c6_i32_195 = arith.constant 6 : i32
      %c0_i32_196 = arith.constant 0 : i32
      %299 = tpu.memref_slice %arg20[%c6_i32_195, %c0_i32_196] : memref<32x128xf32, #tpu.memory_space<vmem>> -> memref<1x128xf32, #tpu.memory_space<vmem>>
      %300 = tpu.memref_slice %arg21[%c6_i32_192] : memref<32x!tpu.dma_semaphore, #tpu.memory_space<semaphore_mem>> -> memref<1x!tpu.dma_semaphore, #tpu.memory_space<semaphore_mem>>
      %301 = tpu.memref_squeeze %300 : memref<1x!tpu.dma_semaphore, #tpu.memory_space<semaphore_mem>> -> memref<!tpu.dma_semaphore, #tpu.memory_space<semaphore_mem>>
      tpu.wait_dma2 semaphore(%301 : memref<!tpu.dma_semaphore, #tpu.memory_space<semaphore_mem>>) src(%298 : memref<1x128xf32, #tpu.memory_space<any>>) dst(%299 : memref<1x128xf32, #tpu.memory_space<vmem>>)
      %c7_i32_197 = arith.constant 7 : i32
      %c0_i32_198 = arith.constant 0 : i32
      %c0_i32_199 = arith.constant 0 : i32
      %302 = tpu.memref_slice %arg2[%c0_i32_198, %c0_i32_199] : memref<256x128xf32, #tpu.memory_space<any>> -> memref<1x128xf32, #tpu.memory_space<any>>
      %c7_i32_200 = arith.constant 7 : i32
      %c0_i32_201 = arith.constant 0 : i32
      %303 = tpu.memref_slice %arg20[%c7_i32_200, %c0_i32_201] : memref<32x128xf32, #tpu.memory_space<vmem>> -> memref<1x128xf32, #tpu.memory_space<vmem>>
      %304 = tpu.memref_slice %arg21[%c7_i32_197] : memref<32x!tpu.dma_semaphore, #tpu.memory_space<semaphore_mem>> -> memref<1x!tpu.dma_semaphore, #tpu.memory_space<semaphore_mem>>
      %305 = tpu.memref_squeeze %304 : memref<1x!tpu.dma_semaphore, #tpu.memory_space<semaphore_mem>> -> memref<!tpu.dma_semaphore, #tpu.memory_space<semaphore_mem>>
      tpu.wait_dma2 semaphore(%305 : memref<!tpu.dma_semaphore, #tpu.memory_space<semaphore_mem>>) src(%302 : memref<1x128xf32, #tpu.memory_space<any>>) dst(%303 : memref<1x128xf32, #tpu.memory_space<vmem>>)
      %c8_i32_202 = arith.constant 8 : i32
      %c0_i32_203 = arith.constant 0 : i32
      %c0_i32_204 = arith.constant 0 : i32
      %306 = tpu.memref_slice %arg2[%c0_i32_203, %c0_i32_204] : memref<256x128xf32, #tpu.memory_space<any>> -> memref<1x128xf32, #tpu.memory_space<any>>
      %c8_i32_205 = arith.constant 8 : i32
      %c0_i32_206 = arith.constant 0 : i32
      %307 = tpu.memref_slice %arg20[%c8_i32_205, %c0_i32_206] : memref<32x128xf32, #tpu.memory_space<vmem>> -> memref<1x128xf32, #tpu.memory_space<vmem>>
      %308 = tpu.memref_slice %arg21[%c8_i32_202] : memref<32x!tpu.dma_semaphore, #tpu.memory_space<semaphore_mem>> -> memref<1x!tpu.dma_semaphore, #tpu.memory_space<semaphore_mem>>
      %309 = tpu.memref_squeeze %308 : memref<1x!tpu.dma_semaphore, #tpu.memory_space<semaphore_mem>> -> memref<!tpu.dma_semaphore, #tpu.memory_space<semaphore_mem>>
      tpu.wait_dma2 semaphore(%309 : memref<!tpu.dma_semaphore, #tpu.memory_space<semaphore_mem>>) src(%306 : memref<1x128xf32, #tpu.memory_space<any>>) dst(%307 : memref<1x128xf32, #tpu.memory_space<vmem>>)
      %c9_i32_207 = arith.constant 9 : i32
      %c0_i32_208 = arith.constant 0 : i32
      %c0_i32_209 = arith.constant 0 : i32
      %310 = tpu.memref_slice %arg2[%c0_i32_208, %c0_i32_209] : memref<256x128xf32, #tpu.memory_space<any>> -> memref<1x128xf32, #tpu.memory_space<any>>
      %c9_i32_210 = arith.constant 9 : i32
      %c0_i32_211 = arith.constant 0 : i32
      %311 = tpu.memref_slice %arg20[%c9_i32_210, %c0_i32_211] : memref<32x128xf32, #tpu.memory_space<vmem>> -> memref<1x128xf32, #tpu.memory_space<vmem>>
      %312 = tpu.memref_slice %arg21[%c9_i32_207] : memref<32x!tpu.dma_semaphore, #tpu.memory_space<semaphore_mem>> -> memref<1x!tpu.dma_semaphore, #tpu.memory_space<semaphore_mem>>
      %313 = tpu.memref_squeeze %312 : memref<1x!tpu.dma_semaphore, #tpu.memory_space<semaphore_mem>> -> memref<!tpu.dma_semaphore, #tpu.memory_space<semaphore_mem>>
      tpu.wait_dma2 semaphore(%313 : memref<!tpu.dma_semaphore, #tpu.memory_space<semaphore_mem>>) src(%310 : memref<1x128xf32, #tpu.memory_space<any>>) dst(%311 : memref<1x128xf32, #tpu.memory_space<vmem>>)
      %c10_i32_212 = arith.constant 10 : i32
      %c0_i32_213 = arith.constant 0 : i32
      %c0_i32_214 = arith.constant 0 : i32
      %314 = tpu.memref_slice %arg2[%c0_i32_213, %c0_i32_214] : memref<256x128xf32, #tpu.memory_space<any>> -> memref<1x128xf32, #tpu.memory_space<any>>
      %c10_i32_215 = arith.constant 10 : i32
      %c0_i32_216 = arith.constant 0 : i32
      %315 = tpu.memref_slice %arg20[%c10_i32_215, %c0_i32_216] : memref<32x128xf32, #tpu.memory_space<vmem>> -> memref<1x128xf32, #tpu.memory_space<vmem>>
      %316 = tpu.memref_slice %arg21[%c10_i32_212] : memref<32x!tpu.dma_semaphore, #tpu.memory_space<semaphore_mem>> -> memref<1x!tpu.dma_semaphore, #tpu.memory_space<semaphore_mem>>
      %317 = tpu.memref_squeeze %316 : memref<1x!tpu.dma_semaphore, #tpu.memory_space<semaphore_mem>> -> memref<!tpu.dma_semaphore, #tpu.memory_space<semaphore_mem>>
      tpu.wait_dma2 semaphore(%317 : memref<!tpu.dma_semaphore, #tpu.memory_space<semaphore_mem>>) src(%314 : memref<1x128xf32, #tpu.memory_space<any>>) dst(%315 : memref<1x128xf32, #tpu.memory_space<vmem>>)
      %c11_i32_217 = arith.constant 11 : i32
      %c0_i32_218 = arith.constant 0 : i32
      %c0_i32_219 = arith.constant 0 : i32
      %318 = tpu.memref_slice %arg2[%c0_i32_218, %c0_i32_219] : memref<256x128xf32, #tpu.memory_space<any>> -> memref<1x128xf32, #tpu.memory_space<any>>
      %c11_i32_220 = arith.constant 11 : i32
      %c0_i32_221 = arith.constant 0 : i32
      %319 = tpu.memref_slice %arg20[%c11_i32_220, %c0_i32_221] : memref<32x128xf32, #tpu.memory_space<vmem>> -> memref<1x128xf32, #tpu.memory_space<vmem>>
      %320 = tpu.memref_slice %arg21[%c11_i32_217] : memref<32x!tpu.dma_semaphore, #tpu.memory_space<semaphore_mem>> -> memref<1x!tpu.dma_semaphore, #tpu.memory_space<semaphore_mem>>
      %321 = tpu.memref_squeeze %320 : memref<1x!tpu.dma_semaphore, #tpu.memory_space<semaphore_mem>> -> memref<!tpu.dma_semaphore, #tpu.memory_space<semaphore_mem>>
      tpu.wait_dma2 semaphore(%321 : memref<!tpu.dma_semaphore, #tpu.memory_space<semaphore_mem>>) src(%318 : memref<1x128xf32, #tpu.memory_space<any>>) dst(%319 : memref<1x128xf32, #tpu.memory_space<vmem>>)
      %c12_i32_222 = arith.constant 12 : i32
      %c0_i32_223 = arith.constant 0 : i32
      %c0_i32_224 = arith.constant 0 : i32
      %322 = tpu.memref_slice %arg2[%c0_i32_223, %c0_i32_224] : memref<256x128xf32, #tpu.memory_space<any>> -> memref<1x128xf32, #tpu.memory_space<any>>
      %c12_i32_225 = arith.constant 12 : i32
      %c0_i32_226 = arith.constant 0 : i32
      %323 = tpu.memref_slice %arg20[%c12_i32_225, %c0_i32_226] : memref<32x128xf32, #tpu.memory_space<vmem>> -> memref<1x128xf32, #tpu.memory_space<vmem>>
      %324 = tpu.memref_slice %arg21[%c12_i32_222] : memref<32x!tpu.dma_semaphore, #tpu.memory_space<semaphore_mem>> -> memref<1x!tpu.dma_semaphore, #tpu.memory_space<semaphore_mem>>
      %325 = tpu.memref_squeeze %324 : memref<1x!tpu.dma_semaphore, #tpu.memory_space<semaphore_mem>> -> memref<!tpu.dma_semaphore, #tpu.memory_space<semaphore_mem>>
      tpu.wait_dma2 semaphore(%325 : memref<!tpu.dma_semaphore, #tpu.memory_space<semaphore_mem>>) src(%322 : memref<1x128xf32, #tpu.memory_space<any>>) dst(%323 : memref<1x128xf32, #tpu.memory_space<vmem>>)
      %c13_i32_227 = arith.constant 13 : i32
      %c0_i32_228 = arith.constant 0 : i32
      %c0_i32_229 = arith.constant 0 : i32
      %326 = tpu.memref_slice %arg2[%c0_i32_228, %c0_i32_229] : memref<256x128xf32, #tpu.memory_space<any>> -> memref<1x128xf32, #tpu.memory_space<any>>
      %c13_i32_230 = arith.constant 13 : i32
      %c0_i32_231 = arith.constant 0 : i32
      %327 = tpu.memref_slice %arg20[%c13_i32_230, %c0_i32_231] : memref<32x128xf32, #tpu.memory_space<vmem>> -> memref<1x128xf32, #tpu.memory_space<vmem>>
      %328 = tpu.memref_slice %arg21[%c13_i32_227] : memref<32x!tpu.dma_semaphore, #tpu.memory_space<semaphore_mem>> -> memref<1x!tpu.dma_semaphore, #tpu.memory_space<semaphore_mem>>
      %329 = tpu.memref_squeeze %328 : memref<1x!tpu.dma_semaphore, #tpu.memory_space<semaphore_mem>> -> memref<!tpu.dma_semaphore, #tpu.memory_space<semaphore_mem>>
      tpu.wait_dma2 semaphore(%329 : memref<!tpu.dma_semaphore, #tpu.memory_space<semaphore_mem>>) src(%326 : memref<1x128xf32, #tpu.memory_space<any>>) dst(%327 : memref<1x128xf32, #tpu.memory_space<vmem>>)
      %c14_i32_232 = arith.constant 14 : i32
      %c0_i32_233 = arith.constant 0 : i32
      %c0_i32_234 = arith.constant 0 : i32
      %330 = tpu.memref_slice %arg2[%c0_i32_233, %c0_i32_234] : memref<256x128xf32, #tpu.memory_space<any>> -> memref<1x128xf32, #tpu.memory_space<any>>
      %c14_i32_235 = arith.constant 14 : i32
      %c0_i32_236 = arith.constant 0 : i32
      %331 = tpu.memref_slice %arg20[%c14_i32_235, %c0_i32_236] : memref<32x128xf32, #tpu.memory_space<vmem>> -> memref<1x128xf32, #tpu.memory_space<vmem>>
      %332 = tpu.memref_slice %arg21[%c14_i32_232] : memref<32x!tpu.dma_semaphore, #tpu.memory_space<semaphore_mem>> -> memref<1x!tpu.dma_semaphore, #tpu.memory_space<semaphore_mem>>
      %333 = tpu.memref_squeeze %332 : memref<1x!tpu.dma_semaphore, #tpu.memory_space<semaphore_mem>> -> memref<!tpu.dma_semaphore, #tpu.memory_space<semaphore_mem>>
      tpu.wait_dma2 semaphore(%333 : memref<!tpu.dma_semaphore, #tpu.memory_space<semaphore_mem>>) src(%330 : memref<1x128xf32, #tpu.memory_space<any>>) dst(%331 : memref<1x128xf32, #tpu.memory_space<vmem>>)
      %c15_i32_237 = arith.constant 15 : i32
      %c0_i32_238 = arith.constant 0 : i32
      %c0_i32_239 = arith.constant 0 : i32
      %334 = tpu.memref_slice %arg2[%c0_i32_238, %c0_i32_239] : memref<256x128xf32, #tpu.memory_space<any>> -> memref<1x128xf32, #tpu.memory_space<any>>
      %c15_i32_240 = arith.constant 15 : i32
      %c0_i32_241 = arith.constant 0 : i32
      %335 = tpu.memref_slice %arg20[%c15_i32_240, %c0_i32_241] : memref<32x128xf32, #tpu.memory_space<vmem>> -> memref<1x128xf32, #tpu.memory_space<vmem>>
      %336 = tpu.memref_slice %arg21[%c15_i32_237] : memref<32x!tpu.dma_semaphore, #tpu.memory_space<semaphore_mem>> -> memref<1x!tpu.dma_semaphore, #tpu.memory_space<semaphore_mem>>
      %337 = tpu.memref_squeeze %336 : memref<1x!tpu.dma_semaphore, #tpu.memory_space<semaphore_mem>> -> memref<!tpu.dma_semaphore, #tpu.memory_space<semaphore_mem>>
      tpu.wait_dma2 semaphore(%337 : memref<!tpu.dma_semaphore, #tpu.memory_space<semaphore_mem>>) src(%334 : memref<1x128xf32, #tpu.memory_space<any>>) dst(%335 : memref<1x128xf32, #tpu.memory_space<vmem>>)
      %c16_i32_242 = arith.constant 16 : i32
      %c0_i32_243 = arith.constant 0 : i32
      %c0_i32_244 = arith.constant 0 : i32
      %338 = tpu.memref_slice %arg2[%c0_i32_243, %c0_i32_244] : memref<256x128xf32, #tpu.memory_space<any>> -> memref<1x128xf32, #tpu.memory_space<any>>
      %c16_i32_245 = arith.constant 16 : i32
      %c0_i32_246 = arith.constant 0 : i32
      %339 = tpu.memref_slice %arg20[%c16_i32_245, %c0_i32_246] : memref<32x128xf32, #tpu.memory_space<vmem>> -> memref<1x128xf32, #tpu.memory_space<vmem>>
      %340 = tpu.memref_slice %arg21[%c16_i32_242] : memref<32x!tpu.dma_semaphore, #tpu.memory_space<semaphore_mem>> -> memref<1x!tpu.dma_semaphore, #tpu.memory_space<semaphore_mem>>
      %341 = tpu.memref_squeeze %340 : memref<1x!tpu.dma_semaphore, #tpu.memory_space<semaphore_mem>> -> memref<!tpu.dma_semaphore, #tpu.memory_space<semaphore_mem>>
      tpu.wait_dma2 semaphore(%341 : memref<!tpu.dma_semaphore, #tpu.memory_space<semaphore_mem>>) src(%338 : memref<1x128xf32, #tpu.memory_space<any>>) dst(%339 : memref<1x128xf32, #tpu.memory_space<vmem>>)
      %c17_i32_247 = arith.constant 17 : i32
      %c0_i32_248 = arith.constant 0 : i32
      %c0_i32_249 = arith.constant 0 : i32
      %342 = tpu.memref_slice %arg2[%c0_i32_248, %c0_i32_249] : memref<256x128xf32, #tpu.memory_space<any>> -> memref<1x128xf32, #tpu.memory_space<any>>
      %c17_i32_250 = arith.constant 17 : i32
      %c0_i32_251 = arith.constant 0 : i32
      %343 = tpu.memref_slice %arg20[%c17_i32_250, %c0_i32_251] : memref<32x128xf32, #tpu.memory_space<vmem>> -> memref<1x128xf32, #tpu.memory_space<vmem>>
      %344 = tpu.memref_slice %arg21[%c17_i32_247] : memref<32x!tpu.dma_semaphore, #tpu.memory_space<semaphore_mem>> -> memref<1x!tpu.dma_semaphore, #tpu.memory_space<semaphore_mem>>
      %345 = tpu.memref_squeeze %344 : memref<1x!tpu.dma_semaphore, #tpu.memory_space<semaphore_mem>> -> memref<!tpu.dma_semaphore, #tpu.memory_space<semaphore_mem>>
      tpu.wait_dma2 semaphore(%345 : memref<!tpu.dma_semaphore, #tpu.memory_space<semaphore_mem>>) src(%342 : memref<1x128xf32, #tpu.memory_space<any>>) dst(%343 : memref<1x128xf32, #tpu.memory_space<vmem>>)
      %c18_i32_252 = arith.constant 18 : i32
      %c0_i32_253 = arith.constant 0 : i32
      %c0_i32_254 = arith.constant 0 : i32
      %346 = tpu.memref_slice %arg2[%c0_i32_253, %c0_i32_254] : memref<256x128xf32, #tpu.memory_space<any>> -> memref<1x128xf32, #tpu.memory_space<any>>
      %c18_i32_255 = arith.constant 18 : i32
      %c0_i32_256 = arith.constant 0 : i32
      %347 = tpu.memref_slice %arg20[%c18_i32_255, %c0_i32_256] : memref<32x128xf32, #tpu.memory_space<vmem>> -> memref<1x128xf32, #tpu.memory_space<vmem>>
      %348 = tpu.memref_slice %arg21[%c18_i32_252] : memref<32x!tpu.dma_semaphore, #tpu.memory_space<semaphore_mem>> -> memref<1x!tpu.dma_semaphore, #tpu.memory_space<semaphore_mem>>
      %349 = tpu.memref_squeeze %348 : memref<1x!tpu.dma_semaphore, #tpu.memory_space<semaphore_mem>> -> memref<!tpu.dma_semaphore, #tpu.memory_space<semaphore_mem>>
      tpu.wait_dma2 semaphore(%349 : memref<!tpu.dma_semaphore, #tpu.memory_space<semaphore_mem>>) src(%346 : memref<1x128xf32, #tpu.memory_space<any>>) dst(%347 : memref<1x128xf32, #tpu.memory_space<vmem>>)
      %c19_i32_257 = arith.constant 19 : i32
      %c0_i32_258 = arith.constant 0 : i32
      %c0_i32_259 = arith.constant 0 : i32
      %350 = tpu.memref_slice %arg2[%c0_i32_258, %c0_i32_259] : memref<256x128xf32, #tpu.memory_space<any>> -> memref<1x128xf32, #tpu.memory_space<any>>
      %c19_i32_260 = arith.constant 19 : i32
      %c0_i32_261 = arith.constant 0 : i32
      %351 = tpu.memref_slice %arg20[%c19_i32_260, %c0_i32_261] : memref<32x128xf32, #tpu.memory_space<vmem>> -> memref<1x128xf32, #tpu.memory_space<vmem>>
      %352 = tpu.memref_slice %arg21[%c19_i32_257] : memref<32x!tpu.dma_semaphore, #tpu.memory_space<semaphore_mem>> -> memref<1x!tpu.dma_semaphore, #tpu.memory_space<semaphore_mem>>
      %353 = tpu.memref_squeeze %352 : memref<1x!tpu.dma_semaphore, #tpu.memory_space<semaphore_mem>> -> memref<!tpu.dma_semaphore, #tpu.memory_space<semaphore_mem>>
      tpu.wait_dma2 semaphore(%353 : memref<!tpu.dma_semaphore, #tpu.memory_space<semaphore_mem>>) src(%350 : memref<1x128xf32, #tpu.memory_space<any>>) dst(%351 : memref<1x128xf32, #tpu.memory_space<vmem>>)
      %c20_i32_262 = arith.constant 20 : i32
      %c0_i32_263 = arith.constant 0 : i32
      %c0_i32_264 = arith.constant 0 : i32
      %354 = tpu.memref_slice %arg2[%c0_i32_263, %c0_i32_264] : memref<256x128xf32, #tpu.memory_space<any>> -> memref<1x128xf32, #tpu.memory_space<any>>
      %c20_i32_265 = arith.constant 20 : i32
      %c0_i32_266 = arith.constant 0 : i32
      %355 = tpu.memref_slice %arg20[%c20_i32_265, %c0_i32_266] : memref<32x128xf32, #tpu.memory_space<vmem>> -> memref<1x128xf32, #tpu.memory_space<vmem>>
      %356 = tpu.memref_slice %arg21[%c20_i32_262] : memref<32x!tpu.dma_semaphore, #tpu.memory_space<semaphore_mem>> -> memref<1x!tpu.dma_semaphore, #tpu.memory_space<semaphore_mem>>
      %357 = tpu.memref_squeeze %356 : memref<1x!tpu.dma_semaphore, #tpu.memory_space<semaphore_mem>> -> memref<!tpu.dma_semaphore, #tpu.memory_space<semaphore_mem>>
      tpu.wait_dma2 semaphore(%357 : memref<!tpu.dma_semaphore, #tpu.memory_space<semaphore_mem>>) src(%354 : memref<1x128xf32, #tpu.memory_space<any>>) dst(%355 : memref<1x128xf32, #tpu.memory_space<vmem>>)
      %c21_i32_267 = arith.constant 21 : i32
      %c0_i32_268 = arith.constant 0 : i32
      %c0_i32_269 = arith.constant 0 : i32
      %358 = tpu.memref_slice %arg2[%c0_i32_268, %c0_i32_269] : memref<256x128xf32, #tpu.memory_space<any>> -> memref<1x128xf32, #tpu.memory_space<any>>
      %c21_i32_270 = arith.constant 21 : i32
      %c0_i32_271 = arith.constant 0 : i32
      %359 = tpu.memref_slice %arg20[%c21_i32_270, %c0_i32_271] : memref<32x128xf32, #tpu.memory_space<vmem>> -> memref<1x128xf32, #tpu.memory_space<vmem>>
      %360 = tpu.memref_slice %arg21[%c21_i32_267] : memref<32x!tpu.dma_semaphore, #tpu.memory_space<semaphore_mem>> -> memref<1x!tpu.dma_semaphore, #tpu.memory_space<semaphore_mem>>
      %361 = tpu.memref_squeeze %360 : memref<1x!tpu.dma_semaphore, #tpu.memory_space<semaphore_mem>> -> memref<!tpu.dma_semaphore, #tpu.memory_space<semaphore_mem>>
      tpu.wait_dma2 semaphore(%361 : memref<!tpu.dma_semaphore, #tpu.memory_space<semaphore_mem>>) src(%358 : memref<1x128xf32, #tpu.memory_space<any>>) dst(%359 : memref<1x128xf32, #tpu.memory_space<vmem>>)
      %c22_i32_272 = arith.constant 22 : i32
      %c0_i32_273 = arith.constant 0 : i32
      %c0_i32_274 = arith.constant 0 : i32
      %362 = tpu.memref_slice %arg2[%c0_i32_273, %c0_i32_274] : memref<256x128xf32, #tpu.memory_space<any>> -> memref<1x128xf32, #tpu.memory_space<any>>
      %c22_i32_275 = arith.constant 22 : i32
      %c0_i32_276 = arith.constant 0 : i32
      %363 = tpu.memref_slice %arg20[%c22_i32_275, %c0_i32_276] : memref<32x128xf32, #tpu.memory_space<vmem>> -> memref<1x128xf32, #tpu.memory_space<vmem>>
      %364 = tpu.memref_slice %arg21[%c22_i32_272] : memref<32x!tpu.dma_semaphore, #tpu.memory_space<semaphore_mem>> -> memref<1x!tpu.dma_semaphore, #tpu.memory_space<semaphore_mem>>
      %365 = tpu.memref_squeeze %364 : memref<1x!tpu.dma_semaphore, #tpu.memory_space<semaphore_mem>> -> memref<!tpu.dma_semaphore, #tpu.memory_space<semaphore_mem>>
      tpu.wait_dma2 semaphore(%365 : memref<!tpu.dma_semaphore, #tpu.memory_space<semaphore_mem>>) src(%362 : memref<1x128xf32, #tpu.memory_space<any>>) dst(%363 : memref<1x128xf32, #tpu.memory_space<vmem>>)
      %c23_i32_277 = arith.constant 23 : i32
      %c0_i32_278 = arith.constant 0 : i32
      %c0_i32_279 = arith.constant 0 : i32
      %366 = tpu.memref_slice %arg2[%c0_i32_278, %c0_i32_279] : memref<256x128xf32, #tpu.memory_space<any>> -> memref<1x128xf32, #tpu.memory_space<any>>
      %c23_i32_280 = arith.constant 23 : i32
      %c0_i32_281 = arith.constant 0 : i32
      %367 = tpu.memref_slice %arg20[%c23_i32_280, %c0_i32_281] : memref<32x128xf32, #tpu.memory_space<vmem>> -> memref<1x128xf32, #tpu.memory_space<vmem>>
      %368 = tpu.memref_slice %arg21[%c23_i32_277] : memref<32x!tpu.dma_semaphore, #tpu.memory_space<semaphore_mem>> -> memref<1x!tpu.dma_semaphore, #tpu.memory_space<semaphore_mem>>
      %369 = tpu.memref_squeeze %368 : memref<1x!tpu.dma_semaphore, #tpu.memory_space<semaphore_mem>> -> memref<!tpu.dma_semaphore, #tpu.memory_space<semaphore_mem>>
      tpu.wait_dma2 semaphore(%369 : memref<!tpu.dma_semaphore, #tpu.memory_space<semaphore_mem>>) src(%366 : memref<1x128xf32, #tpu.memory_space<any>>) dst(%367 : memref<1x128xf32, #tpu.memory_space<vmem>>)
      %c24_i32_282 = arith.constant 24 : i32
      %c0_i32_283 = arith.constant 0 : i32
      %c0_i32_284 = arith.constant 0 : i32
      %370 = tpu.memref_slice %arg2[%c0_i32_283, %c0_i32_284] : memref<256x128xf32, #tpu.memory_space<any>> -> memref<1x128xf32, #tpu.memory_space<any>>
      %c24_i32_285 = arith.constant 24 : i32
      %c0_i32_286 = arith.constant 0 : i32
      %371 = tpu.memref_slice %arg20[%c24_i32_285, %c0_i32_286] : memref<32x128xf32, #tpu.memory_space<vmem>> -> memref<1x128xf32, #tpu.memory_space<vmem>>
      %372 = tpu.memref_slice %arg21[%c24_i32_282] : memref<32x!tpu.dma_semaphore, #tpu.memory_space<semaphore_mem>> -> memref<1x!tpu.dma_semaphore, #tpu.memory_space<semaphore_mem>>
      %373 = tpu.memref_squeeze %372 : memref<1x!tpu.dma_semaphore, #tpu.memory_space<semaphore_mem>> -> memref<!tpu.dma_semaphore, #tpu.memory_space<semaphore_mem>>
      tpu.wait_dma2 semaphore(%373 : memref<!tpu.dma_semaphore, #tpu.memory_space<semaphore_mem>>) src(%370 : memref<1x128xf32, #tpu.memory_space<any>>) dst(%371 : memref<1x128xf32, #tpu.memory_space<vmem>>)
      %c25_i32_287 = arith.constant 25 : i32
      %c0_i32_288 = arith.constant 0 : i32
      %c0_i32_289 = arith.constant 0 : i32
      %374 = tpu.memref_slice %arg2[%c0_i32_288, %c0_i32_289] : memref<256x128xf32, #tpu.memory_space<any>> -> memref<1x128xf32, #tpu.memory_space<any>>
      %c25_i32_290 = arith.constant 25 : i32
      %c0_i32_291 = arith.constant 0 : i32
      %375 = tpu.memref_slice %arg20[%c25_i32_290, %c0_i32_291] : memref<32x128xf32, #tpu.memory_space<vmem>> -> memref<1x128xf32, #tpu.memory_space<vmem>>
      %376 = tpu.memref_slice %arg21[%c25_i32_287] : memref<32x!tpu.dma_semaphore, #tpu.memory_space<semaphore_mem>> -> memref<1x!tpu.dma_semaphore, #tpu.memory_space<semaphore_mem>>
      %377 = tpu.memref_squeeze %376 : memref<1x!tpu.dma_semaphore, #tpu.memory_space<semaphore_mem>> -> memref<!tpu.dma_semaphore, #tpu.memory_space<semaphore_mem>>
      tpu.wait_dma2 semaphore(%377 : memref<!tpu.dma_semaphore, #tpu.memory_space<semaphore_mem>>) src(%374 : memref<1x128xf32, #tpu.memory_space<any>>) dst(%375 : memref<1x128xf32, #tpu.memory_space<vmem>>)
      %c26_i32_292 = arith.constant 26 : i32
      %c0_i32_293 = arith.constant 0 : i32
      %c0_i32_294 = arith.constant 0 : i32
      %378 = tpu.memref_slice %arg2[%c0_i32_293, %c0_i32_294] : memref<256x128xf32, #tpu.memory_space<any>> -> memref<1x128xf32, #tpu.memory_space<any>>
      %c26_i32_295 = arith.constant 26 : i32
      %c0_i32_296 = arith.constant 0 : i32
      %379 = tpu.memref_slice %arg20[%c26_i32_295, %c0_i32_296] : memref<32x128xf32, #tpu.memory_space<vmem>> -> memref<1x128xf32, #tpu.memory_space<vmem>>
      %380 = tpu.memref_slice %arg21[%c26_i32_292] : memref<32x!tpu.dma_semaphore, #tpu.memory_space<semaphore_mem>> -> memref<1x!tpu.dma_semaphore, #tpu.memory_space<semaphore_mem>>
      %381 = tpu.memref_squeeze %380 : memref<1x!tpu.dma_semaphore, #tpu.memory_space<semaphore_mem>> -> memref<!tpu.dma_semaphore, #tpu.memory_space<semaphore_mem>>
      tpu.wait_dma2 semaphore(%381 : memref<!tpu.dma_semaphore, #tpu.memory_space<semaphore_mem>>) src(%378 : memref<1x128xf32, #tpu.memory_space<any>>) dst(%379 : memref<1x128xf32, #tpu.memory_space<vmem>>)
      %c27_i32_297 = arith.constant 27 : i32
      %c0_i32_298 = arith.constant 0 : i32
      %c0_i32_299 = arith.constant 0 : i32
      %382 = tpu.memref_slice %arg2[%c0_i32_298, %c0_i32_299] : memref<256x128xf32, #tpu.memory_space<any>> -> memref<1x128xf32, #tpu.memory_space<any>>
      %c27_i32_300 = arith.constant 27 : i32
      %c0_i32_301 = arith.constant 0 : i32
      %383 = tpu.memref_slice %arg20[%c27_i32_300, %c0_i32_301] : memref<32x128xf32, #tpu.memory_space<vmem>> -> memref<1x128xf32, #tpu.memory_space<vmem>>
      %384 = tpu.memref_slice %arg21[%c27_i32_297] : memref<32x!tpu.dma_semaphore, #tpu.memory_space<semaphore_mem>> -> memref<1x!tpu.dma_semaphore, #tpu.memory_space<semaphore_mem>>
      %385 = tpu.memref_squeeze %384 : memref<1x!tpu.dma_semaphore, #tpu.memory_space<semaphore_mem>> -> memref<!tpu.dma_semaphore, #tpu.memory_space<semaphore_mem>>
      tpu.wait_dma2 semaphore(%385 : memref<!tpu.dma_semaphore, #tpu.memory_space<semaphore_mem>>) src(%382 : memref<1x128xf32, #tpu.memory_space<any>>) dst(%383 : memref<1x128xf32, #tpu.memory_space<vmem>>)
      %c28_i32_302 = arith.constant 28 : i32
      %c0_i32_303 = arith.constant 0 : i32
      %c0_i32_304 = arith.constant 0 : i32
      %386 = tpu.memref_slice %arg2[%c0_i32_303, %c0_i32_304] : memref<256x128xf32, #tpu.memory_space<any>> -> memref<1x128xf32, #tpu.memory_space<any>>
      %c28_i32_305 = arith.constant 28 : i32
      %c0_i32_306 = arith.constant 0 : i32
      %387 = tpu.memref_slice %arg20[%c28_i32_305, %c0_i32_306] : memref<32x128xf32, #tpu.memory_space<vmem>> -> memref<1x128xf32, #tpu.memory_space<vmem>>
      %388 = tpu.memref_slice %arg21[%c28_i32_302] : memref<32x!tpu.dma_semaphore, #tpu.memory_space<semaphore_mem>> -> memref<1x!tpu.dma_semaphore, #tpu.memory_space<semaphore_mem>>
      %389 = tpu.memref_squeeze %388 : memref<1x!tpu.dma_semaphore, #tpu.memory_space<semaphore_mem>> -> memref<!tpu.dma_semaphore, #tpu.memory_space<semaphore_mem>>
      tpu.wait_dma2 semaphore(%389 : memref<!tpu.dma_semaphore, #tpu.memory_space<semaphore_mem>>) src(%386 : memref<1x128xf32, #tpu.memory_space<any>>) dst(%387 : memref<1x128xf32, #tpu.memory_space<vmem>>)
      %c29_i32_307 = arith.constant 29 : i32
      %c0_i32_308 = arith.constant 0 : i32
      %c0_i32_309 = arith.constant 0 : i32
      %390 = tpu.memref_slice %arg2[%c0_i32_308, %c0_i32_309] : memref<256x128xf32, #tpu.memory_space<any>> -> memref<1x128xf32, #tpu.memory_space<any>>
      %c29_i32_310 = arith.constant 29 : i32
      %c0_i32_311 = arith.constant 0 : i32
      %391 = tpu.memref_slice %arg20[%c29_i32_310, %c0_i32_311] : memref<32x128xf32, #tpu.memory_space<vmem>> -> memref<1x128xf32, #tpu.memory_space<vmem>>
      %392 = tpu.memref_slice %arg21[%c29_i32_307] : memref<32x!tpu.dma_semaphore, #tpu.memory_space<semaphore_mem>> -> memref<1x!tpu.dma_semaphore, #tpu.memory_space<semaphore_mem>>
      %393 = tpu.memref_squeeze %392 : memref<1x!tpu.dma_semaphore, #tpu.memory_space<semaphore_mem>> -> memref<!tpu.dma_semaphore, #tpu.memory_space<semaphore_mem>>
      tpu.wait_dma2 semaphore(%393 : memref<!tpu.dma_semaphore, #tpu.memory_space<semaphore_mem>>) src(%390 : memref<1x128xf32, #tpu.memory_space<any>>) dst(%391 : memref<1x128xf32, #tpu.memory_space<vmem>>)
      %c30_i32_312 = arith.constant 30 : i32
      %c0_i32_313 = arith.constant 0 : i32
      %c0_i32_314 = arith.constant 0 : i32
      %394 = tpu.memref_slice %arg2[%c0_i32_313, %c0_i32_314] : memref<256x128xf32, #tpu.memory_space<any>> -> memref<1x128xf32, #tpu.memory_space<any>>
      %c30_i32_315 = arith.constant 30 : i32
      %c0_i32_316 = arith.constant 0 : i32
      %395 = tpu.memref_slice %arg20[%c30_i32_315, %c0_i32_316] : memref<32x128xf32, #tpu.memory_space<vmem>> -> memref<1x128xf32, #tpu.memory_space<vmem>>
      %396 = tpu.memref_slice %arg21[%c30_i32_312] : memref<32x!tpu.dma_semaphore, #tpu.memory_space<semaphore_mem>> -> memref<1x!tpu.dma_semaphore, #tpu.memory_space<semaphore_mem>>
      %397 = tpu.memref_squeeze %396 : memref<1x!tpu.dma_semaphore, #tpu.memory_space<semaphore_mem>> -> memref<!tpu.dma_semaphore, #tpu.memory_space<semaphore_mem>>
      tpu.wait_dma2 semaphore(%397 : memref<!tpu.dma_semaphore, #tpu.memory_space<semaphore_mem>>) src(%394 : memref<1x128xf32, #tpu.memory_space<any>>) dst(%395 : memref<1x128xf32, #tpu.memory_space<vmem>>)
      %c31_i32_317 = arith.constant 31 : i32
      %c0_i32_318 = arith.constant 0 : i32
      %c0_i32_319 = arith.constant 0 : i32
      %398 = tpu.memref_slice %arg2[%c0_i32_318, %c0_i32_319] : memref<256x128xf32, #tpu.memory_space<any>> -> memref<1x128xf32, #tpu.memory_space<any>>
      %c31_i32_320 = arith.constant 31 : i32
      %c0_i32_321 = arith.constant 0 : i32
      %399 = tpu.memref_slice %arg20[%c31_i32_320, %c0_i32_321] : memref<32x128xf32, #tpu.memory_space<vmem>> -> memref<1x128xf32, #tpu.memory_space<vmem>>
      %400 = tpu.memref_slice %arg21[%c31_i32_317] : memref<32x!tpu.dma_semaphore, #tpu.memory_space<semaphore_mem>> -> memref<1x!tpu.dma_semaphore, #tpu.memory_space<semaphore_mem>>
      %401 = tpu.memref_squeeze %400 : memref<1x!tpu.dma_semaphore, #tpu.memory_space<semaphore_mem>> -> memref<!tpu.dma_semaphore, #tpu.memory_space<semaphore_mem>>
      tpu.wait_dma2 semaphore(%401 : memref<!tpu.dma_semaphore, #tpu.memory_space<semaphore_mem>>) src(%398 : memref<1x128xf32, #tpu.memory_space<any>>) dst(%399 : memref<1x128xf32, #tpu.memory_space<vmem>>)
    } else {
    }
    %c0 = arith.constant 0 : index
    %c0_1 = arith.constant 0 : index
    %3 = vector.load %arg20[%c0, %c0_1] : memref<32x128xf32, #tpu.memory_space<vmem>>, vector<32x128xf32>
    %c0_2 = arith.constant 0 : index
    %c0_3 = arith.constant 0 : index
    %c0_4 = arith.constant 0 : index
    %4 = vector.load %arg3[%c0_2, %c0_3, %c0_4] : memref<1x1x128xf32, #tpu.memory_space<vmem>>, vector<1x1x128xf32>
    %5 = vector.shape_cast %4 : vector<1x1x128xf32> to vector<1x128xf32>
    %6 = arith.mulf %3, %3 : vector<32x128xf32>
    %cst = arith.constant dense<0.000000e+00> : vector<32xf32>
    %7 = vector.multi_reduction <add>, %6, %cst [1] : vector<32x128xf32> to vector<32xf32>
    %8 = vector.shape_cast %7 : vector<32xf32> to vector<32x1xf32>
    %cst_5 = arith.constant 1.280000e+02 : f32
    %9 = vector.broadcast %cst_5 : f32 to vector<32x1xf32>
    %10 = arith.divf %8, %9 : vector<32x1xf32>
    %cst_6 = arith.constant 9.99999974E-6 : f32
    %11 = vector.broadcast %cst_6 : f32 to vector<32x1xf32>
    %12 = arith.addf %10, %11 : vector<32x1xf32>
    %13 = math.rsqrt %12 : vector<32x1xf32>
    %14 = vector.broadcast %13 : vector<32x1xf32> to vector<32x128xf32>
    %15 = arith.mulf %3, %14 : vector<32x128xf32>
    %16 = vector.broadcast %5 : vector<1x128xf32> to vector<32x128xf32>
    %17 = arith.mulf %15, %16 : vector<32x128xf32>
    %18 = arith.truncf %17 : vector<32x128xf32> to vector<32x128xbf16>
    %c0_7 = arith.constant 0 : index
    %c0_8 = arith.constant 0 : index
    %c0_9 = arith.constant 0 : index
    %19 = vector.load %arg4[%c0_7, %c0_8, %c0_9] : memref<1x128x128xbf16, #tpu.memory_space<vmem>>, vector<1x128x128xbf16>
    %20 = vector.shape_cast %19 : vector<1x128x128xbf16> to vector<128x128xbf16>
    %cst_10 = arith.constant dense<0.000000e+00> : vector<32x128xf32>
    %21 = tpu.matmul %18, %20, %cst_10 {dimension_numbers = #tpu.dot_dimension_numbers<[1], [0], [0], [1], [0, 0, 1, 1], [], []>} : vector<32x128xbf16>, vector<128x128xbf16>, vector<32x128xf32> -> vector<32x128xf32>
    %c0_11 = arith.constant 0 : index
    %c0_12 = arith.constant 0 : index
    %c0_13 = arith.constant 0 : index
    %22 = vector.load %arg5[%c0_11, %c0_12, %c0_13] : memref<1x128x128xbf16, #tpu.memory_space<vmem>>, vector<1x128x128xbf16>
    %23 = vector.shape_cast %22 : vector<1x128x128xbf16> to vector<128x128xbf16>
    %cst_14 = arith.constant dense<0.000000e+00> : vector<32x128xf32>
    %24 = tpu.matmul %18, %23, %cst_14 {dimension_numbers = #tpu.dot_dimension_numbers<[1], [0], [0], [1], [0, 0, 1, 1], [], []>} : vector<32x128xbf16>, vector<128x128xbf16>, vector<32x128xf32> -> vector<32x128xf32>
    %c0_15 = arith.constant 0 : index
    %c0_16 = arith.constant 0 : index
    %c0_17 = arith.constant 0 : index
    %25 = vector.load %arg6[%c0_15, %c0_16, %c0_17] : memref<1x128x128xbf16, #tpu.memory_space<vmem>>, vector<1x128x128xbf16>
    %26 = vector.shape_cast %25 : vector<1x128x128xbf16> to vector<128x128xbf16>
    %cst_18 = arith.constant dense<0.000000e+00> : vector<32x128xf32>
    %27 = tpu.matmul %18, %26, %cst_18 {dimension_numbers = #tpu.dot_dimension_numbers<[1], [0], [0], [1], [0, 0, 1, 1], [], []>} : vector<32x128xbf16>, vector<128x128xbf16>, vector<32x128xf32> -> vector<32x128xf32>
    %c0_19 = arith.constant 0 : index
    %c0_20 = arith.constant 0 : index
    %28 = vector.load %arg12[%c0_19, %c0_20] : memref<32x128xbf16, #tpu.memory_space<vmem>>, vector<32x128xbf16>
    %29 = arith.extf %28 : vector<32x128xbf16> to vector<32x128xf32>
    %c0_21 = arith.constant 0 : index
    %c0_22 = arith.constant 0 : index
    %30 = vector.load %arg13[%c0_21, %c0_22] : memref<32x128xbf16, #tpu.memory_space<vmem>>, vector<32x128xbf16>
    %31 = arith.extf %30 : vector<32x128xbf16> to vector<32x128xf32>
    %c0_23 = arith.constant 0 : index
    %c0_24 = arith.constant 0 : index
    %32 = vector.load %arg14[%c0_23, %c0_24] : memref<32x128xbf16, #tpu.memory_space<vmem>>, vector<32x128xbf16>
    %33 = arith.extf %32 : vector<32x128xbf16> to vector<32x128xf32>
    %c112_i32 = arith.constant 112 : i32
    %34 = tpu.dynamic_rotate %21 by %c112_i32 dim 1 : vector<32x128xf32>, i32 -> vector<32x128xf32>
    %c16_i32 = arith.constant 16 : i32
    %35 = tpu.dynamic_rotate %21 by %c16_i32 dim 1 : vector<32x128xf32>, i32 -> vector<32x128xf32>
    %36 = arith.mulf %21, %29 : vector<32x128xf32>
    %37 = arith.mulf %34, %31 : vector<32x128xf32>
    %38 = arith.addf %36, %37 : vector<32x128xf32>
    %39 = arith.mulf %35, %33 : vector<32x128xf32>
    %40 = arith.addf %38, %39 : vector<32x128xf32>
    %c112_i32_25 = arith.constant 112 : i32
    %41 = tpu.dynamic_rotate %24 by %c112_i32_25 dim 1 : vector<32x128xf32>, i32 -> vector<32x128xf32>
    %c16_i32_26 = arith.constant 16 : i32
    %42 = tpu.dynamic_rotate %24 by %c16_i32_26 dim 1 : vector<32x128xf32>, i32 -> vector<32x128xf32>
    %43 = arith.mulf %24, %29 : vector<32x128xf32>
    %44 = arith.mulf %41, %31 : vector<32x128xf32>
    %45 = arith.addf %43, %44 : vector<32x128xf32>
    %46 = arith.mulf %42, %33 : vector<32x128xf32>
    %47 = arith.addf %45, %46 : vector<32x128xf32>
    %c0_27 = arith.constant 0 : index
    %c0_28 = arith.constant 0 : index
    %48 = vector.load %arg16[%c0_27, %c0_28] : memref<128x128xf32, #tpu.memory_space<vmem>>, vector<128x128xf32>
    %49 = arith.truncf %48 : vector<128x128xf32> to vector<128x128xbf16>
    %50 = tpu.concatenate %47, %47, %47, %47 in 0 : vector<32x128xf32>, vector<32x128xf32>, vector<32x128xf32>, vector<32x128xf32> -> vector<128x128xf32>
    %51 = arith.mulf %50, %48 : vector<128x128xf32>
    %52 = arith.truncf %51 : vector<128x128xf32> to vector<128x128xbf16>
    %53 = tpu.concatenate %27, %27, %27, %27 in 0 : vector<32x128xf32>, vector<32x128xf32>, vector<32x128xf32>, vector<32x128xf32> -> vector<128x128xf32>
    %54 = arith.mulf %53, %48 : vector<128x128xf32>
    %55 = arith.truncf %54 : vector<128x128xf32> to vector<128x128xbf16>
    %56 = arith.truncf %40 : vector<32x128xf32> to vector<32x128xbf16>
    %cst_29 = arith.constant dense<0.000000e+00> : vector<32x128xf32>
    %57 = tpu.matmul %56, %52, %cst_29 {dimension_numbers = #tpu.dot_dimension_numbers<[1], [1], [0], [0], [0, 0, 1, 0], [], []>} : vector<32x128xbf16>, vector<128x128xbf16>, vector<32x128xf32> -> vector<32x128xf32>
    %cst_30 = arith.constant 0.176776692 : f32
    %58 = vector.broadcast %cst_30 : f32 to vector<32x128xf32>
    %59 = arith.mulf %57, %58 : vector<32x128xf32>
    %c0_31 = arith.constant 0 : index
    %c0_32 = arith.constant 0 : index
    %60 = vector.load %arg15[%c0_31, %c0_32] : memref<32x128xf32, #tpu.memory_space<vmem>>, vector<32x128xf32>
    %61 = arith.addf %59, %60 : vector<32x128xf32>
    %cst_33 = arith.constant dense<0xFF800000> : vector<32xf32>
    %62 = vector.multi_reduction <maximumf>, %61, %cst_33 [1] : vector<32x128xf32> to vector<32xf32>
    %63 = vector.shape_cast %62 : vector<32xf32> to vector<32x1xf32>
    %64 = vector.broadcast %63 : vector<32x1xf32> to vector<32x128xf32>
    %65 = arith.subf %61, %64 : vector<32x128xf32>
    %66 = math.exp %65 : vector<32x128xf32>
    %67 = arith.truncf %66 : vector<32x128xf32> to vector<32x128xbf16>
    %cst_34 = arith.constant dense<0.000000e+00> : vector<32x128xf32>
    %68 = tpu.matmul %67, %55, %cst_34 {dimension_numbers = #tpu.dot_dimension_numbers<[1], [0], [0], [1], [0, 0, 1, 1], [], []>} : vector<32x128xbf16>, vector<128x128xbf16>, vector<32x128xf32> -> vector<32x128xf32>
    %cst_35 = arith.constant dense<0.000000e+00> : vector<32x128xf32>
    %69 = tpu.matmul %67, %49, %cst_35 {dimension_numbers = #tpu.dot_dimension_numbers<[1], [0], [0], [1], [0, 0, 1, 1], [], []>} : vector<32x128xbf16>, vector<128x128xbf16>, vector<32x128xf32> -> vector<32x128xf32>
    %70 = tpu.reciprocal %69 {approx = true} : vector<32x128xf32> -> vector<32x128xf32>
    %71 = arith.mulf %68, %70 : vector<32x128xf32>
    %72 = arith.truncf %71 : vector<32x128xf32> to vector<32x128xbf16>
    %c0_36 = arith.constant 0 : index
    %c0_37 = arith.constant 0 : index
    %c0_38 = arith.constant 0 : index
    %73 = vector.load %arg7[%c0_36, %c0_37, %c0_38] : memref<1x128x128xbf16, #tpu.memory_space<vmem>>, vector<1x128x128xbf16>
    %74 = vector.shape_cast %73 : vector<1x128x128xbf16> to vector<128x128xbf16>
    %cst_39 = arith.constant dense<0.000000e+00> : vector<32x128xf32>
    %75 = tpu.matmul %72, %74, %cst_39 {dimension_numbers = #tpu.dot_dimension_numbers<[1], [0], [0], [1], [0, 0, 1, 1], [], []>} : vector<32x128xbf16>, vector<128x128xbf16>, vector<32x128xf32> -> vector<32x128xf32>
    %76 = arith.addf %3, %75 : vector<32x128xf32>
    %c0_40 = arith.constant 0 : index
    %c0_41 = arith.constant 0 : index
    %c0_42 = arith.constant 0 : index
    %77 = vector.load %arg8[%c0_40, %c0_41, %c0_42] : memref<1x1x128xf32, #tpu.memory_space<vmem>>, vector<1x1x128xf32>
    %78 = vector.shape_cast %77 : vector<1x1x128xf32> to vector<1x128xf32>
    %79 = arith.mulf %76, %76 : vector<32x128xf32>
    %cst_43 = arith.constant dense<0.000000e+00> : vector<32xf32>
    %80 = vector.multi_reduction <add>, %79, %cst_43 [1] : vector<32x128xf32> to vector<32xf32>
    %81 = vector.shape_cast %80 : vector<32xf32> to vector<32x1xf32>
    %cst_44 = arith.constant 1.280000e+02 : f32
    %82 = vector.broadcast %cst_44 : f32 to vector<32x1xf32>
    %83 = arith.divf %81, %82 : vector<32x1xf32>
    %cst_45 = arith.constant 9.99999974E-6 : f32
    %84 = vector.broadcast %cst_45 : f32 to vector<32x1xf32>
    %85 = arith.addf %83, %84 : vector<32x1xf32>
    %86 = math.rsqrt %85 : vector<32x1xf32>
    %87 = vector.broadcast %86 : vector<32x1xf32> to vector<32x128xf32>
    %88 = arith.mulf %76, %87 : vector<32x128xf32>
    %89 = vector.broadcast %78 : vector<1x128xf32> to vector<32x128xf32>
    %90 = arith.mulf %88, %89 : vector<32x128xf32>
    %91 = arith.truncf %90 : vector<32x128xf32> to vector<32x128xbf16>
    %c0_46 = arith.constant 0 : index
    %c0_47 = arith.constant 0 : index
    %c0_48 = arith.constant 0 : index
    %92 = vector.load %arg9[%c0_46, %c0_47, %c0_48] : memref<1x128x256xbf16, #tpu.memory_space<vmem>>, vector<1x128x256xbf16>
    %93 = vector.shape_cast %92 : vector<1x128x256xbf16> to vector<128x256xbf16>
    %cst_49 = arith.constant dense<0.000000e+00> : vector<32x256xf32>
    %94 = tpu.matmul %91, %93, %cst_49 {dimension_numbers = #tpu.dot_dimension_numbers<[1], [0], [0], [1], [0, 0, 1, 1], [], []>} : vector<32x128xbf16>, vector<128x256xbf16>, vector<32x256xf32> -> vector<32x256xf32>
    %c0_50 = arith.constant 0 : index
    %c0_51 = arith.constant 0 : index
    %c0_52 = arith.constant 0 : index
    %95 = vector.load %arg11[%c0_50, %c0_51, %c0_52] : memref<1x128x256xbf16, #tpu.memory_space<vmem>>, vector<1x128x256xbf16>
    %96 = vector.shape_cast %95 : vector<1x128x256xbf16> to vector<128x256xbf16>
    %cst_53 = arith.constant dense<0.000000e+00> : vector<32x256xf32>
    %97 = tpu.matmul %91, %96, %cst_53 {dimension_numbers = #tpu.dot_dimension_numbers<[1], [0], [0], [1], [0, 0, 1, 1], [], []>} : vector<32x128xbf16>, vector<128x256xbf16>, vector<32x256xf32> -> vector<32x256xf32>
    %98 = arith.negf %94 : vector<32x256xf32>
    %99 = math.exp %98 : vector<32x256xf32>
    %cst_54 = arith.constant 1.000000e+00 : f32
    %100 = vector.broadcast %cst_54 : f32 to vector<32x256xf32>
    %101 = arith.addf %100, %99 : vector<32x256xf32>
    %102 = arith.divf %100, %101 : vector<32x256xf32>
    %103 = arith.mulf %94, %102 : vector<32x256xf32>
    %104 = arith.mulf %103, %97 : vector<32x256xf32>
    %105 = arith.truncf %104 : vector<32x256xf32> to vector<32x256xbf16>
    %c0_55 = arith.constant 0 : index
    %c0_56 = arith.constant 0 : index
    %c0_57 = arith.constant 0 : index
    %106 = vector.load %arg10[%c0_55, %c0_56, %c0_57] : memref<1x256x128xbf16, #tpu.memory_space<vmem>>, vector<1x256x128xbf16>
    %107 = vector.shape_cast %106 : vector<1x256x128xbf16> to vector<256x128xbf16>
    %cst_58 = arith.constant dense<0.000000e+00> : vector<32x128xf32>
    %108 = tpu.matmul %105, %107, %cst_58 {dimension_numbers = #tpu.dot_dimension_numbers<[1], [0], [0], [1], [0, 0, 1, 1], [], []>} : vector<32x256xbf16>, vector<256x128xbf16>, vector<32x128xf32> -> vector<32x128xf32>
    %109 = arith.addf %76, %108 : vector<32x128xf32>
    %c0_59 = arith.constant 0 : index
    %c0_60 = arith.constant 0 : index
    %110 = vector.load %arg20[%c0_59, %c0_60] : memref<32x128xf32, #tpu.memory_space<vmem>>, vector<32x128xf32>
    tpu.vector_store %arg20[%c0_59, %c0_60], %109 {strides = array<i32>} : memref<32x128xf32, #tpu.memory_space<vmem>>, vector<32x128xf32>,
    %c1_i32 = arith.constant 1 : i32
    %111 = arith.cmpi eq, %arg0, %c1_i32 : i32
    %112 = arith.extui %111 : i1 to i32
    %c0_i32_61 = arith.constant 0 : i32
    %113 = arith.cmpi ne, %112, %c0_i32_61 : i32
    scf.if %113 {
      %c0_62 = arith.constant 0 : index
      %c0_63 = arith.constant 0 : index
      %114 = vector.load %arg17[%c0_62, %c0_63] : memref<1x128xf32, #tpu.memory_space<vmem>>, vector<1x128xf32>
      %115 = arith.mulf %109, %109 : vector<32x128xf32>
      %cst_64 = arith.constant dense<0.000000e+00> : vector<32xf32>
      %116 = vector.multi_reduction <add>, %115, %cst_64 [1] : vector<32x128xf32> to vector<32xf32>
      %117 = vector.shape_cast %116 : vector<32xf32> to vector<32x1xf32>
      %cst_65 = arith.constant 1.280000e+02 : f32
      %118 = vector.broadcast %cst_65 : f32 to vector<32x1xf32>
      %119 = arith.divf %117, %118 : vector<32x1xf32>
      %cst_66 = arith.constant 9.99999974E-6 : f32
      %120 = vector.broadcast %cst_66 : f32 to vector<32x1xf32>
      %121 = arith.addf %119, %120 : vector<32x1xf32>
      %122 = math.rsqrt %121 : vector<32x1xf32>
      %123 = vector.broadcast %122 : vector<32x1xf32> to vector<32x128xf32>
      %124 = arith.mulf %109, %123 : vector<32x128xf32>
      %125 = vector.broadcast %114 : vector<1x128xf32> to vector<32x128xf32>
      %126 = arith.mulf %124, %125 : vector<32x128xf32>
      %127 = arith.truncf %126 : vector<32x128xf32> to vector<32x128xbf16>
      %c0_67 = arith.constant 0 : index
      %c0_68 = arith.constant 0 : index
      %128 = vector.load %arg18[%c0_67, %c0_68] : memref<128x256xbf16, #tpu.memory_space<vmem>>, vector<128x256xbf16>
      %cst_69 = arith.constant dense<0.000000e+00> : vector<32x256xf32>
      %129 = tpu.matmul %127, %128, %cst_69 {dimension_numbers = #tpu.dot_dimension_numbers<[1], [0], [0], [1], [0, 0, 1, 1], [], []>} : vector<32x128xbf16>, vector<128x256xbf16>, vector<32x256xf32> -> vector<32x256xf32>
      %c0_70 = arith.constant 0 : index
      %c0_71 = arith.constant 0 : index
      %130 = vector.load %arg19[%c0_70, %c0_71] : memref<32x256xf32, #tpu.memory_space<vmem>>, vector<32x256xf32>
      tpu.vector_store %arg19[%c0_70, %c0_71], %129 {strides = array<i32>} : memref<32x256xf32, #tpu.memory_space<vmem>>, vector<32x256xf32>,
    } else {
    }
    return
  }
  func.func @transform_1(%arg0: i32, %arg1: memref<32xi32, #tpu.memory_space<smem>>) -> (i32, i32, i32) {
    %c0_i32 = arith.constant 0 : i32
    %c0_i32_0 = arith.constant 0 : i32
    %c0_i32_1 = arith.constant 0 : i32
    return %arg0, %c0_i32, %c0_i32_0 : i32, i32, i32
  }
  func.func @transform_2(%arg0: i32, %arg1: memref<32xi32, #tpu.memory_space<smem>>) -> (i32, i32, i32) {
    %c0_i32 = arith.constant 0 : i32
    %c0_i32_0 = arith.constant 0 : i32
    %c0_i32_1 = arith.constant 0 : i32
    return %arg0, %c0_i32, %c0_i32_0 : i32, i32, i32
  }
  func.func @transform_3(%arg0: i32, %arg1: memref<32xi32, #tpu.memory_space<smem>>) -> (i32, i32, i32) {
    %c0_i32 = arith.constant 0 : i32
    %c0_i32_0 = arith.constant 0 : i32
    %c0_i32_1 = arith.constant 0 : i32
    return %arg0, %c0_i32, %c0_i32_0 : i32, i32, i32
  }
  func.func @transform_4(%arg0: i32, %arg1: memref<32xi32, #tpu.memory_space<smem>>) -> (i32, i32, i32) {
    %c0_i32 = arith.constant 0 : i32
    %c0_i32_0 = arith.constant 0 : i32
    %c0_i32_1 = arith.constant 0 : i32
    return %arg0, %c0_i32, %c0_i32_0 : i32, i32, i32
  }
  func.func @transform_5(%arg0: i32, %arg1: memref<32xi32, #tpu.memory_space<smem>>) -> (i32, i32, i32) {
    %c0_i32 = arith.constant 0 : i32
    %c0_i32_0 = arith.constant 0 : i32
    %c0_i32_1 = arith.constant 0 : i32
    return %arg0, %c0_i32, %c0_i32_0 : i32, i32, i32
  }
  func.func @transform_6(%arg0: i32, %arg1: memref<32xi32, #tpu.memory_space<smem>>) -> (i32, i32, i32) {
    %c0_i32 = arith.constant 0 : i32
    %c0_i32_0 = arith.constant 0 : i32
    %c0_i32_1 = arith.constant 0 : i32
    return %arg0, %c0_i32, %c0_i32_0 : i32, i32, i32
  }
  func.func @transform_7(%arg0: i32, %arg1: memref<32xi32, #tpu.memory_space<smem>>) -> (i32, i32, i32) {
    %c0_i32 = arith.constant 0 : i32
    %c0_i32_0 = arith.constant 0 : i32
    %c0_i32_1 = arith.constant 0 : i32
    return %arg0, %c0_i32, %c0_i32_0 : i32, i32, i32
  }
  func.func @transform_8(%arg0: i32, %arg1: memref<32xi32, #tpu.memory_space<smem>>) -> (i32, i32, i32) {
    %c0_i32 = arith.constant 0 : i32
    %c0_i32_0 = arith.constant 0 : i32
    %c0_i32_1 = arith.constant 0 : i32
    return %arg0, %c0_i32, %c0_i32_0 : i32, i32, i32
  }
  func.func @transform_9(%arg0: i32, %arg1: memref<32xi32, #tpu.memory_space<smem>>) -> (i32, i32, i32) {
    %c0_i32 = arith.constant 0 : i32
    %c0_i32_0 = arith.constant 0 : i32
    %c0_i32_1 = arith.constant 0 : i32
    return %arg0, %c0_i32, %c0_i32_0 : i32, i32, i32
  }
  func.func @transform_10(%arg0: i32, %arg1: memref<32xi32, #tpu.memory_space<smem>>) -> (i32, i32) {
    %c0_i32 = arith.constant 0 : i32
    %c0_i32_0 = arith.constant 0 : i32
    %c0_i32_1 = arith.constant 0 : i32
    return %c0_i32, %c0_i32_0 : i32, i32
  }
  func.func @transform_11(%arg0: i32, %arg1: memref<32xi32, #tpu.memory_space<smem>>) -> (i32, i32) {
    %c0_i32 = arith.constant 0 : i32
    %c0_i32_0 = arith.constant 0 : i32
    %c0_i32_1 = arith.constant 0 : i32
    return %c0_i32, %c0_i32_0 : i32, i32
  }
  func.func @transform_12(%arg0: i32, %arg1: memref<32xi32, #tpu.memory_space<smem>>) -> (i32, i32) {
    %c0_i32 = arith.constant 0 : i32
    %c0_i32_0 = arith.constant 0 : i32
    %c0_i32_1 = arith.constant 0 : i32
    return %c0_i32, %c0_i32_0 : i32, i32
  }
  func.func @transform_13(%arg0: i32, %arg1: memref<32xi32, #tpu.memory_space<smem>>) -> (i32, i32) {
    %c0_i32 = arith.constant 0 : i32
    %c0_i32_0 = arith.constant 0 : i32
    %c0_i32_1 = arith.constant 0 : i32
    return %c0_i32, %c0_i32_0 : i32, i32
  }
  func.func @transform_14(%arg0: i32, %arg1: memref<32xi32, #tpu.memory_space<smem>>) -> (i32, i32) {
    %c0_i32 = arith.constant 0 : i32
    %c0_i32_0 = arith.constant 0 : i32
    %c0_i32_1 = arith.constant 0 : i32
    return %c0_i32, %c0_i32_0 : i32, i32
  }
  func.func @transform_15(%arg0: i32, %arg1: memref<32xi32, #tpu.memory_space<smem>>) -> (i32, i32) {
    %c0_i32 = arith.constant 0 : i32
    %c0_i32_0 = arith.constant 0 : i32
    %c0_i32_1 = arith.constant 0 : i32
    return %c0_i32, %c0_i32_0 : i32, i32
  }
  func.func @transform_16(%arg0: i32, %arg1: memref<32xi32, #tpu.memory_space<smem>>) -> (i32, i32) {
    %c0_i32 = arith.constant 0 : i32
    %c0_i32_0 = arith.constant 0 : i32
    %c0_i32_1 = arith.constant 0 : i32
    return %c0_i32, %c0_i32_0 : i32, i32
  }
  func.func @transform_17(%arg0: i32, %arg1: memref<32xi32, #tpu.memory_space<smem>>) -> (i32, i32) {
    %c0_i32 = arith.constant 0 : i32
    %c0_i32_0 = arith.constant 0 : i32
    %c0_i32_1 = arith.constant 0 : i32
    return %c0_i32, %c0_i32_0 : i32, i32
  }
}

</mosaic_0001>

<llo_original>
// kernel: transformer_forward.1
$region0: #{transformer_forward.1}
  #allocation0 [shape = 'u32[]', space=smem, size = 0x4, offset = 0x4, fixed_abs, tag = 'smem constant byte address 0x4 - core index']
  #allocation1 [shape = 'u32[144,128]{1,0:T(1,128)}', space=vmem, size = 0x12000, scoped, tag = 'internal scratch']
  #allocation2 [shape = 'f32[32,128]{1,0:T(8,128)}', space=vmem, size = 0x4000, scoped, tag = 'scratch operand']
  #allocation3 [shape = 's32[32]{0}', space=sflag, size = 0x80, scoped, tag = 'scratch operand']
  #allocation4 [shape = 's32[1]{0}', space=sflag, size = 0x4, scoped, tag = 'scoped memory for transformer_forward.1']
  #allocation5 [shape = 'u8[512]{0}', space=smem, size = 0x200, scoped, tag = 'prefetched SMEM operand 0']
  #allocation28 [shape = 's32[]', space=sflag, size = 0x4, offset = 0, fixed_abs, tag = 'sflag constant byte address 0x0 - dummy sync flag']
  #allocation29 [shape = 's32[]', space=sflag, size = 0x4, offset = 0, fixed_abs, tag = 'sflag constant byte address 0x0 - dummy sync flag']
  #allocation30 [shape = 'u32[]', space=smem, size = 0x4, offset = 0x44, fixed_abs, tag = 'smem constant byte address 0x44 - assertion arg 0']
  #allocation31 [shape = 'u32[]', space=smem, size = 0x4, offset = 0x48, fixed_abs, tag = 'smem constant byte address 0x48 - assertion arg 1']
  #allocation32 [shape = 's32[]', space=sflag, size = 0x4, offset = 0, fixed_abs, tag = 'sflag constant byte address 0x0 - dummy sync flag']
  #allocation33 [shape = 's32[]', space=sflag, size = 0x4, offset = 0, fixed_abs, tag = 'sflag constant byte address 0x0 - dummy sync flag']
  #allocation34 [shape = 's32[]', space=sflag, size = 0x4, offset = 0, fixed_abs, tag = 'sflag constant byte address 0x0 - dummy sync flag']
  #allocation35 [shape = 's32[]', space=sflag, size = 0x4, offset = 0, fixed_abs, tag = 'sflag constant byte address 0x0 - dummy sync flag']
  #allocation36 [shape = 's32[]', space=sflag, size = 0x4, offset = 0, fixed_abs, tag = 'sflag constant byte address 0x0 - dummy sync flag']
  #allocation37 [shape = 's32[]', space=sflag, size = 0x4, offset = 0, fixed_abs, tag = 'sflag constant byte address 0x0 - dummy sync flag']
  #allocation38 [shape = 's32[]', space=sflag, size = 0x4, offset = 0, fixed_abs, tag = 'sflag constant byte address 0x0 - dummy sync flag']
  #allocation39 [shape = 's32[]', space=sflag, size = 0x4, offset = 0, fixed_abs, tag = 'sflag constant byte address 0x0 - dummy sync flag']
  #allocation40 [shape = 's32[]', space=sflag, size = 0x4, offset = 0, fixed_abs, tag = 'sflag constant byte address 0x0 - dummy sync flag']
  #allocation41 [shape = 's32[]', space=sflag, size = 0x4, offset = 0, fixed_abs, tag = 'sflag constant byte address 0x0 - dummy sync flag']
  #allocation42 [shape = 's32[]', space=sflag, size = 0x4, offset = 0, fixed_abs, tag = 'sflag constant byte address 0x0 - dummy sync flag']
  #allocation43 [shape = 's32[]', space=sflag, size = 0x4, offset = 0, fixed_abs, tag = 'sflag constant byte address 0x0 - dummy sync flag']
  #allocation44 [shape = 's32[]', space=sflag, size = 0x4, offset = 0, fixed_abs, tag = 'sflag constant byte address 0x0 - dummy sync flag']
  #allocation45 [shape = 's32[]', space=sflag, size = 0x4, offset = 0, fixed_abs, tag = 'sflag constant byte address 0x0 - dummy sync flag']
  #allocation46 [shape = 's32[]', space=sflag, size = 0x4, offset = 0, fixed_abs, tag = 'sflag constant byte address 0x0 - dummy sync flag']
  #allocation47 [shape = 's32[]', space=sflag, size = 0x4, offset = 0, fixed_abs, tag = 'sflag constant byte address 0x0 - dummy sync flag']
  #allocation48 [shape = 's32[]', space=sflag, size = 0x4, offset = 0, fixed_abs, tag = 'sflag constant byte address 0x0 - dummy sync flag']
  #allocation49 [shape = 's32[]', space=sflag, size = 0x4, offset = 0, fixed_abs, tag = 'sflag constant byte address 0x0 - dummy sync flag']
  #allocation50 [shape = 's32[]', space=sflag, size = 0x4, offset = 0, fixed_abs, tag = 'sflag constant byte address 0x0 - dummy sync flag']
  #allocation51 [shape = 's32[]', space=sflag, size = 0x4, offset = 0, fixed_abs, tag = 'sflag constant byte address 0x0 - dummy sync flag']
  #allocation52 [shape = 's32[]', space=sflag, size = 0x4, offset = 0, fixed_abs, tag = 'sflag constant byte address 0x0 - dummy sync flag']
  #allocation53 [shape = 's32[]', space=sflag, size = 0x4, offset = 0, fixed_abs, tag = 'sflag constant byte address 0x0 - dummy sync flag']
  #allocation54 [shape = 's32[]', space=sflag, size = 0x4, offset = 0, fixed_abs, tag = 'sflag constant byte address 0x0 - dummy sync flag']
  #allocation55 [shape = 's32[]', space=sflag, size = 0x4, offset = 0, fixed_abs, tag = 'sflag constant byte address 0x0 - dummy sync flag']
  #allocation56 [shape = 's32[]', space=sflag, size = 0x4, offset = 0, fixed_abs, tag = 'sflag constant byte address 0x0 - dummy sync flag']
  #allocation57 [shape = 's32[]', space=sflag, size = 0x4, offset = 0, fixed_abs, tag = 'sflag constant byte address 0x0 - dummy sync flag']
  #allocation58 [shape = 's32[]', space=sflag, size = 0x4, offset = 0, fixed_abs, tag = 'sflag constant byte address 0x0 - dummy sync flag']
  #allocation59 [shape = 's32[]', space=sflag, size = 0x4, offset = 0, fixed_abs, tag = 'sflag constant byte address 0x0 - dummy sync flag']
  #allocation60 [shape = 's32[]', space=sflag, size = 0x4, offset = 0, fixed_abs, tag = 'sflag constant byte address 0x0 - dummy sync flag']
  #allocation61 [shape = 's32[]', space=sflag, size = 0x4, offset = 0, fixed_abs, tag = 'sflag constant byte address 0x0 - dummy sync flag']
  #allocation62 [shape = 's32[]', space=sflag, size = 0x4, offset = 0, fixed_abs, tag = 'sflag constant byte address 0x0 - dummy sync flag']
  #allocation63 [shape = 's32[]', space=sflag, size = 0x4, offset = 0, fixed_abs, tag = 'sflag constant byte address 0x0 - dummy sync flag']
  #allocation64 [shape = 's32[]', space=sflag, size = 0x4, offset = 0, fixed_abs, tag = 'sflag constant byte address 0x0 - dummy sync flag']
  #allocation65 [shape = 's32[]', space=sflag, size = 0x4, offset = 0, fixed_abs, tag = 'sflag constant byte address 0x0 - dummy sync flag']
  #allocation66 [shape = 's32[]', space=sflag, size = 0x4, offset = 0, fixed_abs, tag = 'sflag constant byte address 0x0 - dummy sync flag']
  #allocation67 [shape = 's32[]', space=sflag, size = 0x4, offset = 0, fixed_abs, tag = 'sflag constant byte address 0x0 - dummy sync flag']
  #allocation68 [shape = 's32[]', space=sflag, size = 0x4, offset = 0, fixed_abs, tag = 'sflag constant byte address 0x0 - dummy sync flag']
  #allocation69 [shape = 's32[]', space=sflag, size = 0x4, offset = 0, fixed_abs, tag = 'sflag constant byte address 0x0 - dummy sync flag']
  #allocation70 [shape = 's32[]', space=sflag, size = 0x4, offset = 0, fixed_abs, tag = 'sflag constant byte address 0x0 - dummy sync flag']
  #allocation71 [shape = 's32[]', space=sflag, size = 0x4, offset = 0, fixed_abs, tag = 'sflag constant byte address 0x0 - dummy sync flag']
  #allocation72 [shape = 's32[]', space=sflag, size = 0x4, offset = 0, fixed_abs, tag = 'sflag constant byte address 0x0 - dummy sync flag']
  #allocation73 [shape = 's32[]', space=sflag, size = 0x4, offset = 0, fixed_abs, tag = 'sflag constant byte address 0x0 - dummy sync flag']
  #allocation74 [shape = 's32[]', space=sflag, size = 0x4, offset = 0, fixed_abs, tag = 'sflag constant byte address 0x0 - dummy sync flag']
  #allocation75 [shape = 's32[]', space=sflag, size = 0x4, offset = 0, fixed_abs, tag = 'sflag constant byte address 0x0 - dummy sync flag']
  #allocation76 [shape = 's32[]', space=sflag, size = 0x4, offset = 0, fixed_abs, tag = 'sflag constant byte address 0x0 - dummy sync flag']
  #allocation77 [shape = 's32[]', space=sflag, size = 0x4, offset = 0, fixed_abs, tag = 'sflag constant byte address 0x0 - dummy sync flag']
  #allocation78 [shape = 's32[]', space=sflag, size = 0x4, offset = 0, fixed_abs, tag = 'sflag constant byte address 0x0 - dummy sync flag']
  #allocation79 [shape = 's32[]', space=sflag, size = 0x4, offset = 0, fixed_abs, tag = 'sflag constant byte address 0x0 - dummy sync flag']
  #allocation80 [shape = 's32[]', space=sflag, size = 0x4, offset = 0, fixed_abs, tag = 'sflag constant byte address 0x0 - dummy sync flag']
  #allocation81 [shape = 's32[]', space=sflag, size = 0x4, offset = 0, fixed_abs, tag = 'sflag constant byte address 0x0 - dummy sync flag']
  #allocation82 [shape = 's32[]', space=sflag, size = 0x4, offset = 0, fixed_abs, tag = 'sflag constant byte address 0x0 - dummy sync flag']
  #allocation83 [shape = 's32[]', space=sflag, size = 0x4, offset = 0, fixed_abs, tag = 'sflag constant byte address 0x0 - dummy sync flag']
  #allocation84 [shape = 's32[]', space=sflag, size = 0x4, offset = 0, fixed_abs, tag = 'sflag constant byte address 0x0 - dummy sync flag']
  #allocation85 [shape = 's32[]', space=sflag, size = 0x4, offset = 0, fixed_abs, tag = 'sflag constant byte address 0x0 - dummy sync flag']
  #allocation86 [shape = 's32[]', space=sflag, size = 0x4, offset = 0, fixed_abs, tag = 'sflag constant byte address 0x0 - dummy sync flag']
  #allocation87 [shape = 's32[]', space=sflag, size = 0x4, offset = 0, fixed_abs, tag = 'sflag constant byte address 0x0 - dummy sync flag']
  #allocation88 [shape = 's32[]', space=sflag, size = 0x4, offset = 0, fixed_abs, tag = 'sflag constant byte address 0x0 - dummy sync flag']
  #allocation89 [shape = 's32[]', space=sflag, size = 0x4, offset = 0, fixed_abs, tag = 'sflag constant byte address 0x0 - dummy sync flag']
  #allocation90 [shape = 's32[]', space=sflag, size = 0x4, offset = 0, fixed_abs, tag = 'sflag constant byte address 0x0 - dummy sync flag']
  #allocation91 [shape = 's32[]', space=sflag, size = 0x4, offset = 0, fixed_abs, tag = 'sflag constant byte address 0x0 - dummy sync flag']
  #allocation92 [shape = 's32[]', space=sflag, size = 0x4, offset = 0, fixed_abs, tag = 'sflag constant byte address 0x0 - dummy sync flag']
  #allocation93 [shape = 's32[]', space=sflag, size = 0x4, offset = 0, fixed_abs, tag = 'sflag constant byte address 0x0 - dummy sync flag']
  %s0 = inlined_call_operand.vmem [shape: s32[32], index: 0, kind: input, shape index: {}]
  %s1 = inlined_call_operand.hbm [shape: f32[256,128], index: 1, kind: input, shape index: {}]
  %s2 = inlined_call_operand.hbm [shape: f32[2,1,128], index: 2, kind: input, shape index: {}]
  %s3 = inlined_call_operand.hbm [shape: bf16[2,128,128], index: 3, kind: input, shape index: {}]
  %s4 = inlined_call_operand.hbm [shape: bf16[2,128,128], index: 4, kind: input, shape index: {}]
  %s5 = inlined_call_operand.hbm [shape: bf16[2,128,128], index: 5, kind: input, shape index: {}]
  %s6 = inlined_call_operand.hbm [shape: bf16[2,128,128], index: 6, kind: input, shape index: {}]
  %s7 = inlined_call_operand.hbm [shape: f32[2,1,128], index: 7, kind: input, shape index: {}]
  %s8 = inlined_call_operand.hbm [shape: bf16[2,128,256], index: 8, kind: input, shape index: {}]
  %s9 = inlined_call_operand.hbm [shape: bf16[2,256,128], index: 9, kind: input, shape index: {}]
  %s10 = inlined_call_operand.hbm [shape: bf16[2,128,256], index: 10, kind: input, shape index: {}]
  %s11 = inlined_call_operand.vmem [shape: bf16[32,128], index: 11, kind: input, shape index: {}]
  %s12 = inlined_call_operand.vmem [shape: bf16[32,128], index: 12, kind: input, shape index: {}]
  %s13 = inlined_call_operand.hbm [shape: bf16[32,128], index: 13, kind: input, shape index: {}]
  %s14 = inlined_call_operand.vmem [shape: f32[32,128], index: 14, kind: input, shape index: {}]
  %s15 = inlined_call_operand.hbm [shape: f32[128,128], index: 15, kind: input, shape index: {}]
  %s16 = inlined_call_operand.hbm [shape: f32[1,128], index: 16, kind: input, shape index: {}]
  %s17 = inlined_call_operand.hbm [shape: bf16[128,256], index: 17, kind: input, shape index: {}]
  %s18 = inlined_call_operand.hbm [shape: f32[32,256], index: 18, kind: output, shape index: {}]
  %s19 = sld [smem:[#allocation0]]
  $region285: #{transformer_forward.1} parent=0
    _
  %s21 = ssub.s32 1, %s19
  %s22 = scalar_select 0, %s21, %s19
  %s23 = sshll.u32 %s0, 4
  %s24 = int_to_ptr.vmem [resolvable:$true] %s23
  %26 = dma.vmem_to_smem %s24, 16, [#allocation5], [#allocation4]
  %27 = dma.done [#allocation4], 16
  %28 = sfence
  $region1: #{transformer_forward.1} parent=0
    #allocation6 [shape = 'u8[1024]{0}', space=vmem, size = 0x400, scoped, tag = 'input window, operand 2']
    #allocation7 [shape = 's32[2]{0}', space=sflag, size = 0x8, scoped, tag = 'scoped memory for transformer_forward.1']
    #allocation8 [shape = 's32[2]{0}', space=sflag, size = 0x8, scoped, tag = 'scoped memory for transformer_forward.1']
    #allocation9 [shape = 'u8[65536]{0}', space=vmem, size = 0x10000, scoped, tag = 'input window, operand 3']
    #allocation10 [shape = 's32[2]{0}', space=sflag, size = 0x8, scoped, tag = 'scoped memory for transformer_forward.1']
    #allocation11 [shape = 'u8[65536]{0}', space=vmem, size = 0x10000, scoped, tag = 'input window, operand 4']
    #allocation12 [shape = 'u8[65536]{0}', space=vmem, size = 0x10000, scoped, tag = 'input window, operand 5']
    #allocation13 [shape = 's32[2]{0}', space=sflag, size = 0x8, scoped, tag = 'scoped memory for transformer_forward.1']
    #allocation14 [shape = 'u8[65536]{0}', space=vmem, size = 0x10000, scoped, tag = 'input window, operand 6']
    #allocation15 [shape = 'u8[1024]{0}', space=vmem, size = 0x400, scoped, tag = 'input window, operand 7']
    #allocation16 [shape = 's32[2]{0}', space=sflag, size = 0x8, scoped, tag = 'scoped memory for transformer_forward.1']
    #allocation17 [shape = 'u8[131072]{0}', space=vmem, size = 0x20000, scoped, tag = 'input window, operand 8']
    #allocation18 [shape = 'u8[131072]{0}', space=vmem, size = 0x20000, scoped, tag = 'input window, operand 9']
    #allocation19 [shape = 's32[2]{0}', space=sflag, size = 0x8, scoped, tag = 'scoped memory for transformer_forward.1']
    #allocation20 [shape = 'u8[131072]{0}', space=vmem, size = 0x20000, scoped, tag = 'input window, operand 10']
    #allocation21 [shape = 'u8[8192]{0}', space=vmem, size = 0x2000, scoped, tag = 'input window, operand 13, single buffered']
    #allocation22 [shape = 's32[1]{0}', space=sflag, size = 0x4, scoped, tag = 'scoped memory for transformer_forward.1']
    #allocation23 [shape = 'u8[65536]{0}', space=vmem, size = 0x10000, scoped, tag = 'input window, operand 15, single buffered']
    #allocation24 [shape = 'u8[512]{0}', space=vmem, size = 0x400, scoped, tag = 'input window, operand 16, single buffered']
    #allocation25 [shape = 's32[1]{0}', space=sflag, size = 0x4, scoped, tag = 'scoped memory for transformer_forward.1']
    #allocation26 [shape = 'u8[65536]{0}', space=vmem, size = 0x10000, scoped, tag = 'input window, operand 17, single buffered']
    #allocation27 [shape = 'u8[32768]{0}', space=vmem, size = 0x8000, scoped, tag = 'output window, operand 0, single buffered']
    %29 = vsyncpa [#allocation7], 0
    %s30 = scalar_lea.sflag [#allocation7], 1
    %31 = vsyncpa %s30, 0
    %32 = vsyncpa [#allocation10], 0
    %s33 = scalar_lea.sflag [#allocation10], 1
    %34 = vsyncpa %s33, 0
    %35 = vsyncpa [#allocation13], 0
    %s36 = scalar_lea.sflag [#allocation13], 1
    %37 = vsyncpa %s36, 0
    %38 = vsyncpa [#allocation16], 0
    %s39 = scalar_lea.sflag [#allocation16], 1
    %40 = vsyncpa %s39, 0
    %41 = vsyncpa [#allocation19], 0
    %s42 = scalar_lea.sflag [#allocation19], 1
    %43 = vsyncpa %s42, 0
    %44 = vsyncpa [#allocation22], 0
    %45 = vsyncpa [#allocation25], 0
    %46 = vsyncpa [#allocation8], 0
    loop: start=0, step=1, limit=4
    $region2: #{transformer_forward.1} parent=1 // loop_pre_header
      _
    $region3: #{transformer_forward.1} parent=1 // loop_header
      %s48 = sphi 0, %s52
      %p49 = scmp.ge.s32.totalorder %s48, 4
      %s58 = sphi 0, %s60
      %s61 = sphi 0, %s58
      %s62 = sphi 0, %s61
      %s78 = sphi 0, %s62
      %s84 = sphi 0, %s86
      %s87 = sphi 0, %s84
      %s88 = sphi 0, %s87
      %s104 = sphi 0, %s88
      %s110 = sphi 0, %s112
      %s113 = sphi 0, %s110
      %s114 = sphi 0, %s113
      %s130 = sphi 0, %s114
      %s136 = sphi 0, %s138
      %s139 = sphi 0, %s136
      %s140 = sphi 0, %s139
      %s156 = sphi 0, %s140
      %s162 = sphi 0, %s164
      %s165 = sphi 0, %s162
      %s166 = sphi 0, %s165
      %s182 = sphi 0, %s166
      %s188 = sphi 0, %s190
      %s191 = sphi 0, %s188
      %s192 = sphi 0, %s191
      %s208 = sphi 0, %s192
      %s214 = sphi 0, %s216
      %s217 = sphi 0, %s214
      %s218 = sphi 0, %s217
      %s234 = sphi 0, %s218
      %s240 = sphi 0, %s242
      %s243 = sphi 0, %s240
      %s244 = sphi 0, %s243
      %s260 = sphi 0, %s244
      %s266 = sphi 0, %s268
      %s269 = sphi 0, %s266
      %s270 = sphi 0, %s269
      %s286 = sphi 0, %s270
      %s290 = sphi 0, %s290
      %s292 = sphi 0, %s290
      %s293 = sphi 0, %s292
      %s307 = sphi 0, %s293
      %s311 = sphi 0, %s311
      %s313 = sphi 0, %s311
      %s314 = sphi 0, %s313
      %s328 = sphi 0, %s314
      %s332 = sphi 0, %s332
      %s334 = sphi 0, %s332
      %s335 = sphi 0, %s334
      %s349 = sphi 0, %s335
      %s353 = sphi 0, %s353
      %s355 = sphi 0, %s353
      %s356 = sphi 0, %s355
      %s370 = sphi 0, %s356
      %s374 = sphi 0, %s374
      %s376 = sphi 0, %s374
      %s377 = sphi 0, %s376
      %s391 = sphi 0, %s377
      %s395 = sphi 0, %s395
      %s397 = sphi 0, %s395
      %s398 = sphi 0, %s397
      %s412 = sphi 0, %s398
      %s416 = sphi 0, %s416
      %s418 = sphi 0, %s416
      %s419 = sphi 0, %s418
      %s433 = sphi 0, %s419
      %s437 = sphi 0, %s437
      %s439 = sphi 0, %s437
      %s440 = sphi 0, %s439
      %s454 = sphi 0, %s440
    $region4: #{transformer_forward.1} parent=1 // loop_header_branch
      %51 = sbr.rel (%p49) target = $region8
    $region5: #{transformer_forward.1} parent=1 // loop_body
      %s53 = ssub.s32 %s48, 1
      %s54 = ssub.s32 %s48, 2
      %s55 = sadd.s32 %s48, 1
      %s56 = ssub.s32 %s48, %s55
      %p57 = scmp.eq.s32.totalorder %s56, 0
      %s59 = sadd.s32 %s58, 1
      %s60 = scalar_select %p57, %s58, %s59
      %p63 = pneg %p57
      %p64 = scmp.eq.s32.totalorder %s48, 1
      %p65 = por %p63, %p64
      %p66 = scmp.ne.s32.totalorder %s58, %s61
      %p67 = scmp.eq.s32.totalorder %s48, 0
      %p68 = por %p66, %p67
      %p69 = scmp.ne.s32.totalorder %s58, %s61
      %p70 = scmp.eq.s32.totalorder %s53, 1
      %p71 = por %p69, %p70
      %p72 = scmp.ne.s32.totalorder %s61, %s62
      %p73 = scmp.eq.s32.totalorder %s53, 0
      %p74 = por %p72, %p73
      %p75 = scmp.ne.s32.totalorder %s61, %s62
      %p76 = scmp.eq.s32.totalorder %s54, 1
      %p77 = por %p75, %p76
      %p79 = scmp.ne.s32.totalorder %s62, %s78
      %p80 = scmp.eq.s32.totalorder %s54, 0
      %p81 = por %p79, %p80
      %s82 = ssub.s32 %s48, %s55
      %p83 = scmp.eq.s32.totalorder %s82, 0
      %s85 = sadd.s32 %s84, 1
      %s86 = scalar_select %p83, %s84, %s85
      %p89 = pneg %p83
      %p90 = scmp.eq.s32.totalorder %s48, 1
      %p91 = por %p89, %p90
      %p92 = scmp.ne.s32.totalorder %s84, %s87
      %p93 = scmp.eq.s32.totalorder %s48, 0
      %p94 = por %p92, %p93
      %p95 = scmp.ne.s32.totalorder %s84, %s87
      %p96 = scmp.eq.s32.totalorder %s53, 1
      %p97 = por %p95, %p96
      %p98 = scmp.ne.s32.totalorder %s87, %s88
      %p99 = scmp.eq.s32.totalorder %s53, 0
      %p100 = por %p98, %p99
      %p101 = scmp.ne.s32.totalorder %s87, %s88
      %p102 = scmp.eq.s32.totalorder %s54, 1
      %p103 = por %p101, %p102
      %p105 = scmp.ne.s32.totalorder %s88, %s104
      %p106 = scmp.eq.s32.totalorder %s54, 0
      %p107 = por %p105, %p106
      %s108 = ssub.s32 %s48, %s55
      %p109 = scmp.eq.s32.totalorder %s108, 0
      %s111 = sadd.s32 %s110, 1
      %s112 = scalar_select %p109, %s110, %s111
      %p115 = pneg %p109
      %p116 = scmp.eq.s32.totalorder %s48, 1
      %p117 = por %p115, %p116
      %p118 = scmp.ne.s32.totalorder %s110, %s113
      %p119 = scmp.eq.s32.totalorder %s48, 0
      %p120 = por %p118, %p119
      %p121 = scmp.ne.s32.totalorder %s110, %s113
      %p122 = scmp.eq.s32.totalorder %s53, 1
      %p123 = por %p121, %p122
      %p124 = scmp.ne.s32.totalorder %s113, %s114
      %p125 = scmp.eq.s32.totalorder %s53, 0
      %p126 = por %p124, %p125
      %p127 = scmp.ne.s32.totalorder %s113, %s114
      %p128 = scmp.eq.s32.totalorder %s54, 1
      %p129 = por %p127, %p128
      %p131 = scmp.ne.s32.totalorder %s114, %s130
      %p132 = scmp.eq.s32.totalorder %s54, 0
      %p133 = por %p131, %p132
      %s134 = ssub.s32 %s48, %s55
      %p135 = scmp.eq.s32.totalorder %s134, 0
      %s137 = sadd.s32 %s136, 1
      %s138 = scalar_select %p135, %s136, %s137
      %p141 = pneg %p135
      %p142 = scmp.eq.s32.totalorder %s48, 1
      %p143 = por %p141, %p142
      %p144 = scmp.ne.s32.totalorder %s136, %s139
      %p145 = scmp.eq.s32.totalorder %s48, 0
      %p146 = por %p144, %p145
      %p147 = scmp.ne.s32.totalorder %s136, %s139
      %p148 = scmp.eq.s32.totalorder %s53, 1
      %p149 = por %p147, %p148
      %p150 = scmp.ne.s32.totalorder %s139, %s140
      %p151 = scmp.eq.s32.totalorder %s53, 0
      %p152 = por %p150, %p151
      %p153 = scmp.ne.s32.totalorder %s139, %s140
      %p154 = scmp.eq.s32.totalorder %s54, 1
      %p155 = por %p153, %p154
      %p157 = scmp.ne.s32.totalorder %s140, %s156
      %p158 = scmp.eq.s32.totalorder %s54, 0
      %p159 = por %p157, %p158
      %s160 = ssub.s32 %s48, %s55
      %p161 = scmp.eq.s32.totalorder %s160, 0
      %s163 = sadd.s32 %s162, 1
      %s164 = scalar_select %p161, %s162, %s163
      %p167 = pneg %p161
      %p168 = scmp.eq.s32.totalorder %s48, 1
      %p169 = por %p167, %p168
      %p170 = scmp.ne.s32.totalorder %s162, %s165
      %p171 = scmp.eq.s32.totalorder %s48, 0
      %p172 = por %p170, %p171
      %p173 = scmp.ne.s32.totalorder %s162, %s165
      %p174 = scmp.eq.s32.totalorder %s53, 1
      %p175 = por %p173, %p174
      %p176 = scmp.ne.s32.totalorder %s165, %s166
      %p177 = scmp.eq.s32.totalorder %s53, 0
      %p178 = por %p176, %p177
      %p179 = scmp.ne.s32.totalorder %s165, %s166
      %p180 = scmp.eq.s32.totalorder %s54, 1
      %p181 = por %p179, %p180
      %p183 = scmp.ne.s32.totalorder %s166, %s182
      %p184 = scmp.eq.s32.totalorder %s54, 0
      %p185 = por %p183, %p184
      %s186 = ssub.s32 %s48, %s55
      %p187 = scmp.eq.s32.totalorder %s186, 0
      %s189 = sadd.s32 %s188, 1
      %s190 = scalar_select %p187, %s188, %s189
      %p193 = pneg %p187
      %p194 = scmp.eq.s32.totalorder %s48, 1
      %p195 = por %p193, %p194
      %p196 = scmp.ne.s32.totalorder %s188, %s191
      %p197 = scmp.eq.s32.totalorder %s48, 0
      %p198 = por %p196, %p197
      %p199 = scmp.ne.s32.totalorder %s188, %s191
      %p200 = scmp.eq.s32.totalorder %s53, 1
      %p201 = por %p199, %p200
      %p202 = scmp.ne.s32.totalorder %s191, %s192
      %p203 = scmp.eq.s32.totalorder %s53, 0
      %p204 = por %p202, %p203
      %p205 = scmp.ne.s32.totalorder %s191, %s192
      %p206 = scmp.eq.s32.totalorder %s54, 1
      %p207 = por %p205, %p206
      %p209 = scmp.ne.s32.totalorder %s192, %s208
      %p210 = scmp.eq.s32.totalorder %s54, 0
      %p211 = por %p209, %p210
      %s212 = ssub.s32 %s48, %s55
      %p213 = scmp.eq.s32.totalorder %s212, 0
      %s215 = sadd.s32 %s214, 1
      %s216 = scalar_select %p213, %s214, %s215
      %p219 = pneg %p213
      %p220 = scmp.eq.s32.totalorder %s48, 1
      %p221 = por %p219, %p220
      %p222 = scmp.ne.s32.totalorder %s214, %s217
      %p223 = scmp.eq.s32.totalorder %s48, 0
      %p224 = por %p222, %p223
      %p225 = scmp.ne.s32.totalorder %s214, %s217
      %p226 = scmp.eq.s32.totalorder %s53, 1
      %p227 = por %p225, %p226
      %p228 = scmp.ne.s32.totalorder %s217, %s218
      %p229 = scmp.eq.s32.totalorder %s53, 0
      %p230 = por %p228, %p229
      %p231 = scmp.ne.s32.totalorder %s217, %s218
      %p232 = scmp.eq.s32.totalorder %s54, 1
      %p233 = por %p231, %p232
      %p235 = scmp.ne.s32.totalorder %s218, %s234
      %p236 = scmp.eq.s32.totalorder %s54, 0
      %p237 = por %p235, %p236
      %s238 = ssub.s32 %s48, %s55
      %p239 = scmp.eq.s32.totalorder %s238, 0
      %s241 = sadd.s32 %s240, 1
      %s242 = scalar_select %p239, %s240, %s241
      %p245 = pneg %p239
      %p246 = scmp.eq.s32.totalorder %s48, 1
      %p247 = por %p245, %p246
      %p248 = scmp.ne.s32.totalorder %s240, %s243
      %p249 = scmp.eq.s32.totalorder %s48, 0
      %p250 = por %p248, %p249
      %p251 = scmp.ne.s32.totalorder %s240, %s243
      %p252 = scmp.eq.s32.totalorder %s53, 1
      %p253 = por %p251, %p252
      %p254 = scmp.ne.s32.totalorder %s243, %s244
      %p255 = scmp.eq.s32.totalorder %s53, 0
      %p256 = por %p254, %p255
      %p257 = scmp.ne.s32.totalorder %s243, %s244
      %p258 = scmp.eq.s32.totalorder %s54, 1
      %p259 = por %p257, %p258
      %p261 = scmp.ne.s32.totalorder %s244, %s260
      %p262 = scmp.eq.s32.totalorder %s54, 0
      %p263 = por %p261, %p262
      %s264 = ssub.s32 %s48, %s55
      %p265 = scmp.eq.s32.totalorder %s264, 0
      %s267 = sadd.s32 %s266, 1
      %s268 = scalar_select %p265, %s266, %s267
      %p271 = pneg %p265
      %p272 = scmp.eq.s32.totalorder %s48, 1
      %p273 = por %p271, %p272
      %p274 = scmp.ne.s32.totalorder %s266, %s269
      %p275 = scmp.eq.s32.totalorder %s48, 0
      %p276 = por %p274, %p275
      %p277 = scmp.ne.s32.totalorder %s266, %s269
      %p278 = scmp.eq.s32.totalorder %s53, 1
      %p279 = por %p277, %p278
      %p280 = scmp.ne.s32.totalorder %s269, %s270
      %p281 = scmp.eq.s32.totalorder %s53, 0
      %p282 = por %p280, %p281
      %p283 = scmp.ne.s32.totalorder %s269, %s270
      %p284 = scmp.eq.s32.totalorder %s54, 1
      %p285 = por %p283, %p284
      %p287 = scmp.ne.s32.totalorder %s270, %s286
      %p288 = scmp.eq.s32.totalorder %s54, 0
      %p289 = por %p287, %p288
      %s291 = sadd.s32 %s290, 1
      %p294 = scmp.eq.s32.totalorder %s48, 1
      %p295 = scmp.ne.s32.totalorder %s290, %s292
      %p296 = scmp.eq.s32.totalorder %s48, 0
      %p297 = por %p295, %p296
      %p298 = scmp.ne.s32.totalorder %s290, %s292
      %p299 = scmp.eq.s32.totalorder %s53, 1
      %p300 = por %p298, %p299
      %p301 = scmp.ne.s32.totalorder %s292, %s293
      %p302 = scmp.eq.s32.totalorder %s53, 0
      %p303 = por %p301, %p302
      %p304 = scmp.ne.s32.totalorder %s292, %s293
      %p305 = scmp.eq.s32.totalorder %s54, 1
      %p306 = por %p304, %p305
      %p308 = scmp.ne.s32.totalorder %s293, %s307
      %p309 = scmp.eq.s32.totalorder %s54, 0
      %p310 = por %p308, %p309
      %s312 = sadd.s32 %s311, 1
      %p315 = scmp.eq.s32.totalorder %s48, 1
      %p316 = scmp.ne.s32.totalorder %s311, %s313
      %p317 = scmp.eq.s32.totalorder %s48, 0
      %p318 = por %p316, %p317
      %p319 = scmp.ne.s32.totalorder %s311, %s313
      %p320 = scmp.eq.s32.totalorder %s53, 1
      %p321 = por %p319, %p320
      %p322 = scmp.ne.s32.totalorder %s313, %s314
      %p323 = scmp.eq.s32.totalorder %s53, 0
      %p324 = por %p322, %p323
      %p325 = scmp.ne.s32.totalorder %s313, %s314
      %p326 = scmp.eq.s32.totalorder %s54, 1
      %p327 = por %p325, %p326
      %p329 = scmp.ne.s32.totalorder %s314, %s328
      %p330 = scmp.eq.s32.totalorder %s54, 0
      %p331 = por %p329, %p330
      %s333 = sadd.s32 %s332, 1
      %p336 = scmp.eq.s32.totalorder %s48, 1
      %p337 = scmp.ne.s32.totalorder %s332, %s334
      %p338 = scmp.eq.s32.totalorder %s48, 0
      %p339 = por %p337, %p338
      %p340 = scmp.ne.s32.totalorder %s332, %s334
      %p341 = scmp.eq.s32.totalorder %s53, 1
      %p342 = por %p340, %p341
      %p343 = scmp.ne.s32.totalorder %s334, %s335
      %p344 = scmp.eq.s32.totalorder %s53, 0
      %p345 = por %p343, %p344
      %p346 = scmp.ne.s32.totalorder %s334, %s335
      %p347 = scmp.eq.s32.totalorder %s54, 1
      %p348 = por %p346, %p347
      %p350 = scmp.ne.s32.totalorder %s335, %s349
      %p351 = scmp.eq.s32.totalorder %s54, 0
      %p352 = por %p350, %p351
      %s354 = sadd.s32 %s353, 1
      %p357 = scmp.eq.s32.totalorder %s48, 1
      %p358 = scmp.ne.s32.totalorder %s353, %s355
      %p359 = scmp.eq.s32.totalorder %s48, 0
      %p360 = por %p358, %p359
      %p361 = scmp.ne.s32.totalorder %s353, %s355
      %p362 = scmp.eq.s32.totalorder %s53, 1
      %p363 = por %p361, %p362
      %p364 = scmp.ne.s32.totalorder %s355, %s356
      %p365 = scmp.eq.s32.totalorder %s53, 0
      %p366 = por %p364, %p365
      %p367 = scmp.ne.s32.totalorder %s355, %s356
      %p368 = scmp.eq.s32.totalorder %s54, 1
      %p369 = por %p367, %p368
      %p371 = scmp.ne.s32.totalorder %s356, %s370
      %p372 = scmp.eq.s32.totalorder %s54, 0
      %p373 = por %p371, %p372
      %s375 = sadd.s32 %s374, 1
      %p378 = scmp.eq.s32.totalorder %s48, 1
      %p379 = scmp.ne.s32.totalorder %s374, %s376
      %p380 = scmp.eq.s32.totalorder %s48, 0
      %p381 = por %p379, %p380
      %p382 = scmp.ne.s32.totalorder %s374, %s376
      %p383 = scmp.eq.s32.totalorder %s53, 1
      %p384 = por %p382, %p383
      %p385 = scmp.ne.s32.totalorder %s376, %s377
      %p386 = scmp.eq.s32.totalorder %s53, 0
      %p387 = por %p385, %p386
      %p388 = scmp.ne.s32.totalorder %s376, %s377
      %p389 = scmp.eq.s32.totalorder %s54, 1
      %p390 = por %p388, %p389
      %p392 = scmp.ne.s32.totalorder %s377, %s391
      %p393 = scmp.eq.s32.totalorder %s54, 0
      %p394 = por %p392, %p393
      %s396 = sadd.s32 %s395, 1
      %p399 = scmp.eq.s32.totalorder %s48, 1
      %p400 = scmp.ne.s32.totalorder %s395, %s397
      %p401 = scmp.eq.s32.totalorder %s48, 0
      %p402 = por %p400, %p401
      %p403 = scmp.ne.s32.totalorder %s395, %s397
      %p404 = scmp.eq.s32.totalorder %s53, 1
      %p405 = por %p403, %p404
      %p406 = scmp.ne.s32.totalorder %s397, %s398
      %p407 = scmp.eq.s32.totalorder %s53, 0
      %p408 = por %p406, %p407
      %p409 = scmp.ne.s32.totalorder %s397, %s398
      %p410 = scmp.eq.s32.totalorder %s54, 1
      %p411 = por %p409, %p410
      %p413 = scmp.ne.s32.totalorder %s398, %s412
      %p414 = scmp.eq.s32.totalorder %s54, 0
      %p415 = por %p413, %p414
      %s417 = sadd.s32 %s416, 1
      %p420 = scmp.eq.s32.totalorder %s48, 1
      %p421 = scmp.ne.s32.totalorder %s416, %s418
      %p422 = scmp.eq.s32.totalorder %s48, 0
      %p423 = por %p421, %p422
      %p424 = scmp.ne.s32.totalorder %s416, %s418
      %p425 = scmp.eq.s32.totalorder %s53, 1
      %p426 = por %p424, %p425
      %p427 = scmp.ne.s32.totalorder %s418, %s419
      %p428 = scmp.eq.s32.totalorder %s53, 0
      %p429 = por %p427, %p428
      %p430 = scmp.ne.s32.totalorder %s418, %s419
      %p431 = scmp.eq.s32.totalorder %s54, 1
      %p432 = por %p430, %p431
      %p434 = scmp.ne.s32.totalorder %s419, %s433
      %p435 = scmp.eq.s32.totalorder %s54, 0
      %p436 = por %p434, %p435
      %s438 = sadd.s32 %s437, 1
      %p441 = scmp.eq.s32.totalorder %s48, 1
      %p442 = scmp.ne.s32.totalorder %s437, %s439
      %p443 = scmp.eq.s32.totalorder %s48, 0
      %p444 = por %p442, %p443
      %p445 = scmp.ne.s32.totalorder %s437, %s439
      %p446 = scmp.eq.s32.totalorder %s53, 1
      %p447 = por %p445, %p446
      %p448 = scmp.ne.s32.totalorder %s439, %s440
      %p449 = scmp.eq.s32.totalorder %s53, 0
      %p450 = por %p448, %p449
      %p451 = scmp.ne.s32.totalorder %s439, %s440
      %p452 = scmp.eq.s32.totalorder %s54, 1
      %p453 = por %p451, %p452
      %p455 = scmp.ne.s32.totalorder %s440, %s454
      %p456 = scmp.eq.s32.totalorder %s54, 0
      %p457 = por %p455, %p456
      %p458 = scmp.le.s32.totalorder 1, %s48
      %p459 = scmp.lt.s32.totalorder %s48, 3
      %p460 = pnand %p458, %p459
      %p461 = pneg %p460
      // Predicated region
      $region9: #{transformer_forward.1} parent=5 // pred_check
        _
      $region10: #{transformer_forward.1} parent=5 // pred_check_branch
        %463 = sbr.rel (%p460) target = $region12
      $region11: #{transformer_forward.1} parent=5 // pred_region
        %s464 = ssub.s32 %s48, 1
        // Predicated region
        $region13: #{transformer_forward.1} parent=11 // pred_check
          %p465 = pneg %p303
        $region14: #{transformer_forward.1} parent=11 // pred_check_branch
          %467 = sbr.rel (%p465) target = $region16
        $region15: #{transformer_forward.1} parent=11 // pred_region
          _
        $region16: #{transformer_forward.1} parent=11 // pred_fallthru
          _
        // Predicated region
        $region17: #{transformer_forward.1} parent=11 // pred_check
          %p468 = pneg %p324
        $region18: #{transformer_forward.1} parent=11 // pred_check_branch
          %470 = sbr.rel (%p468) target = $region20
        $region19: #{transformer_forward.1} parent=11 // pred_region
          _
        $region20: #{transformer_forward.1} parent=11 // pred_fallthru
          _
        // Predicated region
        $region21: #{transformer_forward.1} parent=11 // pred_check
          %p471 = pneg %p345
        $region22: #{transformer_forward.1} parent=11 // pred_check_branch
          %473 = sbr.rel (%p471) target = $region24
        $region23: #{transformer_forward.1} parent=11 // pred_region
          %s475 = ssub.s32 256, 256
          %476 = vsyncadd [#allocation22], %s475
          %s477 = sshll.u32 [#allocation21], 4
          %s478 = int_to_ptr.vmem [resolvable:$true] %s477
          %483 = dma.hbm_to_vmem [thread:$0]  %s13, 256, %s478, [#allocation22], 64, 64, 4
        $region24: #{transformer_forward.1} parent=11 // pred_fallthru
          _
        // Predicated region
        $region25: #{transformer_forward.1} parent=11 // pred_check
          %p484 = pneg %p366
        $region26: #{transformer_forward.1} parent=11 // pred_check_branch
          %486 = sbr.rel (%p484) target = $region28
        $region27: #{transformer_forward.1} parent=11 // pred_region
          _
        $region28: #{transformer_forward.1} parent=11 // pred_fallthru
          _
        // Predicated region
        $region29: #{transformer_forward.1} parent=11 // pred_check
          %p487 = pneg %p387
        $region30: #{transformer_forward.1} parent=11 // pred_check_branch
          %489 = sbr.rel (%p487) target = $region32
        $region31: #{transformer_forward.1} parent=11 // pred_region
          %s491 = ssub.s32 2048, 2048
          %492 = vsyncadd [#allocation22], %s491
          %s493 = sshll.u32 [#allocation23], 4
          %s494 = int_to_ptr.vmem [resolvable:$true] %s493
          %499 = dma.hbm_to_vmem [thread:$0]  %s15, 2048, %s494, [#allocation22], 128, 128, 8
        $region32: #{transformer_forward.1} parent=11 // pred_fallthru
          _
        // Predicated region
        $region33: #{transformer_forward.1} parent=11 // pred_check
          %p500 = pneg %p408
        $region34: #{transformer_forward.1} parent=11 // pred_check_branch
          %502 = sbr.rel (%p500) target = $region36
        $region35: #{transformer_forward.1} parent=11 // pred_region
          %s504 = ssub.s32 16, 16
          %505 = vsyncadd [#allocation25], %s504
          %s507 = sshll.u32 [#allocation24], 4
          %s508 = int_to_ptr.vmem [resolvable:$true] %s507
          %510 = dma.hbm_to_vmem [thread:$0]  %s16, 16, %s508, [#allocation25]
        $region36: #{transformer_forward.1} parent=11 // pred_fallthru
          _
        // Predicated region
        $region37: #{transformer_forward.1} parent=11 // pred_check
          %p511 = pneg %p429
        $region38: #{transformer_forward.1} parent=11 // pred_check_branch
          %513 = sbr.rel (%p511) target = $region40
        $region39: #{transformer_forward.1} parent=11 // pred_region
          %s515 = ssub.s32 2048, 2048
          %516 = vsyncadd [#allocation25], %s515
          %s517 = sshll.u32 [#allocation26], 4
          %s518 = int_to_ptr.vmem [resolvable:$true] %s517
          %523 = dma.hbm_to_vmem [thread:$0]  %s17, 2048, %s518, [#allocation25], 128, 128, 8
        $region40: #{transformer_forward.1} parent=11 // pred_fallthru
          _
      $region12: #{transformer_forward.1} parent=5 // pred_fallthru
        _
      %p524 = scmp.lt.s32.totalorder %s48, 2
      // Predicated region
      $region41: #{transformer_forward.1} parent=5 // pred_check
        %p525 = pneg %p524
      $region42: #{transformer_forward.1} parent=5 // pred_check_branch
        %527 = sbr.rel (%p525) target = $region44
      $region43: #{transformer_forward.1} parent=5 // pred_region
        // Predicated region
        $region45: #{transformer_forward.1} parent=43 // pred_check
          %p528 = pneg %p68
        $region46: #{transformer_forward.1} parent=43 // pred_check_branch
          %530 = sbr.rel (%p528) target = $region48
        $region47: #{transformer_forward.1} parent=43 // pred_region
          %s531 = sand.u32 %s58, 1
          %s532 = scalar_lea.sflag [#allocation7], %s531
          %s533 = sand.u32 %s58, 1
          %s534 = scalar_lea.vmem [#allocation6], %s533
          %s536 = ssub.s32 16, 16
          %537 = vsyncadd %s532, %s536
          %s538 = smul.addr %s48, 16
          %s539 = scalar_lea.hbm %s2, %s538
          %s541 = sshll.u32 %s534, 4
          %s542 = int_to_ptr.vmem [resolvable:$true] %s541
          %544 = dma.hbm_to_vmem [thread:$0]  %s539, 16, %s542, %s532
        $region48: #{transformer_forward.1} parent=43 // pred_fallthru
          _
        // Predicated region
        $region49: #{transformer_forward.1} parent=43 // pred_check
          %p545 = pneg %p94
        $region50: #{transformer_forward.1} parent=43 // pred_check_branch
          %547 = sbr.rel (%p545) target = $region52
        $region51: #{transformer_forward.1} parent=43 // pred_region
          %s548 = sand.u32 %s48, 1
          %s549 = scalar_lea.sflag [#allocation10], %s548
          %s550 = sand.u32 %s84, 1
          %s551 = smul.addr %s550, 64
          %s552 = scalar_lea.vmem [#allocation9], %s551
          %s554 = ssub.s32 1024, 1024
          %555 = vsyncadd %s549, %s554
          %s556 = smul.addr %s48, 16
          %s557 = smul.addr %s556, 64
          %s558 = scalar_lea.hbm %s3, %s557
          %s559 = sshll.u32 %s552, 4
          %s560 = int_to_ptr.vmem [resolvable:$true] %s559
          %565 = dma.hbm_to_vmem [thread:$0]  %s558, 1024, %s560, %s549, 64, 64, 4
        $region52: #{transformer_forward.1} parent=43 // pred_fallthru
          _
        // Predicated region
        $region53: #{transformer_forward.1} parent=43 // pred_check
          %p566 = pneg %p120
        $region54: #{transformer_forward.1} parent=43 // pred_check_branch
          %568 = sbr.rel (%p566) target = $region56
        $region55: #{transformer_forward.1} parent=43 // pred_region
          %s569 = sand.u32 %s48, 1
          %s570 = scalar_lea.sflag [#allocation10], %s569
          %s571 = sand.u32 %s110, 1
          %s572 = smul.addr %s571, 64
          %s573 = scalar_lea.vmem [#allocation11], %s572
          %s575 = ssub.s32 1024, 1024
          %576 = vsyncadd %s570, %s575
          %s577 = smul.addr %s48, 16
          %s578 = smul.addr %s577, 64
          %s579 = scalar_lea.hbm %s4, %s578
          %s580 = sshll.u32 %s573, 4
          %s581 = int_to_ptr.vmem [resolvable:$true] %s580
          %586 = dma.hbm_to_vmem [thread:$0]  %s579, 1024, %s581, %s570, 64, 64, 4
        $region56: #{transformer_forward.1} parent=43 // pred_fallthru
          _
        // Predicated region
        $region57: #{transformer_forward.1} parent=43 // pred_check
          %p587 = pneg %p146
        $region58: #{transformer_forward.1} parent=43 // pred_check_branch
          %589 = sbr.rel (%p587) target = $region60
        $region59: #{transformer_forward.1} parent=43 // pred_region
          %s590 = sand.u32 %s48, 1
          %s591 = scalar_lea.sflag [#allocation13], %s590
          %s592 = sand.u32 %s136, 1
          %s593 = smul.addr %s592, 64
          %s594 = scalar_lea.vmem [#allocation12], %s593
          %s596 = ssub.s32 1024, 1024
          %597 = vsyncadd %s591, %s596
          %s598 = smul.addr %s48, 16
          %s599 = smul.addr %s598, 64
          %s600 = scalar_lea.hbm %s5, %s599
          %s601 = sshll.u32 %s594, 4
          %s602 = int_to_ptr.vmem [resolvable:$true] %s601
          %607 = dma.hbm_to_vmem [thread:$0]  %s600, 1024, %s602, %s591, 64, 64, 4
        $region60: #{transformer_forward.1} parent=43 // pred_fallthru
          _
        // Predicated region
        $region61: #{transformer_forward.1} parent=43 // pred_check
          %p608 = pneg %p172
        $region62: #{transformer_forward.1} parent=43 // pred_check_branch
          %610 = sbr.rel (%p608) target = $region64
        $region63: #{transformer_forward.1} parent=43 // pred_region
          %s611 = sand.u32 %s48, 1
          %s612 = scalar_lea.sflag [#allocation13], %s611
          %s613 = sand.u32 %s162, 1
          %s614 = smul.addr %s613, 64
          %s615 = scalar_lea.vmem [#allocation14], %s614
          %s617 = ssub.s32 1024, 1024
          %618 = vsyncadd %s612, %s617
          %s619 = smul.addr %s48, 16
          %s620 = smul.addr %s619, 64
          %s621 = scalar_lea.hbm %s6, %s620
          %s622 = sshll.u32 %s615, 4
          %s623 = int_to_ptr.vmem [resolvable:$true] %s622
          %628 = dma.hbm_to_vmem [thread:$0]  %s621, 1024, %s623, %s612, 64, 64, 4
        $region64: #{transformer_forward.1} parent=43 // pred_fallthru
          _
        // Predicated region
        $region65: #{transformer_forward.1} parent=43 // pred_check
          %p629 = pneg %p198
        $region66: #{transformer_forward.1} parent=43 // pred_check_branch
          %631 = sbr.rel (%p629) target = $region68
        $region67: #{transformer_forward.1} parent=43 // pred_region
          %s632 = sand.u32 %s48, 1
          %s633 = scalar_lea.sflag [#allocation16], %s632
          %s634 = sand.u32 %s188, 1
          %s635 = scalar_lea.vmem [#allocation15], %s634
          %s637 = ssub.s32 16, 16
          %638 = vsyncadd %s633, %s637
          %s639 = smul.addr %s48, 16
          %s640 = scalar_lea.hbm %s7, %s639
          %s642 = sshll.u32 %s635, 4
          %s643 = int_to_ptr.vmem [resolvable:$true] %s642
          %645 = dma.hbm_to_vmem [thread:$0]  %s640, 16, %s643, %s633
        $region68: #{transformer_forward.1} parent=43 // pred_fallthru
          _
        // Predicated region
        $region69: #{transformer_forward.1} parent=43 // pred_check
          %p646 = pneg %p224
        $region70: #{transformer_forward.1} parent=43 // pred_check_branch
          %648 = sbr.rel (%p646) target = $region72
        $region71: #{transformer_forward.1} parent=43 // pred_region
          %s649 = sand.u32 %s48, 1
          %s650 = scalar_lea.sflag [#allocation16], %s649
          %s651 = sand.u32 %s214, 1
          %s652 = smul.addr %s651, 128
          %s653 = scalar_lea.vmem [#allocation17], %s652
          %s655 = ssub.s32 2048, 2048
          %656 = vsyncadd %s650, %s655
          %s657 = smul.addr %s48, 32
          %s658 = smul.addr %s657, 64
          %s659 = scalar_lea.hbm %s8, %s658
          %s660 = sshll.u32 %s653, 4
          %s661 = int_to_ptr.vmem [resolvable:$true] %s660
          %666 = dma.hbm_to_vmem [thread:$0]  %s659, 2048, %s661, %s650, 128, 128, 8
        $region72: #{transformer_forward.1} parent=43 // pred_fallthru
          _
        // Predicated region
        $region73: #{transformer_forward.1} parent=43 // pred_check
          %p667 = pneg %p250
        $region74: #{transformer_forward.1} parent=43 // pred_check_branch
          %669 = sbr.rel (%p667) target = $region76
        $region75: #{transformer_forward.1} parent=43 // pred_region
          %s670 = sand.u32 %s48, 1
          %s671 = scalar_lea.sflag [#allocation19], %s670
          %s672 = sand.u32 %s240, 1
          %s673 = smul.addr %s672, 128
          %s674 = scalar_lea.vmem [#allocation18], %s673
          %s676 = ssub.s32 2048, 2048
          %677 = vsyncadd %s671, %s676
          %s678 = smul.addr %s48, 32
          %s679 = smul.addr %s678, 64
          %s680 = scalar_lea.hbm %s9, %s679
          %s681 = sshll.u32 %s674, 4
          %s682 = int_to_ptr.vmem [resolvable:$true] %s681
          %687 = dma.hbm_to_vmem [thread:$0]  %s680, 2048, %s682, %s671, 64, 64, 4
        $region76: #{transformer_forward.1} parent=43 // pred_fallthru
          _
        // Predicated region
        $region77: #{transformer_forward.1} parent=43 // pred_check
          %p688 = pneg %p276
        $region78: #{transformer_forward.1} parent=43 // pred_check_branch
          %690 = sbr.rel (%p688) target = $region80
        $region79: #{transformer_forward.1} parent=43 // pred_region
          %s691 = sand.u32 %s48, 1
          %s692 = scalar_lea.sflag [#allocation19], %s691
          %s693 = sand.u32 %s266, 1
          %s694 = smul.addr %s693, 128
          %s695 = scalar_lea.vmem [#allocation20], %s694
          %s697 = ssub.s32 2048, 2048
          %698 = vsyncadd %s692, %s697
          %s699 = smul.addr %s48, 32
          %s700 = smul.addr %s699, 64
          %s701 = scalar_lea.hbm %s10, %s700
          %s702 = sshll.u32 %s695, 4
          %s703 = int_to_ptr.vmem [resolvable:$true] %s702
          %708 = dma.hbm_to_vmem [thread:$0]  %s701, 2048, %s703, %s692, 128, 128, 8
        $region80: #{transformer_forward.1} parent=43 // pred_fallthru
          _
      $region44: #{transformer_forward.1} parent=5 // pred_fallthru
        _
      %p709 = scmp.le.s32.totalorder 1, %s48
      %p710 = scmp.lt.s32.totalorder %s48, 3
      %p711 = pnand %p709, %p710
      %p712 = pneg %p711
      // Predicated region
      $region81: #{transformer_forward.1} parent=5 // pred_check
        _
      $region82: #{transformer_forward.1} parent=5 // pred_check_branch
        %714 = sbr.rel (%p711) target = $region84
      $region83: #{transformer_forward.1} parent=5 // pred_region
        %s715 = ssub.s32 %s48, 1
        %s716 = sand.u32 %s61, 1
        %s717 = scalar_lea.sflag [#allocation7], %s716
        %s718 = sand.u32 %s61, 1
        %s719 = scalar_lea.vmem [#allocation6], %s718
        // Predicated region
        $region85: #{transformer_forward.1} parent=83 // pred_check
          %p720 = pneg %p74
        $region86: #{transformer_forward.1} parent=83 // pred_check_branch
          %722 = sbr.rel (%p720) target = $region88
        $region87: #{transformer_forward.1} parent=83 // pred_region
          %723 = dma.done %s717, 16
        $region88: #{transformer_forward.1} parent=83 // pred_fallthru
          _
        %s724 = sand.u32 %s53, 1
        %s725 = scalar_lea.sflag [#allocation10], %s724
        %s726 = sand.u32 %s87, 1
        %s727 = smul.addr %s726, 64
        %s728 = scalar_lea.vmem [#allocation9], %s727
        // Predicated region
        $region89: #{transformer_forward.1} parent=83 // pred_check
          %p729 = pneg %p100
        $region90: #{transformer_forward.1} parent=83 // pred_check_branch
          %731 = sbr.rel (%p729) target = $region92
        $region91: #{transformer_forward.1} parent=83 // pred_region
          %732 = dma.done %s725, 1024
        $region92: #{transformer_forward.1} parent=83 // pred_fallthru
          _
        %s733 = sand.u32 %s53, 1
        %s734 = scalar_lea.sflag [#allocation10], %s733
        %s735 = sand.u32 %s113, 1
        %s736 = smul.addr %s735, 64
        %s737 = scalar_lea.vmem [#allocation11], %s736
        // Predicated region
        $region93: #{transformer_forward.1} parent=83 // pred_check
          %p738 = pneg %p126
        $region94: #{transformer_forward.1} parent=83 // pred_check_branch
          %740 = sbr.rel (%p738) target = $region96
        $region95: #{transformer_forward.1} parent=83 // pred_region
          %741 = dma.done %s734, 1024
        $region96: #{transformer_forward.1} parent=83 // pred_fallthru
          _
        %s742 = sand.u32 %s53, 1
        %s743 = scalar_lea.sflag [#allocation13], %s742
        %s744 = sand.u32 %s139, 1
        %s745 = smul.addr %s744, 64
        %s746 = scalar_lea.vmem [#allocation12], %s745
        // Predicated region
        $region97: #{transformer_forward.1} parent=83 // pred_check
          %p747 = pneg %p152
        $region98: #{transformer_forward.1} parent=83 // pred_check_branch
          %749 = sbr.rel (%p747) target = $region100
        $region99: #{transformer_forward.1} parent=83 // pred_region
          %750 = dma.done %s743, 1024
        $region100: #{transformer_forward.1} parent=83 // pred_fallthru
          _
        %s751 = sand.u32 %s53, 1
        %s752 = scalar_lea.sflag [#allocation13], %s751
        %s753 = sand.u32 %s165, 1
        %s754 = smul.addr %s753, 64
        %s755 = scalar_lea.vmem [#allocation14], %s754
        // Predicated region
        $region101: #{transformer_forward.1} parent=83 // pred_check
          %p756 = pneg %p178
        $region102: #{transformer_forward.1} parent=83 // pred_check_branch
          %758 = sbr.rel (%p756) target = $region104
        $region103: #{transformer_forward.1} parent=83 // pred_region
          %759 = dma.done %s752, 1024
        $region104: #{transformer_forward.1} parent=83 // pred_fallthru
          _
        %s760 = sand.u32 %s53, 1
        %s761 = scalar_lea.sflag [#allocation16], %s760
        %s762 = sand.u32 %s191, 1
        %s763 = scalar_lea.vmem [#allocation15], %s762
        // Predicated region
        $region105: #{transformer_forward.1} parent=83 // pred_check
          %p764 = pneg %p204
        $region106: #{transformer_forward.1} parent=83 // pred_check_branch
          %766 = sbr.rel (%p764) target = $region108
        $region107: #{transformer_forward.1} parent=83 // pred_region
          %767 = dma.done %s761, 16
        $region108: #{transformer_forward.1} parent=83 // pred_fallthru
          _
        %s768 = sand.u32 %s53, 1
        %s769 = scalar_lea.sflag [#allocation16], %s768
        %s770 = sand.u32 %s217, 1
        %s771 = smul.addr %s770, 128
        %s772 = scalar_lea.vmem [#allocation17], %s771
        // Predicated region
        $region109: #{transformer_forward.1} parent=83 // pred_check
          %p773 = pneg %p230
        $region110: #{transformer_forward.1} parent=83 // pred_check_branch
          %775 = sbr.rel (%p773) target = $region112
        $region111: #{transformer_forward.1} parent=83 // pred_region
          %776 = dma.done %s769, 2048
        $region112: #{transformer_forward.1} parent=83 // pred_fallthru
          _
        %s777 = sand.u32 %s53, 1
        %s778 = scalar_lea.sflag [#allocation19], %s777
        %s779 = sand.u32 %s243, 1
        %s780 = smul.addr %s779, 128
        %s781 = scalar_lea.vmem [#allocation18], %s780
        // Predicated region
        $region113: #{transformer_forward.1} parent=83 // pred_check
          %p782 = pneg %p256
        $region114: #{transformer_forward.1} parent=83 // pred_check_branch
          %784 = sbr.rel (%p782) target = $region116
        $region115: #{transformer_forward.1} parent=83 // pred_region
          %785 = dma.done %s778, 2048
        $region116: #{transformer_forward.1} parent=83 // pred_fallthru
          _
        %s786 = sand.u32 %s53, 1
        %s787 = scalar_lea.sflag [#allocation19], %s786
        %s788 = sand.u32 %s269, 1
        %s789 = smul.addr %s788, 128
        %s790 = scalar_lea.vmem [#allocation20], %s789
        // Predicated region
        $region117: #{transformer_forward.1} parent=83 // pred_check
          %p791 = pneg %p282
        $region118: #{transformer_forward.1} parent=83 // pred_check_branch
          %793 = sbr.rel (%p791) target = $region120
        $region119: #{transformer_forward.1} parent=83 // pred_region
          %794 = dma.done %s787, 2048
        $region120: #{transformer_forward.1} parent=83 // pred_fallthru
          _
        // Predicated region
        $region121: #{transformer_forward.1} parent=83 // pred_check
          %p795 = pneg %p345
        $region122: #{transformer_forward.1} parent=83 // pred_check_branch
          %797 = sbr.rel (%p795) target = $region124
        $region123: #{transformer_forward.1} parent=83 // pred_region
          %798 = dma.done [#allocation22], 256
        $region124: #{transformer_forward.1} parent=83 // pred_fallthru
          _
        // Predicated region
        $region125: #{transformer_forward.1} parent=83 // pred_check
          %p799 = pneg %p387
        $region126: #{transformer_forward.1} parent=83 // pred_check_branch
          %801 = sbr.rel (%p799) target = $region128
        $region127: #{transformer_forward.1} parent=83 // pred_region
          %802 = dma.done [#allocation22], 2048
        $region128: #{transformer_forward.1} parent=83 // pred_fallthru
          _
        // Predicated region
        $region129: #{transformer_forward.1} parent=83 // pred_check
          %p803 = pneg %p408
        $region130: #{transformer_forward.1} parent=83 // pred_check_branch
          %805 = sbr.rel (%p803) target = $region132
        $region131: #{transformer_forward.1} parent=83 // pred_region
          %806 = dma.done [#allocation25], 16
        $region132: #{transformer_forward.1} parent=83 // pred_fallthru
          _
        // Predicated region
        $region133: #{transformer_forward.1} parent=83 // pred_check
          %p807 = pneg %p429
        $region134: #{transformer_forward.1} parent=83 // pred_check_branch
          %809 = sbr.rel (%p807) target = $region136
        $region135: #{transformer_forward.1} parent=83 // pred_region
          %810 = dma.done [#allocation25], 2048
        $region136: #{transformer_forward.1} parent=83 // pred_fallthru
          _
        %s811 = sand.u32 %s61, 1
        %s812 = scalar_lea.sflag [#allocation7], %s811
        %s813 = sand.u32 %s61, 1
        %s814 = scalar_lea.vmem [#allocation6], %s813
        %p815 = pneg %p74
        %p816 = pneg %p71
        %s817 = sand.u32 %s53, 1
        %s818 = scalar_lea.sflag [#allocation10], %s817
        %s819 = sand.u32 %s87, 1
        %s820 = smul.addr %s819, 64
        %s821 = scalar_lea.vmem [#allocation9], %s820
        %p822 = pneg %p100
        %p823 = pneg %p97
        %s824 = sand.u32 %s53, 1
        %s825 = scalar_lea.sflag [#allocation10], %s824
        %s826 = sand.u32 %s113, 1
        %s827 = smul.addr %s826, 64
        %s828 = scalar_lea.vmem [#allocation11], %s827
        %p829 = pneg %p126
        %p830 = pneg %p123
        %s831 = sand.u32 %s53, 1
        %s832 = scalar_lea.sflag [#allocation13], %s831
        %s833 = sand.u32 %s139, 1
        %s834 = smul.addr %s833, 64
        %s835 = scalar_lea.vmem [#allocation12], %s834
        %p836 = pneg %p152
        %p837 = pneg %p149
        %s838 = sand.u32 %s53, 1
        %s839 = scalar_lea.sflag [#allocation13], %s838
        %s840 = sand.u32 %s165, 1
        %s841 = smul.addr %s840, 64
        %s842 = scalar_lea.vmem [#allocation14], %s841
        %p843 = pneg %p178
        %p844 = pneg %p175
        %s845 = sand.u32 %s53, 1
        %s846 = scalar_lea.sflag [#allocation16], %s845
        %s847 = sand.u32 %s191, 1
        %s848 = scalar_lea.vmem [#allocation15], %s847
        %p849 = pneg %p204
        %p850 = pneg %p201
        %s851 = sand.u32 %s53, 1
        %s852 = scalar_lea.sflag [#allocation16], %s851
        %s853 = sand.u32 %s217, 1
        %s854 = smul.addr %s853, 128
        %s855 = scalar_lea.vmem [#allocation17], %s854
        %p856 = pneg %p230
        %p857 = pneg %p227
        %s858 = sand.u32 %s53, 1
        %s859 = scalar_lea.sflag [#allocation19], %s858
        %s860 = sand.u32 %s243, 1
        %s861 = smul.addr %s860, 128
        %s862 = scalar_lea.vmem [#allocation18], %s861
        %p863 = pneg %p256
        %p864 = pneg %p253
        %s865 = sand.u32 %s53, 1
        %s866 = scalar_lea.sflag [#allocation19], %s865
        %s867 = sand.u32 %s269, 1
        %s868 = smul.addr %s867, 128
        %s869 = scalar_lea.vmem [#allocation20], %s868
        %p870 = pneg %p282
        %p871 = pneg %p279
        %p872 = pneg %p303
        %p873 = pneg %p300
        %p874 = pneg %p324
        %p875 = pneg %p321
        %p876 = pneg %p345
        %p877 = pneg %p342
        %p878 = pneg %p366
        %p879 = pneg %p363
        %p880 = pneg %p387
        %p881 = pneg %p384
        %p882 = pneg %p408
        %p883 = pneg %p405
        %p884 = pneg %p429
        %p885 = pneg %p426
        %p886 = pneg %p450
        %p887 = pneg %p447
        %p889 = scmp.eq.s32.totalorder %s53, 0
        // Predicated region
        $region137: #{transformer_forward.1} parent=83 // pred_check
          %p890 = pneg %p889
        $region138: #{transformer_forward.1} parent=83 // pred_check_branch
          %892 = sbr.rel (%p890) target = $region140
        $region139: #{transformer_forward.1} parent=83 // pred_region
          %s893 = sld [smem:[#allocation5]]
          %s894 = smul.addr %s893, 16
          %s895 = scalar_lea.hbm %s1, %s894
          // Predicated region
          $region141: #{transformer_forward.1} parent=139 // pred_check
            _
          $region142: #{transformer_forward.1} parent=139 // pred_check_branch
            %897 = sbr.rel target = $region144
          $region143: #{transformer_forward.1} parent=139 // pred_region
            %898 = sst [smem:[#allocation30]] [#allocation29]
            %899 = sst [smem:[#allocation31]] [#allocation28]
          $region144: #{transformer_forward.1} parent=139 // pred_fallthru
            _
          %901 = shalt.err (0)
          %s903 = sshll.u32 [#allocation2], 4
          %s904 = int_to_ptr.vmem [resolvable:$true] %s903
          %906 = dma.hbm_to_vmem [thread:$0]  %s895, 16, %s904, [#allocation3]
          %s907 = sld [smem:[#allocation5 + $0x1]]
          %s908 = smul.addr %s907, 16
          %s909 = scalar_lea.hbm %s1, %s908
          %s910 = scalar_lea.vmem [#allocation2], 1
          %s911 = scalar_lea.sflag [#allocation3], 1
          // Predicated region
          $region145: #{transformer_forward.1} parent=139 // pred_check
            _
          $region146: #{transformer_forward.1} parent=139 // pred_check_branch
            %913 = sbr.rel target = $region148
          $region147: #{transformer_forward.1} parent=139 // pred_region
            %914 = sst [smem:[#allocation30]] [#allocation33]
            %915 = sst [smem:[#allocation31]] [#allocation32]
          $region148: #{transformer_forward.1} parent=139 // pred_fallthru
            _
          %917 = shalt.err (0)
          %s919 = sshll.u32 %s910, 4
          %s920 = int_to_ptr.vmem [resolvable:$true] %s919
          %922 = dma.hbm_to_vmem [thread:$0]  %s909, 16, %s920, %s911
          %s923 = sld [smem:[#allocation5 + $0x2]]
          %s924 = smul.addr %s923, 16
          %s925 = scalar_lea.hbm %s1, %s924
          %s926 = scalar_lea.vmem [#allocation2], 2
          %s927 = scalar_lea.sflag [#allocation3], 2
          // Predicated region
          $region149: #{transformer_forward.1} parent=139 // pred_check
            _
          $region150: #{transformer_forward.1} parent=139 // pred_check_branch
            %929 = sbr.rel target = $region152
          $region151: #{transformer_forward.1} parent=139 // pred_region
            %930 = sst [smem:[#allocation30]] [#allocation35]
            %931 = sst [smem:[#allocation31]] [#allocation34]
          $region152: #{transformer_forward.1} parent=139 // pred_fallthru
            _
          %933 = shalt.err (0)
          %s935 = sshll.u32 %s926, 4
          %s936 = int_to_ptr.vmem [resolvable:$true] %s935
          %938 = dma.hbm_to_vmem [thread:$0]  %s925, 16, %s936, %s927
          %s939 = sld [smem:[#allocation5 + $0x3]]
          %s940 = smul.addr %s939, 16
          %s941 = scalar_lea.hbm %s1, %s940
          %s942 = scalar_lea.vmem [#allocation2], 3
          %s943 = scalar_lea.sflag [#allocation3], 3
          // Predicated region
          $region153: #{transformer_forward.1} parent=139 // pred_check
            _
          $region154: #{transformer_forward.1} parent=139 // pred_check_branch
            %945 = sbr.rel target = $region156
          $region155: #{transformer_forward.1} parent=139 // pred_region
            %946 = sst [smem:[#allocation30]] [#allocation37]
            %947 = sst [smem:[#allocation31]] [#allocation36]
          $region156: #{transformer_forward.1} parent=139 // pred_fallthru
            _
          %949 = shalt.err (0)
          %s951 = sshll.u32 %s942, 4
          %s952 = int_to_ptr.vmem [resolvable:$true] %s951
          %954 = dma.hbm_to_vmem [thread:$0]  %s941, 16, %s952, %s943
          %s955 = sld [smem:[#allocation5 + $0x4]]
          %s956 = smul.addr %s955, 16
          %s957 = scalar_lea.hbm %s1, %s956
          %s958 = scalar_lea.vmem [#allocation2], 4
          %s959 = scalar_lea.sflag [#allocation3], 4
          // Predicated region
          $region157: #{transformer_forward.1} parent=139 // pred_check
            _
          $region158: #{transformer_forward.1} parent=139 // pred_check_branch
            %961 = sbr.rel target = $region160
          $region159: #{transformer_forward.1} parent=139 // pred_region
            %962 = sst [smem:[#allocation30]] [#allocation39]
            %963 = sst [smem:[#allocation31]] [#allocation38]
          $region160: #{transformer_forward.1} parent=139 // pred_fallthru
            _
          %965 = shalt.err (0)
          %s967 = sshll.u32 %s958, 4
          %s968 = int_to_ptr.vmem [resolvable:$true] %s967
          %970 = dma.hbm_to_vmem [thread:$0]  %s957, 16, %s968, %s959
          %s971 = sld [smem:[#allocation5 + $0x5]]
          %s972 = smul.addr %s971, 16
          %s973 = scalar_lea.hbm %s1, %s972
          %s974 = scalar_lea.vmem [#allocation2], 5
          %s975 = scalar_lea.sflag [#allocation3], 5
          // Predicated region
          $region161: #{transformer_forward.1} parent=139 // pred_check
            _
          $region162: #{transformer_forward.1} parent=139 // pred_check_branch
            %977 = sbr.rel target = $region164
          $region163: #{transformer_forward.1} parent=139 // pred_region
            %978 = sst [smem:[#allocation30]] [#allocation41]
            %979 = sst [smem:[#allocation31]] [#allocation40]
          $region164: #{transformer_forward.1} parent=139 // pred_fallthru
            _
          %981 = shalt.err (0)
          %s983 = sshll.u32 %s974, 4
          %s984 = int_to_ptr.vmem [resolvable:$true] %s983
          %986 = dma.hbm_to_vmem [thread:$0]  %s973, 16, %s984, %s975
          %s987 = sld [smem:[#allocation5 + $0x6]]
          %s988 = smul.addr %s987, 16
          %s989 = scalar_lea.hbm %s1, %s988
          %s990 = scalar_lea.vmem [#allocation2], 6
          %s991 = scalar_lea.sflag [#allocation3], 6
          // Predicated region
          $region165: #{transformer_forward.1} parent=139 // pred_check
            _
          $region166: #{transformer_forward.1} parent=139 // pred_check_branch
            %993 = sbr.rel target = $region168
          $region167: #{transformer_forward.1} parent=139 // pred_region
            %994 = sst [smem:[#allocation30]] [#allocation43]
            %995 = sst [smem:[#allocation31]] [#allocation42]
          $region168: #{transformer_forward.1} parent=139 // pred_fallthru
            _
          %997 = shalt.err (0)
          %s999 = sshll.u32 %s990, 4
          %s1000 = int_to_ptr.vmem [resolvable:$true] %s999
          %1002 = dma.hbm_to_vmem [thread:$0]  %s989, 16, %s1000, %s991
          %s1003 = sld [smem:[#allocation5 + $0x7]]
          %s1004 = smul.addr %s1003, 16
          %s1005 = scalar_lea.hbm %s1, %s1004
          %s1006 = scalar_lea.vmem [#allocation2], 7
          %s1007 = scalar_lea.sflag [#allocation3], 7
          // Predicated region
          $region169: #{transformer_forward.1} parent=139 // pred_check
            _
          $region170: #{transformer_forward.1} parent=139 // pred_check_branch
            %1009 = sbr.rel target = $region172
          $region171: #{transformer_forward.1} parent=139 // pred_region
            %1010 = sst [smem:[#allocation30]] [#allocation45]
            %1011 = sst [smem:[#allocation31]] [#allocation44]
          $region172: #{transformer_forward.1} parent=139 // pred_fallthru
            _
          %1013 = shalt.err (0)
          %s1015 = sshll.u32 %s1006, 4
          %s1016 = int_to_ptr.vmem [resolvable:$true] %s1015
          %1018 = dma.hbm_to_vmem [thread:$0]  %s1005, 16, %s1016, %s1007
          %s1019 = sld [smem:[#allocation5 + $0x8]]
          %s1020 = smul.addr %s1019, 16
          %s1021 = scalar_lea.hbm %s1, %s1020
          %s1022 = scalar_lea.vmem [#allocation2], 8
          %s1023 = scalar_lea.sflag [#allocation3], 8
          // Predicated region
          $region173: #{transformer_forward.1} parent=139 // pred_check
            _
          $region174: #{transformer_forward.1} parent=139 // pred_check_branch
            %1025 = sbr.rel target = $region176
          $region175: #{transformer_forward.1} parent=139 // pred_region
            %1026 = sst [smem:[#allocation30]] [#allocation47]
            %1027 = sst [smem:[#allocation31]] [#allocation46]
          $region176: #{transformer_forward.1} parent=139 // pred_fallthru
            _
          %1029 = shalt.err (0)
          %s1031 = sshll.u32 %s1022, 4
          %s1032 = int_to_ptr.vmem [resolvable:$true] %s1031
          %1034 = dma.hbm_to_vmem [thread:$0]  %s1021, 16, %s1032, %s1023
          %s1035 = sld [smem:[#allocation5 + $0x9]]
          %s1036 = smul.addr %s1035, 16
          %s1037 = scalar_lea.hbm %s1, %s1036
          %s1038 = scalar_lea.vmem [#allocation2], 9
          %s1039 = scalar_lea.sflag [#allocation3], 9
          // Predicated region
          $region177: #{transformer_forward.1} parent=139 // pred_check
            _
          $region178: #{transformer_forward.1} parent=139 // pred_check_branch
            %1041 = sbr.rel target = $region180
          $region179: #{transformer_forward.1} parent=139 // pred_region
            %1042 = sst [smem:[#allocation30]] [#allocation49]
            %1043 = sst [smem:[#allocation31]] [#allocation48]
          $region180: #{transformer_forward.1} parent=139 // pred_fallthru
            _
          %1045 = shalt.err (0)
          %s1047 = sshll.u32 %s1038, 4
          %s1048 = int_to_ptr.vmem [resolvable:$true] %s1047
          %1050 = dma.hbm_to_vmem [thread:$0]  %s1037, 16, %s1048, %s1039
          %s1051 = sld [smem:[#allocation5 + $0xa]]
          %s1052 = smul.addr %s1051, 16
          %s1053 = scalar_lea.hbm %s1, %s1052
          %s1054 = scalar_lea.vmem [#allocation2], 10
          %s1055 = scalar_lea.sflag [#allocation3], 10
          // Predicated region
          $region181: #{transformer_forward.1} parent=139 // pred_check
            _
          $region182: #{transformer_forward.1} parent=139 // pred_check_branch
            %1057 = sbr.rel target = $region184
          $region183: #{transformer_forward.1} parent=139 // pred_region
            %1058 = sst [smem:[#allocation30]] [#allocation51]
            %1059 = sst [smem:[#allocation31]] [#allocation50]
          $region184: #{transformer_forward.1} parent=139 // pred_fallthru
            _
          %1061 = shalt.err (0)
          %s1063 = sshll.u32 %s1054, 4
          %s1064 = int_to_ptr.vmem [resolvable:$true] %s1063
          %1066 = dma.hbm_to_vmem [thread:$0]  %s1053, 16, %s1064, %s1055
          %s1067 = sld [smem:[#allocation5 + $0xb]]
          %s1068 = smul.addr %s1067, 16
          %s1069 = scalar_lea.hbm %s1, %s1068
          %s1070 = scalar_lea.vmem [#allocation2], 11
          %s1071 = scalar_lea.sflag [#allocation3], 11
          // Predicated region
          $region185: #{transformer_forward.1} parent=139 // pred_check
            _
          $region186: #{transformer_forward.1} parent=139 // pred_check_branch
            %1073 = sbr.rel target = $region188
          $region187: #{transformer_forward.1} parent=139 // pred_region
            %1074 = sst [smem:[#allocation30]] [#allocation53]
            %1075 = sst [smem:[#allocation31]] [#allocation52]
          $region188: #{transformer_forward.1} parent=139 // pred_fallthru
            _
          %1077 = shalt.err (0)
          %s1079 = sshll.u32 %s1070, 4
          %s1080 = int_to_ptr.vmem [resolvable:$true] %s1079
          %1082 = dma.hbm_to_vmem [thread:$0]  %s1069, 16, %s1080, %s1071
          %s1083 = sld [smem:[#allocation5 + $0xc]]
          %s1084 = smul.addr %s1083, 16
          %s1085 = scalar_lea.hbm %s1, %s1084
          %s1086 = scalar_lea.vmem [#allocation2], 12
          %s1087 = scalar_lea.sflag [#allocation3], 12
          // Predicated region
          $region189: #{transformer_forward.1} parent=139 // pred_check
            _
          $region190: #{transformer_forward.1} parent=139 // pred_check_branch
            %1089 = sbr.rel target = $region192
          $region191: #{transformer_forward.1} parent=139 // pred_region
            %1090 = sst [smem:[#allocation30]] [#allocation55]
            %1091 = sst [smem:[#allocation31]] [#allocation54]
          $region192: #{transformer_forward.1} parent=139 // pred_fallthru
            _
          %1093 = shalt.err (0)
          %s1095 = sshll.u32 %s1086, 4
          %s1096 = int_to_ptr.vmem [resolvable:$true] %s1095
          %1098 = dma.hbm_to_vmem [thread:$0]  %s1085, 16, %s1096, %s1087
          %s1099 = sld [smem:[#allocation5 + $0xd]]
          %s1100 = smul.addr %s1099, 16
          %s1101 = scalar_lea.hbm %s1, %s1100
          %s1102 = scalar_lea.vmem [#allocation2], 13
          %s1103 = scalar_lea.sflag [#allocation3], 13
          // Predicated region
          $region193: #{transformer_forward.1} parent=139 // pred_check
            _
          $region194: #{transformer_forward.1} parent=139 // pred_check_branch
            %1105 = sbr.rel target = $region196
          $region195: #{transformer_forward.1} parent=139 // pred_region
            %1106 = sst [smem:[#allocation30]] [#allocation57]
            %1107 = sst [smem:[#allocation31]] [#allocation56]
          $region196: #{transformer_forward.1} parent=139 // pred_fallthru
            _
          %1109 = shalt.err (0)
          %s1111 = sshll.u32 %s1102, 4
          %s1112 = int_to_ptr.vmem [resolvable:$true] %s1111
          %1114 = dma.hbm_to_vmem [thread:$0]  %s1101, 16, %s1112, %s1103
          %s1115 = sld [smem:[#allocation5 + $0xe]]
          %s1116 = smul.addr %s1115, 16
          %s1117 = scalar_lea.hbm %s1, %s1116
          %s1118 = scalar_lea.vmem [#allocation2], 14
          %s1119 = scalar_lea.sflag [#allocation3], 14
          // Predicated region
          $region197: #{transformer_forward.1} parent=139 // pred_check
            _
          $region198: #{transformer_forward.1} parent=139 // pred_check_branch
            %1121 = sbr.rel target = $region200
          $region199: #{transformer_forward.1} parent=139 // pred_region
            %1122 = sst [smem:[#allocation30]] [#allocation59]
            %1123 = sst [smem:[#allocation31]] [#allocation58]
          $region200: #{transformer_forward.1} parent=139 // pred_fallthru
            _
          %1125 = shalt.err (0)
          %s1127 = sshll.u32 %s1118, 4
          %s1128 = int_to_ptr.vmem [resolvable:$true] %s1127
          %1130 = dma.hbm_to_vmem [thread:$0]  %s1117, 16, %s1128, %s1119
          %s1131 = sld [smem:[#allocation5 + $0xf]]
          %s1132 = smul.addr %s1131, 16
          %s1133 = scalar_lea.hbm %s1, %s1132
          %s1134 = scalar_lea.vmem [#allocation2], 15
          %s1135 = scalar_lea.sflag [#allocation3], 15
          // Predicated region
          $region201: #{transformer_forward.1} parent=139 // pred_check
            _
          $region202: #{transformer_forward.1} parent=139 // pred_check_branch
            %1137 = sbr.rel target = $region204
          $region203: #{transformer_forward.1} parent=139 // pred_region
            %1138 = sst [smem:[#allocation30]] [#allocation61]
            %1139 = sst [smem:[#allocation31]] [#allocation60]
          $region204: #{transformer_forward.1} parent=139 // pred_fallthru
            _
          %1141 = shalt.err (0)
          %s1143 = sshll.u32 %s1134, 4
          %s1144 = int_to_ptr.vmem [resolvable:$true] %s1143
          %1146 = dma.hbm_to_vmem [thread:$0]  %s1133, 16, %s1144, %s1135
          %s1147 = sld [smem:[#allocation5 + $0x10]]
          %s1148 = smul.addr %s1147, 16
          %s1149 = scalar_lea.hbm %s1, %s1148
          %s1150 = scalar_lea.vmem [#allocation2], 16
          %s1151 = scalar_lea.sflag [#allocation3], 16
          // Predicated region
          $region205: #{transformer_forward.1} parent=139 // pred_check
            _
          $region206: #{transformer_forward.1} parent=139 // pred_check_branch
            %1153 = sbr.rel target = $region208
          $region207: #{transformer_forward.1} parent=139 // pred_region
            %1154 = sst [smem:[#allocation30]] [#allocation63]
            %1155 = sst [smem:[#allocation31]] [#allocation62]
          $region208: #{transformer_forward.1} parent=139 // pred_fallthru
            _
          %1157 = shalt.err (0)
          %s1159 = sshll.u32 %s1150, 4
          %s1160 = int_to_ptr.vmem [resolvable:$true] %s1159
          %1162 = dma.hbm_to_vmem [thread:$0]  %s1149, 16, %s1160, %s1151
          %s1163 = sld [smem:[#allocation5 + $0x11]]
          %s1164 = smul.addr %s1163, 16
          %s1165 = scalar_lea.hbm %s1, %s1164
          %s1166 = scalar_lea.vmem [#allocation2], 17
          %s1167 = scalar_lea.sflag [#allocation3], 17
          // Predicated region
          $region209: #{transformer_forward.1} parent=139 // pred_check
            _
          $region210: #{transformer_forward.1} parent=139 // pred_check_branch
            %1169 = sbr.rel target = $region212
          $region211: #{transformer_forward.1} parent=139 // pred_region
            %1170 = sst [smem:[#allocation30]] [#allocation65]
            %1171 = sst [smem:[#allocation31]] [#allocation64]
          $region212: #{transformer_forward.1} parent=139 // pred_fallthru
            _
          %1173 = shalt.err (0)
          %s1175 = sshll.u32 %s1166, 4
          %s1176 = int_to_ptr.vmem [resolvable:$true] %s1175
          %1178 = dma.hbm_to_vmem [thread:$0]  %s1165, 16, %s1176, %s1167
          %s1179 = sld [smem:[#allocation5 + $0x12]]
          %s1180 = smul.addr %s1179, 16
          %s1181 = scalar_lea.hbm %s1, %s1180
          %s1182 = scalar_lea.vmem [#allocation2], 18
          %s1183 = scalar_lea.sflag [#allocation3], 18
          // Predicated region
          $region213: #{transformer_forward.1} parent=139 // pred_check
            _
          $region214: #{transformer_forward.1} parent=139 // pred_check_branch
            %1185 = sbr.rel target = $region216
          $region215: #{transformer_forward.1} parent=139 // pred_region
            %1186 = sst [smem:[#allocation30]] [#allocation67]
            %1187 = sst [smem:[#allocation31]] [#allocation66]
          $region216: #{transformer_forward.1} parent=139 // pred_fallthru
            _
          %1189 = shalt.err (0)
          %s1191 = sshll.u32 %s1182, 4
          %s1192 = int_to_ptr.vmem [resolvable:$true] %s1191
          %1194 = dma.hbm_to_vmem [thread:$0]  %s1181, 16, %s1192, %s1183
          %s1195 = sld [smem:[#allocation5 + $0x13]]
          %s1196 = smul.addr %s1195, 16
          %s1197 = scalar_lea.hbm %s1, %s1196
          %s1198 = scalar_lea.vmem [#allocation2], 19
          %s1199 = scalar_lea.sflag [#allocation3], 19
          // Predicated region
          $region217: #{transformer_forward.1} parent=139 // pred_check
            _
          $region218: #{transformer_forward.1} parent=139 // pred_check_branch
            %1201 = sbr.rel target = $region220
          $region219: #{transformer_forward.1} parent=139 // pred_region
            %1202 = sst [smem:[#allocation30]] [#allocation69]
            %1203 = sst [smem:[#allocation31]] [#allocation68]
          $region220: #{transformer_forward.1} parent=139 // pred_fallthru
            _
          %1205 = shalt.err (0)
          %s1207 = sshll.u32 %s1198, 4
          %s1208 = int_to_ptr.vmem [resolvable:$true] %s1207
          %1210 = dma.hbm_to_vmem [thread:$0]  %s1197, 16, %s1208, %s1199
          %s1211 = sld [smem:[#allocation5 + $0x14]]
          %s1212 = smul.addr %s1211, 16
          %s1213 = scalar_lea.hbm %s1, %s1212
          %s1214 = scalar_lea.vmem [#allocation2], 20
          %s1215 = scalar_lea.sflag [#allocation3], 20
          // Predicated region
          $region221: #{transformer_forward.1} parent=139 // pred_check
            _
          $region222: #{transformer_forward.1} parent=139 // pred_check_branch
            %1217 = sbr.rel target = $region224
          $region223: #{transformer_forward.1} parent=139 // pred_region
            %1218 = sst [smem:[#allocation30]] [#allocation71]
            %1219 = sst [smem:[#allocation31]] [#allocation70]
          $region224: #{transformer_forward.1} parent=139 // pred_fallthru
            _
          %1221 = shalt.err (0)
          %s1223 = sshll.u32 %s1214, 4
          %s1224 = int_to_ptr.vmem [resolvable:$true] %s1223
          %1226 = dma.hbm_to_vmem [thread:$0]  %s1213, 16, %s1224, %s1215
          %s1227 = sld [smem:[#allocation5 + $0x15]]
          %s1228 = smul.addr %s1227, 16
          %s1229 = scalar_lea.hbm %s1, %s1228
          %s1230 = scalar_lea.vmem [#allocation2], 21
          %s1231 = scalar_lea.sflag [#allocation3], 21
          // Predicated region
          $region225: #{transformer_forward.1} parent=139 // pred_check
            _
          $region226: #{transformer_forward.1} parent=139 // pred_check_branch
            %1233 = sbr.rel target = $region228
          $region227: #{transformer_forward.1} parent=139 // pred_region
            %1234 = sst [smem:[#allocation30]] [#allocation73]
            %1235 = sst [smem:[#allocation31]] [#allocation72]
          $region228: #{transformer_forward.1} parent=139 // pred_fallthru
            _
          %1237 = shalt.err (0)
          %s1239 = sshll.u32 %s1230, 4
          %s1240 = int_to_ptr.vmem [resolvable:$true] %s1239
          %1242 = dma.hbm_to_vmem [thread:$0]  %s1229, 16, %s1240, %s1231
          %s1243 = sld [smem:[#allocation5 + $0x16]]
          %s1244 = smul.addr %s1243, 16
          %s1245 = scalar_lea.hbm %s1, %s1244
          %s1246 = scalar_lea.vmem [#allocation2], 22
          %s1247 = scalar_lea.sflag [#allocation3], 22
          // Predicated region
          $region229: #{transformer_forward.1} parent=139 // pred_check
            _
          $region230: #{transformer_forward.1} parent=139 // pred_check_branch
            %1249 = sbr.rel target = $region232
          $region231: #{transformer_forward.1} parent=139 // pred_region
            %1250 = sst [smem:[#allocation30]] [#allocation75]
            %1251 = sst [smem:[#allocation31]] [#allocation74]
          $region232: #{transformer_forward.1} parent=139 // pred_fallthru
            _
          %1253 = shalt.err (0)
          %s1255 = sshll.u32 %s1246, 4
          %s1256 = int_to_ptr.vmem [resolvable:$true] %s1255
          %1258 = dma.hbm_to_vmem [thread:$0]  %s1245, 16, %s1256, %s1247
          %s1259 = sld [smem:[#allocation5 + $0x17]]
          %s1260 = smul.addr %s1259, 16
          %s1261 = scalar_lea.hbm %s1, %s1260
          %s1262 = scalar_lea.vmem [#allocation2], 23
          %s1263 = scalar_lea.sflag [#allocation3], 23
          // Predicated region
          $region233: #{transformer_forward.1} parent=139 // pred_check
            _
          $region234: #{transformer_forward.1} parent=139 // pred_check_branch
            %1265 = sbr.rel target = $region236
          $region235: #{transformer_forward.1} parent=139 // pred_region
            %1266 = sst [smem:[#allocation30]] [#allocation77]
            %1267 = sst [smem:[#allocation31]] [#allocation76]
          $region236: #{transformer_forward.1} parent=139 // pred_fallthru
            _
          %1269 = shalt.err (0)
          %s1271 = sshll.u32 %s1262, 4
          %s1272 = int_to_ptr.vmem [resolvable:$true] %s1271
          %1274 = dma.hbm_to_vmem [thread:$0]  %s1261, 16, %s1272, %s1263
          %s1275 = sld [smem:[#allocation5 + $0x18]]
          %s1276 = smul.addr %s1275, 16
          %s1277 = scalar_lea.hbm %s1, %s1276
          %s1278 = scalar_lea.vmem [#allocation2], 24
          %s1279 = scalar_lea.sflag [#allocation3], 24
          // Predicated region
          $region237: #{transformer_forward.1} parent=139 // pred_check
            _
          $region238: #{transformer_forward.1} parent=139 // pred_check_branch
            %1281 = sbr.rel target = $region240
          $region239: #{transformer_forward.1} parent=139 // pred_region
            %1282 = sst [smem:[#allocation30]] [#allocation79]
            %1283 = sst [smem:[#allocation31]] [#allocation78]
          $region240: #{transformer_forward.1} parent=139 // pred_fallthru
            _
          %1285 = shalt.err (0)
          %s1287 = sshll.u32 %s1278, 4
          %s1288 = int_to_ptr.vmem [resolvable:$true] %s1287
          %1290 = dma.hbm_to_vmem [thread:$0]  %s1277, 16, %s1288, %s1279
          %s1291 = sld [smem:[#allocation5 + $0x19]]
          %s1292 = smul.addr %s1291, 16
          %s1293 = scalar_lea.hbm %s1, %s1292
          %s1294 = scalar_lea.vmem [#allocation2], 25
          %s1295 = scalar_lea.sflag [#allocation3], 25
          // Predicated region
          $region241: #{transformer_forward.1} parent=139 // pred_check
            _
          $region242: #{transformer_forward.1} parent=139 // pred_check_branch
            %1297 = sbr.rel target = $region244
          $region243: #{transformer_forward.1} parent=139 // pred_region
            %1298 = sst [smem:[#allocation30]] [#allocation81]
            %1299 = sst [smem:[#allocation31]] [#allocation80]
          $region244: #{transformer_forward.1} parent=139 // pred_fallthru
            _
          %1301 = shalt.err (0)
          %s1303 = sshll.u32 %s1294, 4
          %s1304 = int_to_ptr.vmem [resolvable:$true] %s1303
          %1306 = dma.hbm_to_vmem [thread:$0]  %s1293, 16, %s1304, %s1295
          %s1307 = sld [smem:[#allocation5 + $0x1a]]
          %s1308 = smul.addr %s1307, 16
          %s1309 = scalar_lea.hbm %s1, %s1308
          %s1310 = scalar_lea.vmem [#allocation2], 26
          %s1311 = scalar_lea.sflag [#allocation3], 26
          // Predicated region
          $region245: #{transformer_forward.1} parent=139 // pred_check
            _
          $region246: #{transformer_forward.1} parent=139 // pred_check_branch
            %1313 = sbr.rel target = $region248
          $region247: #{transformer_forward.1} parent=139 // pred_region
            %1314 = sst [smem:[#allocation30]] [#allocation83]
            %1315 = sst [smem:[#allocation31]] [#allocation82]
          $region248: #{transformer_forward.1} parent=139 // pred_fallthru
            _
          %1317 = shalt.err (0)
          %s1319 = sshll.u32 %s1310, 4
          %s1320 = int_to_ptr.vmem [resolvable:$true] %s1319
          %1322 = dma.hbm_to_vmem [thread:$0]  %s1309, 16, %s1320, %s1311
          %s1323 = sld [smem:[#allocation5 + $0x1b]]
          %s1324 = smul.addr %s1323, 16
          %s1325 = scalar_lea.hbm %s1, %s1324
          %s1326 = scalar_lea.vmem [#allocation2], 27
          %s1327 = scalar_lea.sflag [#allocation3], 27
          // Predicated region
          $region249: #{transformer_forward.1} parent=139 // pred_check
            _
          $region250: #{transformer_forward.1} parent=139 // pred_check_branch
            %1329 = sbr.rel target = $region252
          $region251: #{transformer_forward.1} parent=139 // pred_region
            %1330 = sst [smem:[#allocation30]] [#allocation85]
            %1331 = sst [smem:[#allocation31]] [#allocation84]
          $region252: #{transformer_forward.1} parent=139 // pred_fallthru
            _
          %1333 = shalt.err (0)
          %s1335 = sshll.u32 %s1326, 4
          %s1336 = int_to_ptr.vmem [resolvable:$true] %s1335
          %1338 = dma.hbm_to_vmem [thread:$0]  %s1325, 16, %s1336, %s1327
          %s1339 = sld [smem:[#allocation5 + $0x1c]]
          %s1340 = smul.addr %s1339, 16
          %s1341 = scalar_lea.hbm %s1, %s1340
          %s1342 = scalar_lea.vmem [#allocation2], 28
          %s1343 = scalar_lea.sflag [#allocation3], 28
          // Predicated region
          $region253: #{transformer_forward.1} parent=139 // pred_check
            _
          $region254: #{transformer_forward.1} parent=139 // pred_check_branch
            %1345 = sbr.rel target = $region256
          $region255: #{transformer_forward.1} parent=139 // pred_region
            %1346 = sst [smem:[#allocation30]] [#allocation87]
            %1347 = sst [smem:[#allocation31]] [#allocation86]
          $region256: #{transformer_forward.1} parent=139 // pred_fallthru
            _
          %1349 = shalt.err (0)
          %s1351 = sshll.u32 %s1342, 4
          %s1352 = int_to_ptr.vmem [resolvable:$true] %s1351
          %1354 = dma.hbm_to_vmem [thread:$0]  %s1341, 16, %s1352, %s1343
          %s1355 = sld [smem:[#allocation5 + $0x1d]]
          %s1356 = smul.addr %s1355, 16
          %s1357 = scalar_lea.hbm %s1, %s1356
          %s1358 = scalar_lea.vmem [#allocation2], 29
          %s1359 = scalar_lea.sflag [#allocation3], 29
          // Predicated region
          $region257: #{transformer_forward.1} parent=139 // pred_check
            _
          $region258: #{transformer_forward.1} parent=139 // pred_check_branch
            %1361 = sbr.rel target = $region260
          $region259: #{transformer_forward.1} parent=139 // pred_region
            %1362 = sst [smem:[#allocation30]] [#allocation89]
            %1363 = sst [smem:[#allocation31]] [#allocation88]
          $region260: #{transformer_forward.1} parent=139 // pred_fallthru
            _
          %1365 = shalt.err (0)
          %s1367 = sshll.u32 %s1358, 4
          %s1368 = int_to_ptr.vmem [resolvable:$true] %s1367
          %1370 = dma.hbm_to_vmem [thread:$0]  %s1357, 16, %s1368, %s1359
          %s1371 = sld [smem:[#allocation5 + $0x1e]]
          %s1372 = smul.addr %s1371, 16
          %s1373 = scalar_lea.hbm %s1, %s1372
          %s1374 = scalar_lea.vmem [#allocation2], 30
          %s1375 = scalar_lea.sflag [#allocation3], 30
          // Predicated region
          $region261: #{transformer_forward.1} parent=139 // pred_check
            _
          $region262: #{transformer_forward.1} parent=139 // pred_check_branch
            %1377 = sbr.rel target = $region264
          $region263: #{transformer_forward.1} parent=139 // pred_region
            %1378 = sst [smem:[#allocation30]] [#allocation91]
            %1379 = sst [smem:[#allocation31]] [#allocation90]
          $region264: #{transformer_forward.1} parent=139 // pred_fallthru
            _
          %1381 = shalt.err (0)
          %s1383 = sshll.u32 %s1374, 4
          %s1384 = int_to_ptr.vmem [resolvable:$true] %s1383
          %1386 = dma.hbm_to_vmem [thread:$0]  %s1373, 16, %s1384, %s1375
          %s1387 = sld [smem:[#allocation5 + $0x1f]]
          %s1388 = smul.addr %s1387, 16
          %s1389 = scalar_lea.hbm %s1, %s1388
          %s1390 = scalar_lea.vmem [#allocation2], 31
          %s1391 = scalar_lea.sflag [#allocation3], 31
          // Predicated region
          $region265: #{transformer_forward.1} parent=139 // pred_check
            _
          $region266: #{transformer_forward.1} parent=139 // pred_check_branch
            %1393 = sbr.rel target = $region268
          $region267: #{transformer_forward.1} parent=139 // pred_region
            %1394 = sst [smem:[#allocation30]] [#allocation93]
            %1395 = sst [smem:[#allocation31]] [#allocation92]
          $region268: #{transformer_forward.1} parent=139 // pred_fallthru
            _
          %1397 = shalt.err (0)
          %s1399 = sshll.u32 %s1390, 4
          %s1400 = int_to_ptr.vmem [resolvable:$true] %s1399
          %1402 = dma.hbm_to_vmem [thread:$0]  %s1389, 16, %s1400, %s1391
          %s1403 = smul.u32 1, 1
          %s1404 = sshll.u32 %s1403, 4
          %1405 = dma.done [#allocation3], %s1404
          %s1406 = sshll.u32 %s1403, 4
          %1407 = dma.done %s911, %s1406
          %s1408 = sshll.u32 %s1403, 4
          %1409 = dma.done %s927, %s1408
          %s1410 = sshll.u32 %s1403, 4
          %1411 = dma.done %s943, %s1410
          %s1412 = sshll.u32 %s1403, 4
          %1413 = dma.done %s959, %s1412
          %s1414 = sshll.u32 %s1403, 4
          %1415 = dma.done %s975, %s1414
          %s1416 = sshll.u32 %s1403, 4
          %1417 = dma.done %s991, %s1416
          %s1418 = sshll.u32 %s1403, 4
          %1419 = dma.done %s1007, %s1418
          %s1420 = sshll.u32 %s1403, 4
          %1421 = dma.done %s1023, %s1420
          %s1422 = sshll.u32 %s1403, 4
          %1423 = dma.done %s1039, %s1422
          %s1424 = sshll.u32 %s1403, 4
          %1425 = dma.done %s1055, %s1424
          %s1426 = sshll.u32 %s1403, 4
          %1427 = dma.done %s1071, %s1426
          %s1428 = sshll.u32 %s1403, 4
          %1429 = dma.done %s1087, %s1428
          %s1430 = sshll.u32 %s1403, 4
          %1431 = dma.done %s1103, %s1430
          %s1432 = sshll.u32 %s1403, 4
          %1433 = dma.done %s1119, %s1432
          %s1434 = sshll.u32 %s1403, 4
          %1435 = dma.done %s1135, %s1434
          %s1436 = sshll.u32 %s1403, 4
          %1437 = dma.done %s1151, %s1436
          %s1438 = sshll.u32 %s1403, 4
          %1439 = dma.done %s1167, %s1438
          %s1440 = sshll.u32 %s1403, 4
          %1441 = dma.done %s1183, %s1440
          %s1442 = sshll.u32 %s1403, 4
          %1443 = dma.done %s1199, %s1442
          %s1444 = sshll.u32 %s1403, 4
          %1445 = dma.done %s1215, %s1444
          %s1446 = sshll.u32 %s1403, 4
          %1447 = dma.done %s1231, %s1446
          %s1448 = sshll.u32 %s1403, 4
          %1449 = dma.done %s1247, %s1448
          %s1450 = sshll.u32 %s1403, 4
          %1451 = dma.done %s1263, %s1450
          %s1452 = sshll.u32 %s1403, 4
          %1453 = dma.done %s1279, %s1452
          %s1454 = sshll.u32 %s1403, 4
          %1455 = dma.done %s1295, %s1454
          %s1456 = sshll.u32 %s1403, 4
          %1457 = dma.done %s1311, %s1456
          %s1458 = sshll.u32 %s1403, 4
          %1459 = dma.done %s1327, %s1458
          %s1460 = sshll.u32 %s1403, 4
          %1461 = dma.done %s1343, %s1460
          %s1462 = sshll.u32 %s1403, 4
          %1463 = dma.done %s1359, %s1462
          %s1464 = sshll.u32 %s1403, 4
          %1465 = dma.done %s1375, %s1464
          %s1466 = sshll.u32 %s1403, 4
          %1467 = dma.done %s1391, %s1466
        $region140: #{transformer_forward.1} parent=83 // pred_fallthru
          _
        %v1468 = vld [vmem:[#allocation2] sm:$0xff]
        %v1469 = vld [vmem:[#allocation2 + $0x8] sm:$0xff]
        %v1470 = vld [vmem:[#allocation2 + $0x10] sm:$0xff]
        %v1471 = vld [vmem:[#allocation2 + $0x18] sm:$0xff]
        %v1472 = vld [vmem:[%s719] sm:$0x1]
        %v1473 = vmul.f32 %v1468, %v1468
        %v1474 = vmul.f32 %v1469, %v1469
        %v1475 = vmul.f32 %v1470, %v1470
        %v1476 = vmul.f32 %v1471, %v1471
        %1477 = vadd.xlane.f32.xlu0 %v1473
        %v1478 = vpop.xlane.xlu0 %1477
        %1479 = vadd.xlane.f32.xlu0 %v1474
        %v1480 = vpop.xlane.xlu0 %1479
        %1481 = vadd.xlane.f32.xlu0 %v1475
        %v1482 = vpop.xlane.xlu0 %1481
        %1483 = vadd.xlane.f32.xlu0 %v1476
        %v1484 = vpop.xlane.xlu0 %1483
        %v1485 = vrcp.pop 128.0
        %v1486 = vmul.f32 %v1478, %v1485
        %v1487 = vmul.f32 %v1480, %v1485
        %v1488 = vmul.f32 %v1482, %v1485
        %v1489 = vmul.f32 %v1484, %v1485
        %v1490 = vadd.f32 %v1486, 1e-05
        %v1491 = vadd.f32 %v1487, 1e-05
        %v1492 = vadd.f32 %v1488, 1e-05
        %v1493 = vadd.f32 %v1489, 1e-05
        %v1494 = vrsqrt.pop %v1490
        %v1495 = vrsqrt.pop %v1491
        %v1496 = vrsqrt.pop %v1492
        %v1497 = vrsqrt.pop %v1493
        %v1498 = vmul.f32 %v1468, %v1494
        %v1499 = vmul.f32 %v1469, %v1495
        %v1500 = vmul.f32 %v1470, %v1496
        %v1501 = vmul.f32 %v1471, %v1497
        %v1503 = vlaneseq
        %v1504 = vshrl.u32 %v1503, 7
        %v1505 = vsub.s32 0, %v1504
        %v1506 = vrot.slane %v1472, %v1505
        %v1508 = vmul.f32 %v1498, %v1506
        %v1509 = vmul.f32 %v1499, %v1506
        %v1510 = vmul.f32 %v1500, %v1506
        %v1511 = vmul.f32 %v1501, %v1506
        %v1512 = vpack.c.bf16 %v1509, %v1508
        %v1513 = vpack.c.bf16 %v1511, %v1510
        %v1514 = vld [vmem:[%s728] sm:$0xf]
        %v1515 = vld [vmem:[%s728 + $0x4] sm:$0xf]
        %v1516 = vld [vmem:[%s728 + $0x8] sm:$0xf]
        %v1517 = vld [vmem:[%s728 + $0xc] sm:$0xf]
        %v1518 = vld [vmem:[%s728 + $0x10] sm:$0xf]
        %v1519 = vld [vmem:[%s728 + $0x14] sm:$0xf]
        %v1520 = vld [vmem:[%s728 + $0x18] sm:$0xf]
        %v1521 = vld [vmem:[%s728 + $0x1c] sm:$0xf]
        %v1522 = vld [vmem:[%s728 + $0x20] sm:$0xf]
        %v1523 = vld [vmem:[%s728 + $0x24] sm:$0xf]
        %v1524 = vld [vmem:[%s728 + $0x28] sm:$0xf]
        %v1525 = vld [vmem:[%s728 + $0x2c] sm:$0xf]
        %v1526 = vld [vmem:[%s728 + $0x30] sm:$0xf]
        %v1527 = vld [vmem:[%s728 + $0x34] sm:$0xf]
        %v1528 = vld [vmem:[%s728 + $0x38] sm:$0xf]
        %v1529 = vld [vmem:[%s728 + $0x3c] sm:$0xf]
        %v1546 = vunpack.c.l.b16 %v1514
        %v1547 = vunpack.c.l.b16 %v1515
        %v1548 = vunpack.c.l.b16 %v1516
        %v1549 = vunpack.c.l.b16 %v1517
        %v1550 = vunpack.c.l.b16 %v1518
        %v1551 = vunpack.c.l.b16 %v1519
        %v1552 = vunpack.c.l.b16 %v1520
        %v1553 = vunpack.c.l.b16 %v1521
        %v1554 = vunpack.c.l.b16 %v1522
        %v1555 = vunpack.c.l.b16 %v1523
        %v1556 = vunpack.c.l.b16 %v1524
        %v1557 = vunpack.c.l.b16 %v1525
        %v1558 = vunpack.c.l.b16 %v1526
        %v1559 = vunpack.c.l.b16 %v1527
        %v1560 = vunpack.c.l.b16 %v1528
        %v1561 = vunpack.c.l.b16 %v1529
        %v1562 = vpack.c.b16 %v1547, %v1546
        %v1563 = vpack.c.b16 %v1549, %v1548
        %v1564 = vpack.c.b16 %v1551, %v1550
        %v1565 = vpack.c.b16 %v1553, %v1552
        %v1566 = vpack.c.b16 %v1555, %v1554
        %v1567 = vpack.c.b16 %v1557, %v1556
        %v1568 = vpack.c.b16 %v1559, %v1558
        %v1569 = vpack.c.b16 %v1561, %v1560
        %1578 = vmatprep.subr.bf16.mxu0 0
        %1579 = vmatpush1.bf16.msra.mxu0 %v1562
        %1580 = vmatprep.subr.bf16.mxu0 0
        %1581 = vmatpush1.bf16.msra.mxu0 %v1563
        %1582 = vmatprep.subr.bf16.mxu0 0
        %1583 = vmatpush1.bf16.msra.mxu0 %v1564
        %1584 = vmatprep.subr.bf16.mxu0 0
        %1585 = vmatpush1.bf16.msra.mxu0 %v1565
        %1586 = vmatprep.subr.bf16.mxu0 0
        %1587 = vmatpush1.bf16.msra.mxu0 %v1566
        %1588 = vmatprep.subr.bf16.mxu0 0
        %1589 = vmatpush1.bf16.msra.mxu0 %v1567
        %1590 = vmatprep.subr.bf16.mxu0 0
        %1591 = vmatpush1.bf16.msra.mxu0 %v1568
        %1592 = vmatprep.subr.bf16.mxu0 0
        %1593 = vmatpush1.bf16.msra.mxu0 %v1569
        %1594 = vmatprep.subr.bf16.mxu0 0
        %1595 = vmatpush1.bf16.msra.mxu0 0
        %1596 = vmatprep.subr.bf16.mxu0 0
        %1597 = vmatpush1.bf16.msra.mxu0 0
        %1598 = vmatprep.subr.bf16.mxu0 0
        %1599 = vmatpush1.bf16.msra.mxu0 0
        %1600 = vmatprep.subr.bf16.mxu0 0
        %1601 = vmatpush1.bf16.msra.mxu0 0
        %1602 = vmatprep.subr.bf16.mxu0 0
        %1603 = vmatpush1.bf16.msra.mxu0 0
        %1604 = vmatprep.subr.bf16.mxu0 0
        %1605 = vmatpush1.bf16.msra.mxu0 0
        %1606 = vmatprep.subr.bf16.mxu0 0
        %1607 = vmatpush1.bf16.msra.mxu0 0
        %1608 = vmatprep.subr.bf16.mxu0 0
        %1609 = vmatpush1.bf16.msra.mxu0 0
        %1610 = vmatprep.mubr.bf16.mxu0 0
        %1611 = vmatmul.mubr.bf16.gmra.mrb[0].mxu0 %v1512
        %v1612 = vpop.f32.mrb[0].mxu0
        %v1613 = vadd.f32 0.0, %v1612
        %v1614 = vpop.f32.mrb[0].mxu0
        %v1615 = vpop.f32.mrb[0].mxu0
        %v1616 = vadd.f32 0.0, %v1615
        %v1617 = vpop.f32.mrb[0].mxu0
        %1618 = vmatprep.mubr.bf16.mxu0 0
        %1619 = vmatmul.mubr.bf16.gmra.mrb[0].mxu0 %v1513
        %v1620 = vpop.f32.mrb[0].mxu0
        %v1621 = vadd.f32 0.0, %v1620
        %v1622 = vpop.f32.mrb[0].mxu0
        %v1623 = vpop.f32.mrb[0].mxu0
        %v1624 = vadd.f32 0.0, %v1623
        %v1625 = vpop.f32.mrb[0].mxu0
        %1626 = vdwg.mxu0
        %v1627 = vld [vmem:[%s737] sm:$0xf]
        %v1628 = vld [vmem:[%s737 + $0x4] sm:$0xf]
        %v1629 = vld [vmem:[%s737 + $0x8] sm:$0xf]
        %v1630 = vld [vmem:[%s737 + $0xc] sm:$0xf]
        %v1631 = vld [vmem:[%s737 + $0x10] sm:$0xf]
        %v1632 = vld [vmem:[%s737 + $0x14] sm:$0xf]
        %v1633 = vld [vmem:[%s737 + $0x18] sm:$0xf]
        %v1634 = vld [vmem:[%s737 + $0x1c] sm:$0xf]
        %v1635 = vld [vmem:[%s737 + $0x20] sm:$0xf]
        %v1636 = vld [vmem:[%s737 + $0x24] sm:$0xf]
        %v1637 = vld [vmem:[%s737 + $0x28] sm:$0xf]
        %v1638 = vld [vmem:[%s737 + $0x2c] sm:$0xf]
        %v1639 = vld [vmem:[%s737 + $0x30] sm:$0xf]
        %v1640 = vld [vmem:[%s737 + $0x34] sm:$0xf]
        %v1641 = vld [vmem:[%s737 + $0x38] sm:$0xf]
        %v1642 = vld [vmem:[%s737 + $0x3c] sm:$0xf]
        %v1659 = vunpack.c.l.b16 %v1627
        %v1660 = vunpack.c.l.b16 %v1628
        %v1661 = vunpack.c.l.b16 %v1629
        %v1662 = vunpack.c.l.b16 %v1630
        %v1663 = vunpack.c.l.b16 %v1631
        %v1664 = vunpack.c.l.b16 %v1632
        %v1665 = vunpack.c.l.b16 %v1633
        %v1666 = vunpack.c.l.b16 %v1634
        %v1667 = vunpack.c.l.b16 %v1635
        %v1668 = vunpack.c.l.b16 %v1636
        %v1669 = vunpack.c.l.b16 %v1637
        %v1670 = vunpack.c.l.b16 %v1638
        %v1671 = vunpack.c.l.b16 %v1639
        %v1672 = vunpack.c.l.b16 %v1640
        %v1673 = vunpack.c.l.b16 %v1641
        %v1674 = vunpack.c.l.b16 %v1642
        %v1675 = vpack.c.b16 %v1660, %v1659
        %v1676 = vpack.c.b16 %v1662, %v1661
        %v1677 = vpack.c.b16 %v1664, %v1663
        %v1678 = vpack.c.b16 %v1666, %v1665
        %v1679 = vpack.c.b16 %v1668, %v1667
        %v1680 = vpack.c.b16 %v1670, %v1669
        %v1681 = vpack.c.b16 %v1672, %v1671
        %v1682 = vpack.c.b16 %v1674, %v1673
        %1691 = vmatprep.subr.bf16.mxu0 0
        %1692 = vmatpush1.bf16.msra.mxu0 %v1675
        %1693 = vmatprep.subr.bf16.mxu0 0
        %1694 = vmatpush1.bf16.msra.mxu0 %v1676
        %1695 = vmatprep.subr.bf16.mxu0 0
        %1696 = vmatpush1.bf16.msra.mxu0 %v1677
        %1697 = vmatprep.subr.bf16.mxu0 0
        %1698 = vmatpush1.bf16.msra.mxu0 %v1678
        %1699 = vmatprep.subr.bf16.mxu0 0
        %1700 = vmatpush1.bf16.msra.mxu0 %v1679
        %1701 = vmatprep.subr.bf16.mxu0 0
        %1702 = vmatpush1.bf16.msra.mxu0 %v1680
        %1703 = vmatprep.subr.bf16.mxu0 0
        %1704 = vmatpush1.bf16.msra.mxu0 %v1681
        %1705 = vmatprep.subr.bf16.mxu0 0
        %1706 = vmatpush1.bf16.msra.mxu0 %v1682
        %1707 = vmatprep.subr.bf16.mxu0 0
        %1708 = vmatpush1.bf16.msra.mxu0 0
        %1709 = vmatprep.subr.bf16.mxu0 0
        %1710 = vmatpush1.bf16.msra.mxu0 0
        %1711 = vmatprep.subr.bf16.mxu0 0
        %1712 = vmatpush1.bf16.msra.mxu0 0
        %1713 = vmatprep.subr.bf16.mxu0 0
        %1714 = vmatpush1.bf16.msra.mxu0 0
        %1715 = vmatprep.subr.bf16.mxu0 0
        %1716 = vmatpush1.bf16.msra.mxu0 0
        %1717 = vmatprep.subr.bf16.mxu0 0
        %1718 = vmatpush1.bf16.msra.mxu0 0
        %1719 = vmatprep.subr.bf16.mxu0 0
        %1720 = vmatpush1.bf16.msra.mxu0 0
        %1721 = vmatprep.subr.bf16.mxu0 0
        %1722 = vmatpush1.bf16.msra.mxu0 0
        %1723 = vmatprep.mubr.bf16.mxu0 0
        %1724 = vmatmul.mubr.bf16.gmra.mrb[0].mxu0 %v1512
        %v1725 = vpop.f32.mrb[0].mxu0
        %v1726 = vadd.f32 0.0, %v1725
        %v1727 = vpop.f32.mrb[0].mxu0
        %v1728 = vpop.f32.mrb[0].mxu0
        %v1729 = vadd.f32 0.0, %v1728
        %v1730 = vpop.f32.mrb[0].mxu0
        %1731 = vmatprep.mubr.bf16.mxu0 0
        %1732 = vmatmul.mubr.bf16.gmra.mrb[0].mxu0 %v1513
        %v1733 = vpop.f32.mrb[0].mxu0
        %v1734 = vadd.f32 0.0, %v1733
        %v1735 = vpop.f32.mrb[0].mxu0
        %v1736 = vpop.f32.mrb[0].mxu0
        %v1737 = vadd.f32 0.0, %v1736
        %v1738 = vpop.f32.mrb[0].mxu0
        %1739 = vdwg.mxu0
        %v1740 = vld [vmem:[%s746] sm:$0xf]
        %v1741 = vld [vmem:[%s746 + $0x4] sm:$0xf]
        %v1742 = vld [vmem:[%s746 + $0x8] sm:$0xf]
        %v1743 = vld [vmem:[%s746 + $0xc] sm:$0xf]
        %v1744 = vld [vmem:[%s746 + $0x10] sm:$0xf]
        %v1745 = vld [vmem:[%s746 + $0x14] sm:$0xf]
        %v1746 = vld [vmem:[%s746 + $0x18] sm:$0xf]
        %v1747 = vld [vmem:[%s746 + $0x1c] sm:$0xf]
        %v1748 = vld [vmem:[%s746 + $0x20] sm:$0xf]
        %v1749 = vld [vmem:[%s746 + $0x24] sm:$0xf]
        %v1750 = vld [vmem:[%s746 + $0x28] sm:$0xf]
        %v1751 = vld [vmem:[%s746 + $0x2c] sm:$0xf]
        %v1752 = vld [vmem:[%s746 + $0x30] sm:$0xf]
        %v1753 = vld [vmem:[%s746 + $0x34] sm:$0xf]
        %v1754 = vld [vmem:[%s746 + $0x38] sm:$0xf]
        %v1755 = vld [vmem:[%s746 + $0x3c] sm:$0xf]
        %v1772 = vunpack.c.l.b16 %v1740
        %v1773 = vunpack.c.l.b16 %v1741
        %v1774 = vunpack.c.l.b16 %v1742
        %v1775 = vunpack.c.l.b16 %v1743
        %v1776 = vunpack.c.l.b16 %v1744
        %v1777 = vunpack.c.l.b16 %v1745
        %v1778 = vunpack.c.l.b16 %v1746
        %v1779 = vunpack.c.l.b16 %v1747
        %v1780 = vunpack.c.l.b16 %v1748
        %v1781 = vunpack.c.l.b16 %v1749
        %v1782 = vunpack.c.l.b16 %v1750
        %v1783 = vunpack.c.l.b16 %v1751
        %v1784 = vunpack.c.l.b16 %v1752
        %v1785 = vunpack.c.l.b16 %v1753
        %v1786 = vunpack.c.l.b16 %v1754
        %v1787 = vunpack.c.l.b16 %v1755
        %v1788 = vpack.c.b16 %v1773, %v1772
        %v1789 = vpack.c.b16 %v1775, %v1774
        %v1790 = vpack.c.b16 %v1777, %v1776
        %v1791 = vpack.c.b16 %v1779, %v1778
        %v1792 = vpack.c.b16 %v1781, %v1780
        %v1793 = vpack.c.b16 %v1783, %v1782
        %v1794 = vpack.c.b16 %v1785, %v1784
        %v1795 = vpack.c.b16 %v1787, %v1786
        %1804 = vmatprep.subr.bf16.mxu0 0
        %1805 = vmatpush1.bf16.msra.mxu0 %v1788
        %1806 = vmatprep.subr.bf16.mxu0 0
        %1807 = vmatpush1.bf16.msra.mxu0 %v1789
        %1808 = vmatprep.subr.bf16.mxu0 0
        %1809 = vmatpush1.bf16.msra.mxu0 %v1790
        %1810 = vmatprep.subr.bf16.mxu0 0
        %1811 = vmatpush1.bf16.msra.mxu0 %v1791
        %1812 = vmatprep.subr.bf16.mxu0 0
        %1813 = vmatpush1.bf16.msra.mxu0 %v1792
        %1814 = vmatprep.subr.bf16.mxu0 0
        %1815 = vmatpush1.bf16.msra.mxu0 %v1793
        %1816 = vmatprep.subr.bf16.mxu0 0
        %1817 = vmatpush1.bf16.msra.mxu0 %v1794
        %1818 = vmatprep.subr.bf16.mxu0 0
        %1819 = vmatpush1.bf16.msra.mxu0 %v1795
        %1820 = vmatprep.subr.bf16.mxu0 0
        %1821 = vmatpush1.bf16.msra.mxu0 0
        %1822 = vmatprep.subr.bf16.mxu0 0
        %1823 = vmatpush1.bf16.msra.mxu0 0
        %1824 = vmatprep.subr.bf16.mxu0 0
        %1825 = vmatpush1.bf16.msra.mxu0 0
        %1826 = vmatprep.subr.bf16.mxu0 0
        %1827 = vmatpush1.bf16.msra.mxu0 0
        %1828 = vmatprep.subr.bf16.mxu0 0
        %1829 = vmatpush1.bf16.msra.mxu0 0
        %1830 = vmatprep.subr.bf16.mxu0 0
        %1831 = vmatpush1.bf16.msra.mxu0 0
        %1832 = vmatprep.subr.bf16.mxu0 0
        %1833 = vmatpush1.bf16.msra.mxu0 0
        %1834 = vmatprep.subr.bf16.mxu0 0
        %1835 = vmatpush1.bf16.msra.mxu0 0
        %1836 = vmatprep.mubr.bf16.mxu0 0
        %1837 = vmatmul.mubr.bf16.gmra.mrb[0].mxu0 %v1512
        %v1838 = vpop.f32.mrb[0].mxu0
        %v1839 = vadd.f32 0.0, %v1838
        %v1840 = vpop.f32.mrb[0].mxu0
        %v1841 = vpop.f32.mrb[0].mxu0
        %v1842 = vadd.f32 0.0, %v1841
        %v1843 = vpop.f32.mrb[0].mxu0
        %1844 = vmatprep.mubr.bf16.mxu0 0
        %1845 = vmatmul.mubr.bf16.gmra.mrb[0].mxu0 %v1513
        %v1846 = vpop.f32.mrb[0].mxu0
        %v1847 = vadd.f32 0.0, %v1846
        %v1848 = vpop.f32.mrb[0].mxu0
        %v1849 = vpop.f32.mrb[0].mxu0
        %v1850 = vadd.f32 0.0, %v1849
        %v1851 = vpop.f32.mrb[0].mxu0
        %1852 = vdwg.mxu0
        %v1853 = vld [vmem:[%s11] sm:$0xf]
        %v1854 = vld [vmem:[%s11 + $0x4] sm:$0xf]
        %v1855 = vld [vmem:[%s11 + $0x8] sm:$0xf]
        %v1856 = vld [vmem:[%s11 + $0xc] sm:$0xf]
        %v1857 = vunpack.c.l.bf16 %v1853
        %v1858 = vunpack.c.l.bf16 %v1854
        %v1859 = vunpack.c.l.bf16 %v1855
        %v1860 = vunpack.c.l.bf16 %v1856
        %v1861 = vld [vmem:[%s12] sm:$0xf]
        %v1862 = vld [vmem:[%s12 + $0x4] sm:$0xf]
        %v1863 = vld [vmem:[%s12 + $0x8] sm:$0xf]
        %v1864 = vld [vmem:[%s12 + $0xc] sm:$0xf]
        %v1865 = vunpack.c.l.bf16 %v1861
        %v1866 = vunpack.c.l.bf16 %v1862
        %v1867 = vunpack.c.l.bf16 %v1863
        %v1868 = vunpack.c.l.bf16 %v1864
        %v1869 = vld [vmem:[#allocation21] sm:$0xf]
        %v1870 = vld [vmem:[#allocation21 + $0x4] sm:$0xf]
        %v1871 = vld [vmem:[#allocation21 + $0x8] sm:$0xf]
        %v1872 = vld [vmem:[#allocation21 + $0xc] sm:$0xf]
        %v1873 = vunpack.c.l.bf16 %v1869
        %v1874 = vunpack.c.l.bf16 %v1870
        %v1875 = vunpack.c.l.bf16 %v1871
        %v1876 = vunpack.c.l.bf16 %v1872
        %1877 = vrot.lane.b32.xlu0 %v1613, 112
        %v1878 = vpop.permute.xlu0 %1877
        %1879 = vrot.lane.b32.xlu0 %v1616, 112
        %v1880 = vpop.permute.xlu0 %1879
        %1881 = vrot.lane.b32.xlu0 %v1621, 112
        %v1882 = vpop.permute.xlu0 %1881
        %1883 = vrot.lane.b32.xlu0 %v1624, 112
        %v1884 = vpop.permute.xlu0 %1883
        %1885 = vrot.lane.b32.xlu0 %v1613, 16
        %v1886 = vpop.permute.xlu0 %1885
        %1887 = vrot.lane.b32.xlu0 %v1616, 16
        %v1888 = vpop.permute.xlu0 %1887
        %1889 = vrot.lane.b32.xlu0 %v1621, 16
        %v1890 = vpop.permute.xlu0 %1889
        %1891 = vrot.lane.b32.xlu0 %v1624, 16
        %v1892 = vpop.permute.xlu0 %1891
        %v1893 = vmul.f32 %v1613, %v1857
        %v1894 = vmul.f32 %v1616, %v1858
        %v1895 = vmul.f32 %v1621, %v1859
        %v1896 = vmul.f32 %v1624, %v1860
        %v1897 = vmul.f32 %v1878, %v1865
        %v1898 = vmul.f32 %v1880, %v1866
        %v1899 = vmul.f32 %v1882, %v1867
        %v1900 = vmul.f32 %v1884, %v1868
        %v1901 = vadd.f32 %v1893, %v1897
        %v1902 = vadd.f32 %v1894, %v1898
        %v1903 = vadd.f32 %v1895, %v1899
        %v1904 = vadd.f32 %v1896, %v1900
        %v1905 = vmul.f32 %v1886, %v1873
        %v1906 = vmul.f32 %v1888, %v1874
        %v1907 = vmul.f32 %v1890, %v1875
        %v1908 = vmul.f32 %v1892, %v1876
        %v1909 = vadd.f32 %v1901, %v1905
        %v1910 = vadd.f32 %v1902, %v1906
        %v1911 = vadd.f32 %v1903, %v1907
        %v1912 = vadd.f32 %v1904, %v1908
        %1913 = vrot.lane.b32.xlu0 %v1726, 112
        %v1914 = vpop.permute.xlu0 %1913
        %1915 = vrot.lane.b32.xlu0 %v1729, 112
        %v1916 = vpop.permute.xlu0 %1915
        %1917 = vrot.lane.b32.xlu0 %v1734, 112
        %v1918 = vpop.permute.xlu0 %1917
        %1919 = vrot.lane.b32.xlu0 %v1737, 112
        %v1920 = vpop.permute.xlu0 %1919
        %1921 = vrot.lane.b32.xlu0 %v1726, 16
        %v1922 = vpop.permute.xlu0 %1921
        %1923 = vrot.lane.b32.xlu0 %v1729, 16
        %v1924 = vpop.permute.xlu0 %1923
        %1925 = vrot.lane.b32.xlu0 %v1734, 16
        %v1926 = vpop.permute.xlu0 %1925
        %1927 = vrot.lane.b32.xlu0 %v1737, 16
        %v1928 = vpop.permute.xlu0 %1927
        %v1929 = vmul.f32 %v1726, %v1857
        %v1930 = vmul.f32 %v1729, %v1858
        %v1931 = vmul.f32 %v1734, %v1859
        %v1932 = vmul.f32 %v1737, %v1860
        %v1933 = vmul.f32 %v1914, %v1865
        %v1934 = vmul.f32 %v1916, %v1866
        %v1935 = vmul.f32 %v1918, %v1867
        %v1936 = vmul.f32 %v1920, %v1868
        %v1937 = vadd.f32 %v1929, %v1933
        %v1938 = vadd.f32 %v1930, %v1934
        %v1939 = vadd.f32 %v1931, %v1935
        %v1940 = vadd.f32 %v1932, %v1936
        %v1941 = vmul.f32 %v1922, %v1873
        %v1942 = vmul.f32 %v1924, %v1874
        %v1943 = vmul.f32 %v1926, %v1875
        %v1944 = vmul.f32 %v1928, %v1876
        %v1945 = vadd.f32 %v1937, %v1941
        %v1946 = vadd.f32 %v1938, %v1942
        %v1947 = vadd.f32 %v1939, %v1943
        %v1948 = vadd.f32 %v1940, %v1944
        %v1949 = vld [vmem:[#allocation23] sm:$0xff]
        %v1950 = vld [vmem:[#allocation23 + $0x8] sm:$0xff]
        %v1951 = vld [vmem:[#allocation23 + $0x10] sm:$0xff]
        %v1952 = vld [vmem:[#allocation23 + $0x18] sm:$0xff]
        %v1953 = vld [vmem:[#allocation23 + $0x20] sm:$0xff]
        %v1954 = vld [vmem:[#allocation23 + $0x28] sm:$0xff]
        %v1955 = vld [vmem:[#allocation23 + $0x30] sm:$0xff]
        %v1956 = vld [vmem:[#allocation23 + $0x38] sm:$0xff]
        %v1957 = vld [vmem:[#allocation23 + $0x40] sm:$0xff]
        %v1958 = vld [vmem:[#allocation23 + $0x48] sm:$0xff]
        %v1959 = vld [vmem:[#allocation23 + $0x50] sm:$0xff]
        %v1960 = vld [vmem:[#allocation23 + $0x58] sm:$0xff]
        %v1961 = vld [vmem:[#allocation23 + $0x60] sm:$0xff]
        %v1962 = vld [vmem:[#allocation23 + $0x68] sm:$0xff]
        %v1963 = vld [vmem:[#allocation23 + $0x70] sm:$0xff]
        %v1964 = vld [vmem:[#allocation23 + $0x78] sm:$0xff]
        %v1965 = vpack.c.bf16 %v1950, %v1949
        %v1966 = vpack.c.bf16 %v1952, %v1951
        %v1967 = vpack.c.bf16 %v1954, %v1953
        %v1968 = vpack.c.bf16 %v1956, %v1955
        %v1969 = vpack.c.bf16 %v1958, %v1957
        %v1970 = vpack.c.bf16 %v1960, %v1959
        %v1971 = vpack.c.bf16 %v1962, %v1961
        %v1972 = vpack.c.bf16 %v1964, %v1963
        %v1973 = vmul.f32 %v1945, %v1949
        %v1974 = vmul.f32 %v1946, %v1950
        %v1975 = vmul.f32 %v1947, %v1951
        %v1976 = vmul.f32 %v1948, %v1952
        %v1977 = vmul.f32 %v1945, %v1953
        %v1978 = vmul.f32 %v1946, %v1954
        %v1979 = vmul.f32 %v1947, %v1955
        %v1980 = vmul.f32 %v1948, %v1956
        %v1981 = vmul.f32 %v1945, %v1957
        %v1982 = vmul.f32 %v1946, %v1958
        %v1983 = vmul.f32 %v1947, %v1959
        %v1984 = vmul.f32 %v1948, %v1960
        %v1985 = vmul.f32 %v1945, %v1961
        %v1986 = vmul.f32 %v1946, %v1962
        %v1987 = vmul.f32 %v1947, %v1963
        %v1988 = vmul.f32 %v1948, %v1964
        %v1989 = vpack.c.bf16 %v1974, %v1973
        %v1990 = vpack.c.bf16 %v1976, %v1975
        %v1991 = vpack.c.bf16 %v1978, %v1977
        %v1992 = vpack.c.bf16 %v1980, %v1979
        %v1993 = vpack.c.bf16 %v1982, %v1981
        %v1994 = vpack.c.bf16 %v1984, %v1983
        %v1995 = vpack.c.bf16 %v1986, %v1985
        %v1996 = vpack.c.bf16 %v1988, %v1987
        %v1997 = vmul.f32 %v1839, %v1949
        %v1998 = vmul.f32 %v1842, %v1950
        %v1999 = vmul.f32 %v1847, %v1951
        %v2000 = vmul.f32 %v1850, %v1952
        %v2001 = vmul.f32 %v1839, %v1953
        %v2002 = vmul.f32 %v1842, %v1954
        %v2003 = vmul.f32 %v1847, %v1955
        %v2004 = vmul.f32 %v1850, %v1956
        %v2005 = vmul.f32 %v1839, %v1957
        %v2006 = vmul.f32 %v1842, %v1958
        %v2007 = vmul.f32 %v1847, %v1959
        %v2008 = vmul.f32 %v1850, %v1960
        %v2009 = vmul.f32 %v1839, %v1961
        %v2010 = vmul.f32 %v1842, %v1962
        %v2011 = vmul.f32 %v1847, %v1963
        %v2012 = vmul.f32 %v1850, %v1964
        %v2013 = vpack.c.bf16 %v1998, %v1997
        %v2014 = vpack.c.bf16 %v2000, %v1999
        %v2015 = vpack.c.bf16 %v2002, %v2001
        %v2016 = vpack.c.bf16 %v2004, %v2003
        %v2017 = vpack.c.bf16 %v2006, %v2005
        %v2018 = vpack.c.bf16 %v2008, %v2007
        %v2019 = vpack.c.bf16 %v2010, %v2009
        %v2020 = vpack.c.bf16 %v2012, %v2011
        %v2021 = vpack.c.bf16 %v1910, %v1909
        %v2022 = vpack.c.bf16 %v1912, %v1911
        %2023 = vmatprep.subr.bf16.mxu0 0
        %2024 = vmatpush1.bf16.xpose.msra.mxu0 %v1989
        %2025 = vmatprep.subr.bf16.mxu0 0
        %2026 = vmatpush1.bf16.xpose.msra.mxu0 %v1990
        %2027 = vmatprep.subr.bf16.mxu0 0
        %2028 = vmatpush1.bf16.xpose.msra.mxu0 %v1991
        %2029 = vmatprep.subr.bf16.mxu0 0
        %2030 = vmatpush1.bf16.xpose.msra.mxu0 %v1992
        %2031 = vmatprep.subr.bf16.mxu0 0
        %2032 = vmatpush1.bf16.xpose.msra.mxu0 %v1993
        %2033 = vmatprep.subr.bf16.mxu0 0
        %2034 = vmatpush1.bf16.xpose.msra.mxu0 %v1994
        %2035 = vmatprep.subr.bf16.mxu0 0
        %2036 = vmatpush1.bf16.xpose.msra.mxu0 %v1995
        %2037 = vmatprep.subr.bf16.mxu0 0
        %2038 = vmatpush1.bf16.xpose.msra.mxu0 %v1996
        %2039 = vmatprep.subr.bf16.mxu0 0
        %2040 = vmatpush1.bf16.xpose.msra.mxu0 0
        %2041 = vmatprep.subr.bf16.mxu0 0
        %2042 = vmatpush1.bf16.xpose.msra.mxu0 0
        %2043 = vmatprep.subr.bf16.mxu0 0
        %2044 = vmatpush1.bf16.xpose.msra.mxu0 0
        %2045 = vmatprep.subr.bf16.mxu0 0
        %2046 = vmatpush1.bf16.xpose.msra.mxu0 0
        %2047 = vmatprep.subr.bf16.mxu0 0
        %2048 = vmatpush1.bf16.xpose.msra.mxu0 0
        %2049 = vmatprep.subr.bf16.mxu0 0
        %2050 = vmatpush1.bf16.xpose.msra.mxu0 0
        %2051 = vmatprep.subr.bf16.mxu0 0
        %2052 = vmatpush1.bf16.xpose.msra.mxu0 0
        %2053 = vmatprep.subr.bf16.mxu0 0
        %2054 = vmatpush1.bf16.xpose.msra.mxu0 0
        %2055 = vmatprep.mubr.bf16.mxu0 0
        %2056 = vmatmul.mubr.bf16.gmra.mrb[0].mxu0 %v2021
        %v2057 = vpop.f32.mrb[0].mxu0
        %v2058 = vadd.f32 0.0, %v2057
        %v2059 = vpop.f32.mrb[0].mxu0
        %v2060 = vpop.f32.mrb[0].mxu0
        %v2061 = vadd.f32 0.0, %v2060
        %v2062 = vpop.f32.mrb[0].mxu0
        %2063 = vmatprep.mubr.bf16.mxu0 0
        %2064 = vmatmul.mubr.bf16.gmra.mrb[0].mxu0 %v2022
        %v2065 = vpop.f32.mrb[0].mxu0
        %v2066 = vadd.f32 0.0, %v2065
        %v2067 = vpop.f32.mrb[0].mxu0
        %v2068 = vpop.f32.mrb[0].mxu0
        %v2069 = vadd.f32 0.0, %v2068
        %v2070 = vpop.f32.mrb[0].mxu0
        %2071 = vdwg.mxu0
        %v2072 = vmul.f32 %v2058, 0.17677669
        %v2073 = vmul.f32 %v2061, 0.17677669
        %v2074 = vmul.f32 %v2066, 0.17677669
        %v2075 = vmul.f32 %v2069, 0.17677669
        %v2076 = vld [vmem:[%s14] sm:$0xff]
        %v2077 = vld [vmem:[%s14 + $0x8] sm:$0xff]
        %v2078 = vld [vmem:[%s14 + $0x10] sm:$0xff]
        %v2079 = vld [vmem:[%s14 + $0x18] sm:$0xff]
        %v2080 = vadd.f32 %v2072, %v2076
        %v2081 = vadd.f32 %v2073, %v2077
        %v2082 = vadd.f32 %v2074, %v2078
        %v2083 = vadd.f32 %v2075, %v2079
        %2084 = vmax.xlane.f32.xlu0 %v2080
        %v2085 = vpop.xlane.xlu0 %2084
        %2086 = vmax.xlane.f32.xlu0 %v2081
        %v2087 = vpop.xlane.xlu0 %2086
        %2088 = vmax.xlane.f32.xlu0 %v2082
        %v2089 = vpop.xlane.xlu0 %2088
        %2090 = vmax.xlane.f32.xlu0 %v2083
        %v2091 = vpop.xlane.xlu0 %2090
        %v2092 = vsub.f32 %v2080, %v2085
        %v2093 = vsub.f32 %v2081, %v2087
        %v2094 = vsub.f32 %v2082, %v2089
        %v2095 = vsub.f32 %v2083, %v2091
        %v2096 = vmul.f32 %v2092, 1.442695
        %v2097 = vpow.pop %v2096
        %v2098 = vmul.f32 %v2093, 1.442695
        %v2099 = vpow.pop %v2098
        %v2100 = vmul.f32 %v2094, 1.442695
        %v2101 = vpow.pop %v2100
        %v2102 = vmul.f32 %v2095, 1.442695
        %v2103 = vpow.pop %v2102
        %v2104 = vpack.c.bf16 %v2099, %v2097
        %v2105 = vpack.c.bf16 %v2103, %v2101
        %2106 = vmatprep.subr.bf16.mxu0 0
        %2107 = vmatpush1.bf16.msra.mxu0 %v2013
        %2108 = vmatprep.subr.bf16.mxu0 0
        %2109 = vmatpush1.bf16.msra.mxu0 %v2014
        %2110 = vmatprep.subr.bf16.mxu0 0
        %2111 = vmatpush1.bf16.msra.mxu0 %v2015
        %2112 = vmatprep.subr.bf16.mxu0 0
        %2113 = vmatpush1.bf16.msra.mxu0 %v2016
        %2114 = vmatprep.subr.bf16.mxu0 0
        %2115 = vmatpush1.bf16.msra.mxu0 %v2017
        %2116 = vmatprep.subr.bf16.mxu0 0
        %2117 = vmatpush1.bf16.msra.mxu0 %v2018
        %2118 = vmatprep.subr.bf16.mxu0 0
        %2119 = vmatpush1.bf16.msra.mxu0 %v2019
        %2120 = vmatprep.subr.bf16.mxu0 0
        %2121 = vmatpush1.bf16.msra.mxu0 %v2020
        %2122 = vmatprep.subr.bf16.mxu0 0
        %2123 = vmatpush1.bf16.msra.mxu0 0
        %2124 = vmatprep.subr.bf16.mxu0 0
        %2125 = vmatpush1.bf16.msra.mxu0 0
        %2126 = vmatprep.subr.bf16.mxu0 0
        %2127 = vmatpush1.bf16.msra.mxu0 0
        %2128 = vmatprep.subr.bf16.mxu0 0
        %2129 = vmatpush1.bf16.msra.mxu0 0
        %2130 = vmatprep.subr.bf16.mxu0 0
        %2131 = vmatpush1.bf16.msra.mxu0 0
        %2132 = vmatprep.subr.bf16.mxu0 0
        %2133 = vmatpush1.bf16.msra.mxu0 0
        %2134 = vmatprep.subr.bf16.mxu0 0
        %2135 = vmatpush1.bf16.msra.mxu0 0
        %2136 = vmatprep.subr.bf16.mxu0 0
        %2137 = vmatpush1.bf16.msra.mxu0 0
        %2138 = vmatprep.mubr.bf16.mxu0 0
        %2139 = vmatmul.mubr.bf16.gmra.mrb[0].mxu0 %v2104
        %v2140 = vpop.f32.mrb[0].mxu0
        %v2141 = vadd.f32 0.0, %v2140
        %v2142 = vpop.f32.mrb[0].mxu0
        %v2143 = vpop.f32.mrb[0].mxu0
        %v2144 = vadd.f32 0.0, %v2143
        %v2145 = vpop.f32.mrb[0].mxu0
        %2146 = vmatprep.mubr.bf16.mxu0 0
        %2147 = vmatmul.mubr.bf16.gmra.mrb[0].mxu0 %v2105
        %v2148 = vpop.f32.mrb[0].mxu0
        %v2149 = vadd.f32 0.0, %v2148
        %v2150 = vpop.f32.mrb[0].mxu0
        %v2151 = vpop.f32.mrb[0].mxu0
        %v2152 = vadd.f32 0.0, %v2151
        %v2153 = vpop.f32.mrb[0].mxu0
        %2154 = vdwg.mxu0
        %2155 = vmatprep.subr.bf16.mxu0 0
        %2156 = vmatpush1.bf16.msra.mxu0 %v1965
        %2157 = vmatprep.subr.bf16.mxu0 0
        %2158 = vmatpush1.bf16.msra.mxu0 %v1966
        %2159 = vmatprep.subr.bf16.mxu0 0
        %2160 = vmatpush1.bf16.msra.mxu0 %v1967
        %2161 = vmatprep.subr.bf16.mxu0 0
        %2162 = vmatpush1.bf16.msra.mxu0 %v1968
        %2163 = vmatprep.subr.bf16.mxu0 0
        %2164 = vmatpush1.bf16.msra.mxu0 %v1969
        %2165 = vmatprep.subr.bf16.mxu0 0
        %2166 = vmatpush1.bf16.msra.mxu0 %v1970
        %2167 = vmatprep.subr.bf16.mxu0 0
        %2168 = vmatpush1.bf16.msra.mxu0 %v1971
        %2169 = vmatprep.subr.bf16.mxu0 0
        %2170 = vmatpush1.bf16.msra.mxu0 %v1972
        %2171 = vmatprep.subr.bf16.mxu0 0
        %2172 = vmatpush1.bf16.msra.mxu0 0
        %2173 = vmatprep.subr.bf16.mxu0 0
        %2174 = vmatpush1.bf16.msra.mxu0 0
        %2175 = vmatprep.subr.bf16.mxu0 0
        %2176 = vmatpush1.bf16.msra.mxu0 0
        %2177 = vmatprep.subr.bf16.mxu0 0
        %2178 = vmatpush1.bf16.msra.mxu0 0
        %2179 = vmatprep.subr.bf16.mxu0 0
        %2180 = vmatpush1.bf16.msra.mxu0 0
        %2181 = vmatprep.subr.bf16.mxu0 0
        %2182 = vmatpush1.bf16.msra.mxu0 0
        %2183 = vmatprep.subr.bf16.mxu0 0
        %2184 = vmatpush1.bf16.msra.mxu0 0
        %2185 = vmatprep.subr.bf16.mxu0 0
        %2186 = vmatpush1.bf16.msra.mxu0 0
        %2187 = vmatprep.mubr.bf16.mxu0 0
        %2188 = vmatmul.mubr.bf16.gmra.mrb[0].mxu0 %v2104
        %v2189 = vpop.f32.mrb[0].mxu0
        %v2190 = vadd.f32 0.0, %v2189
        %v2191 = vpop.f32.mrb[0].mxu0
        %v2192 = vpop.f32.mrb[0].mxu0
        %v2193 = vadd.f32 0.0, %v2192
        %v2194 = vpop.f32.mrb[0].mxu0
        %2195 = vmatprep.mubr.bf16.mxu0 0
        %2196 = vmatmul.mubr.bf16.gmra.mrb[0].mxu0 %v2105
        %v2197 = vpop.f32.mrb[0].mxu0
        %v2198 = vadd.f32 0.0, %v2197
        %v2199 = vpop.f32.mrb[0].mxu0
        %v2200 = vpop.f32.mrb[0].mxu0
        %v2201 = vadd.f32 0.0, %v2200
        %v2202 = vpop.f32.mrb[0].mxu0
        %2203 = vdwg.mxu0
        %v2204 = vrcp.pop %v2190
        %v2205 = vrcp.pop %v2193
        %v2206 = vrcp.pop %v2198
        %v2207 = vrcp.pop %v2201
        %v2208 = vmul.f32 %v2141, %v2204
        %v2209 = vmul.f32 %v2144, %v2205
        %v2210 = vmul.f32 %v2149, %v2206
        %v2211 = vmul.f32 %v2152, %v2207
        %v2212 = vpack.c.bf16 %v2209, %v2208
        %v2213 = vpack.c.bf16 %v2211, %v2210
        %v2214 = vld [vmem:[%s755] sm:$0xf]
        %v2215 = vld [vmem:[%s755 + $0x4] sm:$0xf]
        %v2216 = vld [vmem:[%s755 + $0x8] sm:$0xf]
        %v2217 = vld [vmem:[%s755 + $0xc] sm:$0xf]
        %v2218 = vld [vmem:[%s755 + $0x10] sm:$0xf]
        %v2219 = vld [vmem:[%s755 + $0x14] sm:$0xf]
        %v2220 = vld [vmem:[%s755 + $0x18] sm:$0xf]
        %v2221 = vld [vmem:[%s755 + $0x1c] sm:$0xf]
        %v2222 = vld [vmem:[%s755 + $0x20] sm:$0xf]
        %v2223 = vld [vmem:[%s755 + $0x24] sm:$0xf]
        %v2224 = vld [vmem:[%s755 + $0x28] sm:$0xf]
        %v2225 = vld [vmem:[%s755 + $0x2c] sm:$0xf]
        %v2226 = vld [vmem:[%s755 + $0x30] sm:$0xf]
        %v2227 = vld [vmem:[%s755 + $0x34] sm:$0xf]
        %v2228 = vld [vmem:[%s755 + $0x38] sm:$0xf]
        %v2229 = vld [vmem:[%s755 + $0x3c] sm:$0xf]
        %v2246 = vunpack.c.l.b16 %v2214
        %v2247 = vunpack.c.l.b16 %v2215
        %v2248 = vunpack.c.l.b16 %v2216
        %v2249 = vunpack.c.l.b16 %v2217
        %v2250 = vunpack.c.l.b16 %v2218
        %v2251 = vunpack.c.l.b16 %v2219
        %v2252 = vunpack.c.l.b16 %v2220
        %v2253 = vunpack.c.l.b16 %v2221
        %v2254 = vunpack.c.l.b16 %v2222
        %v2255 = vunpack.c.l.b16 %v2223
        %v2256 = vunpack.c.l.b16 %v2224
        %v2257 = vunpack.c.l.b16 %v2225
        %v2258 = vunpack.c.l.b16 %v2226
        %v2259 = vunpack.c.l.b16 %v2227
        %v2260 = vunpack.c.l.b16 %v2228
        %v2261 = vunpack.c.l.b16 %v2229
        %v2262 = vpack.c.b16 %v2247, %v2246
        %v2263 = vpack.c.b16 %v2249, %v2248
        %v2264 = vpack.c.b16 %v2251, %v2250
        %v2265 = vpack.c.b16 %v2253, %v2252
        %v2266 = vpack.c.b16 %v2255, %v2254
        %v2267 = vpack.c.b16 %v2257, %v2256
        %v2268 = vpack.c.b16 %v2259, %v2258
        %v2269 = vpack.c.b16 %v2261, %v2260
        %2278 = vmatprep.subr.bf16.mxu0 0
        %2279 = vmatpush1.bf16.msra.mxu0 %v2262
        %2280 = vmatprep.subr.bf16.mxu0 0
        %2281 = vmatpush1.bf16.msra.mxu0 %v2263
        %2282 = vmatprep.subr.bf16.mxu0 0
        %2283 = vmatpush1.bf16.msra.mxu0 %v2264
        %2284 = vmatprep.subr.bf16.mxu0 0
        %2285 = vmatpush1.bf16.msra.mxu0 %v2265
        %2286 = vmatprep.subr.bf16.mxu0 0
        %2287 = vmatpush1.bf16.msra.mxu0 %v2266
        %2288 = vmatprep.subr.bf16.mxu0 0
        %2289 = vmatpush1.bf16.msra.mxu0 %v2267
        %2290 = vmatprep.subr.bf16.mxu0 0
        %2291 = vmatpush1.bf16.msra.mxu0 %v2268
        %2292 = vmatprep.subr.bf16.mxu0 0
        %2293 = vmatpush1.bf16.msra.mxu0 %v2269
        %2294 = vmatprep.subr.bf16.mxu0 0
        %2295 = vmatpush1.bf16.msra.mxu0 0
        %2296 = vmatprep.subr.bf16.mxu0 0
        %2297 = vmatpush1.bf16.msra.mxu0 0
        %2298 = vmatprep.subr.bf16.mxu0 0
        %2299 = vmatpush1.bf16.msra.mxu0 0
        %2300 = vmatprep.subr.bf16.mxu0 0
        %2301 = vmatpush1.bf16.msra.mxu0 0
        %2302 = vmatprep.subr.bf16.mxu0 0
        %2303 = vmatpush1.bf16.msra.mxu0 0
        %2304 = vmatprep.subr.bf16.mxu0 0
        %2305 = vmatpush1.bf16.msra.mxu0 0
        %2306 = vmatprep.subr.bf16.mxu0 0
        %2307 = vmatpush1.bf16.msra.mxu0 0
        %2308 = vmatprep.subr.bf16.mxu0 0
        %2309 = vmatpush1.bf16.msra.mxu0 0
        %2310 = vmatprep.mubr.bf16.mxu0 0
        %2311 = vmatmul.mubr.bf16.gmra.mrb[0].mxu0 %v2212
        %v2312 = vpop.f32.mrb[0].mxu0
        %v2313 = vadd.f32 0.0, %v2312
        %v2314 = vpop.f32.mrb[0].mxu0
        %v2315 = vpop.f32.mrb[0].mxu0
        %v2316 = vadd.f32 0.0, %v2315
        %v2317 = vpop.f32.mrb[0].mxu0
        %2318 = vmatprep.mubr.bf16.mxu0 0
        %2319 = vmatmul.mubr.bf16.gmra.mrb[0].mxu0 %v2213
        %v2320 = vpop.f32.mrb[0].mxu0
        %v2321 = vadd.f32 0.0, %v2320
        %v2322 = vpop.f32.mrb[0].mxu0
        %v2323 = vpop.f32.mrb[0].mxu0
        %v2324 = vadd.f32 0.0, %v2323
        %v2325 = vpop.f32.mrb[0].mxu0
        %2326 = vdwg.mxu0
        %v2327 = vadd.f32 %v1468, %v2313
        %v2328 = vadd.f32 %v1469, %v2316
        %v2329 = vadd.f32 %v1470, %v2321
        %v2330 = vadd.f32 %v1471, %v2324
        %v2331 = vld [vmem:[%s763] sm:$0x1]
        %v2332 = vmul.f32 %v2327, %v2327
        %v2333 = vmul.f32 %v2328, %v2328
        %v2334 = vmul.f32 %v2329, %v2329
        %v2335 = vmul.f32 %v2330, %v2330
        %2336 = vadd.xlane.f32.xlu0 %v2332
        %v2337 = vpop.xlane.xlu0 %2336
        %2338 = vadd.xlane.f32.xlu0 %v2333
        %v2339 = vpop.xlane.xlu0 %2338
        %2340 = vadd.xlane.f32.xlu0 %v2334
        %v2341 = vpop.xlane.xlu0 %2340
        %2342 = vadd.xlane.f32.xlu0 %v2335
        %v2343 = vpop.xlane.xlu0 %2342
        %v2344 = vmul.f32 %v2337, %v1485
        %v2345 = vmul.f32 %v2339, %v1485
        %v2346 = vmul.f32 %v2341, %v1485
        %v2347 = vmul.f32 %v2343, %v1485
        %v2348 = vadd.f32 %v2344, 1e-05
        %v2349 = vadd.f32 %v2345, 1e-05
        %v2350 = vadd.f32 %v2346, 1e-05
        %v2351 = vadd.f32 %v2347, 1e-05
        %v2352 = vrsqrt.pop %v2348
        %v2353 = vrsqrt.pop %v2349
        %v2354 = vrsqrt.pop %v2350
        %v2355 = vrsqrt.pop %v2351
        %v2356 = vmul.f32 %v2327, %v2352
        %v2357 = vmul.f32 %v2328, %v2353
        %v2358 = vmul.f32 %v2329, %v2354
        %v2359 = vmul.f32 %v2330, %v2355
        %v2361 = vlaneseq
        %v2362 = vshrl.u32 %v2361, 7
        %v2363 = vsub.s32 0, %v2362
        %v2364 = vrot.slane %v2331, %v2363
        %v2366 = vmul.f32 %v2356, %v2364
        %v2367 = vmul.f32 %v2357, %v2364
        %v2368 = vmul.f32 %v2358, %v2364
        %v2369 = vmul.f32 %v2359, %v2364
        %v2370 = vpack.c.bf16 %v2367, %v2366
        %v2371 = vpack.c.bf16 %v2369, %v2368
        %v2372 = vld [vmem:[%s772] sm:$0xff]
        %v2373 = vld [vmem:[%s772 + $0x8] sm:$0xff]
        %v2374 = vld [vmem:[%s772 + $0x10] sm:$0xff]
        %v2375 = vld [vmem:[%s772 + $0x18] sm:$0xff]
        %v2376 = vld [vmem:[%s772 + $0x20] sm:$0xff]
        %v2377 = vld [vmem:[%s772 + $0x28] sm:$0xff]
        %v2378 = vld [vmem:[%s772 + $0x30] sm:$0xff]
        %v2379 = vld [vmem:[%s772 + $0x38] sm:$0xff]
        %v2380 = vld [vmem:[%s772 + $0x40] sm:$0xff]
        %v2381 = vld [vmem:[%s772 + $0x48] sm:$0xff]
        %v2382 = vld [vmem:[%s772 + $0x50] sm:$0xff]
        %v2383 = vld [vmem:[%s772 + $0x58] sm:$0xff]
        %v2384 = vld [vmem:[%s772 + $0x60] sm:$0xff]
        %v2385 = vld [vmem:[%s772 + $0x68] sm:$0xff]
        %v2386 = vld [vmem:[%s772 + $0x70] sm:$0xff]
        %v2387 = vld [vmem:[%s772 + $0x78] sm:$0xff]
        %v2404 = vunpack.c.l.b16 %v2372
        %v2405 = vunpack.c.h.b16 %v2372
        %v2406 = vunpack.c.l.b16 %v2373
        %v2407 = vunpack.c.h.b16 %v2373
        %v2408 = vunpack.c.l.b16 %v2374
        %v2409 = vunpack.c.h.b16 %v2374
        %v2410 = vunpack.c.l.b16 %v2375
        %v2411 = vunpack.c.h.b16 %v2375
        %v2412 = vunpack.c.l.b16 %v2376
        %v2413 = vunpack.c.h.b16 %v2376
        %v2414 = vunpack.c.l.b16 %v2377
        %v2415 = vunpack.c.h.b16 %v2377
        %v2416 = vunpack.c.l.b16 %v2378
        %v2417 = vunpack.c.h.b16 %v2378
        %v2418 = vunpack.c.l.b16 %v2379
        %v2419 = vunpack.c.h.b16 %v2379
        %v2420 = vunpack.c.l.b16 %v2380
        %v2421 = vunpack.c.h.b16 %v2380
        %v2422 = vunpack.c.l.b16 %v2381
        %v2423 = vunpack.c.h.b16 %v2381
        %v2424 = vunpack.c.l.b16 %v2382
        %v2425 = vunpack.c.h.b16 %v2382
        %v2426 = vunpack.c.l.b16 %v2383
        %v2427 = vunpack.c.h.b16 %v2383
        %v2428 = vunpack.c.l.b16 %v2384
        %v2429 = vunpack.c.h.b16 %v2384
        %v2430 = vunpack.c.l.b16 %v2385
        %v2431 = vunpack.c.h.b16 %v2385
        %v2432 = vunpack.c.l.b16 %v2386
        %v2433 = vunpack.c.h.b16 %v2386
        %v2434 = vunpack.c.l.b16 %v2387
        %v2435 = vunpack.c.h.b16 %v2387
        %v2436 = vpack.c.b16 %v2406, %v2404
        %v2437 = vpack.c.b16 %v2407, %v2405
        %v2438 = vpack.c.b16 %v2410, %v2408
        %v2439 = vpack.c.b16 %v2411, %v2409
        %v2440 = vpack.c.b16 %v2414, %v2412
        %v2441 = vpack.c.b16 %v2415, %v2413
        %v2442 = vpack.c.b16 %v2418, %v2416
        %v2443 = vpack.c.b16 %v2419, %v2417
        %v2444 = vpack.c.b16 %v2422, %v2420
        %v2445 = vpack.c.b16 %v2423, %v2421
        %v2446 = vpack.c.b16 %v2426, %v2424
        %v2447 = vpack.c.b16 %v2427, %v2425
        %v2448 = vpack.c.b16 %v2430, %v2428
        %v2449 = vpack.c.b16 %v2431, %v2429
        %v2450 = vpack.c.b16 %v2434, %v2432
        %v2451 = vpack.c.b16 %v2435, %v2433
        %2468 = vmatprep.subr.bf16.mxu0 %v2437
        %2469 = vmatpush1.bf16.msra.mxu0 %v2436
        %2470 = vmatprep.subr.bf16.mxu0 %v2439
        %2471 = vmatpush1.bf16.msra.mxu0 %v2438
        %2472 = vmatprep.subr.bf16.mxu0 %v2441
        %2473 = vmatpush1.bf16.msra.mxu0 %v2440
        %2474 = vmatprep.subr.bf16.mxu0 %v2443
        %2475 = vmatpush1.bf16.msra.mxu0 %v2442
        %2476 = vmatprep.subr.bf16.mxu0 %v2445
        %2477 = vmatpush1.bf16.msra.mxu0 %v2444
        %2478 = vmatprep.subr.bf16.mxu0 %v2447
        %2479 = vmatpush1.bf16.msra.mxu0 %v2446
        %2480 = vmatprep.subr.bf16.mxu0 %v2449
        %2481 = vmatpush1.bf16.msra.mxu0 %v2448
        %2482 = vmatprep.subr.bf16.mxu0 %v2451
        %2483 = vmatpush1.bf16.msra.mxu0 %v2450
        %2484 = vmatprep.subr.bf16.mxu0 0
        %2485 = vmatpush1.bf16.msra.mxu0 0
        %2486 = vmatprep.subr.bf16.mxu0 0
        %2487 = vmatpush1.bf16.msra.mxu0 0
        %2488 = vmatprep.subr.bf16.mxu0 0
        %2489 = vmatpush1.bf16.msra.mxu0 0
        %2490 = vmatprep.subr.bf16.mxu0 0
        %2491 = vmatpush1.bf16.msra.mxu0 0
        %2492 = vmatprep.subr.bf16.mxu0 0
        %2493 = vmatpush1.bf16.msra.mxu0 0
        %2494 = vmatprep.subr.bf16.mxu0 0
        %2495 = vmatpush1.bf16.msra.mxu0 0
        %2496 = vmatprep.subr.bf16.mxu0 0
        %2497 = vmatpush1.bf16.msra.mxu0 0
        %2498 = vmatprep.subr.bf16.mxu0 0
        %2499 = vmatpush1.bf16.msra.mxu0 0
        %2500 = vmatprep.mubr.bf16.mxu0 0
        %2501 = vmatmul.mubr.bf16.gmra.mrb[0].mxu0 %v2370
        %v2502 = vpop.f32.mrb[0].mxu0
        %v2503 = vadd.f32 0.0, %v2502
        %v2504 = vpop.f32.mrb[0].mxu0
        %v2505 = vadd.f32 0.0, %v2504
        %v2506 = vpop.f32.mrb[0].mxu0
        %v2507 = vadd.f32 0.0, %v2506
        %v2508 = vpop.f32.mrb[0].mxu0
        %v2509 = vadd.f32 0.0, %v2508
        %2510 = vmatprep.mubr.bf16.mxu0 0
        %2511 = vmatmul.mubr.bf16.gmra.mrb[0].mxu0 %v2371
        %v2512 = vpop.f32.mrb[0].mxu0
        %v2513 = vadd.f32 0.0, %v2512
        %v2514 = vpop.f32.mrb[0].mxu0
        %v2515 = vadd.f32 0.0, %v2514
        %v2516 = vpop.f32.mrb[0].mxu0
        %v2517 = vadd.f32 0.0, %v2516
        %v2518 = vpop.f32.mrb[0].mxu0
        %v2519 = vadd.f32 0.0, %v2518
        %2520 = vdwg.mxu0
        %v2521 = vld [vmem:[%s790] sm:$0xff]
        %v2522 = vld [vmem:[%s790 + $0x8] sm:$0xff]
        %v2523 = vld [vmem:[%s790 + $0x10] sm:$0xff]
        %v2524 = vld [vmem:[%s790 + $0x18] sm:$0xff]
        %v2525 = vld [vmem:[%s790 + $0x20] sm:$0xff]
        %v2526 = vld [vmem:[%s790 + $0x28] sm:$0xff]
        %v2527 = vld [vmem:[%s790 + $0x30] sm:$0xff]
        %v2528 = vld [vmem:[%s790 + $0x38] sm:$0xff]
        %v2529 = vld [vmem:[%s790 + $0x40] sm:$0xff]
        %v2530 = vld [vmem:[%s790 + $0x48] sm:$0xff]
        %v2531 = vld [vmem:[%s790 + $0x50] sm:$0xff]
        %v2532 = vld [vmem:[%s790 + $0x58] sm:$0xff]
        %v2533 = vld [vmem:[%s790 + $0x60] sm:$0xff]
        %v2534 = vld [vmem:[%s790 + $0x68] sm:$0xff]
        %v2535 = vld [vmem:[%s790 + $0x70] sm:$0xff]
        %v2536 = vld [vmem:[%s790 + $0x78] sm:$0xff]
        %v2553 = vunpack.c.l.b16 %v2521
        %v2554 = vunpack.c.h.b16 %v2521
        %v2555 = vunpack.c.l.b16 %v2522
        %v2556 = vunpack.c.h.b16 %v2522
        %v2557 = vunpack.c.l.b16 %v2523
        %v2558 = vunpack.c.h.b16 %v2523
        %v2559 = vunpack.c.l.b16 %v2524
        %v2560 = vunpack.c.h.b16 %v2524
        %v2561 = vunpack.c.l.b16 %v2525
        %v2562 = vunpack.c.h.b16 %v2525
        %v2563 = vunpack.c.l.b16 %v2526
        %v2564 = vunpack.c.h.b16 %v2526
        %v2565 = vunpack.c.l.b16 %v2527
        %v2566 = vunpack.c.h.b16 %v2527
        %v2567 = vunpack.c.l.b16 %v2528
        %v2568 = vunpack.c.h.b16 %v2528
        %v2569 = vunpack.c.l.b16 %v2529
        %v2570 = vunpack.c.h.b16 %v2529
        %v2571 = vunpack.c.l.b16 %v2530
        %v2572 = vunpack.c.h.b16 %v2530
        %v2573 = vunpack.c.l.b16 %v2531
        %v2574 = vunpack.c.h.b16 %v2531
        %v2575 = vunpack.c.l.b16 %v2532
        %v2576 = vunpack.c.h.b16 %v2532
        %v2577 = vunpack.c.l.b16 %v2533
        %v2578 = vunpack.c.h.b16 %v2533
        %v2579 = vunpack.c.l.b16 %v2534
        %v2580 = vunpack.c.h.b16 %v2534
        %v2581 = vunpack.c.l.b16 %v2535
        %v2582 = vunpack.c.h.b16 %v2535
        %v2583 = vunpack.c.l.b16 %v2536
        %v2584 = vunpack.c.h.b16 %v2536
        %v2585 = vpack.c.b16 %v2555, %v2553
        %v2586 = vpack.c.b16 %v2556, %v2554
        %v2587 = vpack.c.b16 %v2559, %v2557
        %v2588 = vpack.c.b16 %v2560, %v2558
        %v2589 = vpack.c.b16 %v2563, %v2561
        %v2590 = vpack.c.b16 %v2564, %v2562
        %v2591 = vpack.c.b16 %v2567, %v2565
        %v2592 = vpack.c.b16 %v2568, %v2566
        %v2593 = vpack.c.b16 %v2571, %v2569
        %v2594 = vpack.c.b16 %v2572, %v2570
        %v2595 = vpack.c.b16 %v2575, %v2573
        %v2596 = vpack.c.b16 %v2576, %v2574
        %v2597 = vpack.c.b16 %v2579, %v2577
        %v2598 = vpack.c.b16 %v2580, %v2578
        %v2599 = vpack.c.b16 %v2583, %v2581
        %v2600 = vpack.c.b16 %v2584, %v2582
        %2617 = vmatprep.subr.bf16.mxu0 %v2586
        %2618 = vmatpush1.bf16.msra.mxu0 %v2585
        %2619 = vmatprep.subr.bf16.mxu0 %v2588
        %2620 = vmatpush1.bf16.msra.mxu0 %v2587
        %2621 = vmatprep.subr.bf16.mxu0 %v2590
        %2622 = vmatpush1.bf16.msra.mxu0 %v2589
        %2623 = vmatprep.subr.bf16.mxu0 %v2592
        %2624 = vmatpush1.bf16.msra.mxu0 %v2591
        %2625 = vmatprep.subr.bf16.mxu0 %v2594
        %2626 = vmatpush1.bf16.msra.mxu0 %v2593
        %2627 = vmatprep.subr.bf16.mxu0 %v2596
        %2628 = vmatpush1.bf16.msra.mxu0 %v2595
        %2629 = vmatprep.subr.bf16.mxu0 %v2598
        %2630 = vmatpush1.bf16.msra.mxu0 %v2597
        %2631 = vmatprep.subr.bf16.mxu0 %v2600
        %2632 = vmatpush1.bf16.msra.mxu0 %v2599
        %2633 = vmatprep.subr.bf16.mxu0 0
        %2634 = vmatpush1.bf16.msra.mxu0 0
        %2635 = vmatprep.subr.bf16.mxu0 0
        %2636 = vmatpush1.bf16.msra.mxu0 0
        %2637 = vmatprep.subr.bf16.mxu0 0
        %2638 = vmatpush1.bf16.msra.mxu0 0
        %2639 = vmatprep.subr.bf16.mxu0 0
        %2640 = vmatpush1.bf16.msra.mxu0 0
        %2641 = vmatprep.subr.bf16.mxu0 0
        %2642 = vmatpush1.bf16.msra.mxu0 0
        %2643 = vmatprep.subr.bf16.mxu0 0
        %2644 = vmatpush1.bf16.msra.mxu0 0
        %2645 = vmatprep.subr.bf16.mxu0 0
        %2646 = vmatpush1.bf16.msra.mxu0 0
        %2647 = vmatprep.subr.bf16.mxu0 0
        %2648 = vmatpush1.bf16.msra.mxu0 0
        %2649 = vmatprep.mubr.bf16.mxu0 0
        %2650 = vmatmul.mubr.bf16.gmra.mrb[0].mxu0 %v2370
        %v2651 = vpop.f32.mrb[0].mxu0
        %v2652 = vadd.f32 0.0, %v2651
        %v2653 = vpop.f32.mrb[0].mxu0
        %v2654 = vadd.f32 0.0, %v2653
        %v2655 = vpop.f32.mrb[0].mxu0
        %v2656 = vadd.f32 0.0, %v2655
        %v2657 = vpop.f32.mrb[0].mxu0
        %v2658 = vadd.f32 0.0, %v2657
        %2659 = vmatprep.mubr.bf16.mxu0 0
        %2660 = vmatmul.mubr.bf16.gmra.mrb[0].mxu0 %v2371
        %v2661 = vpop.f32.mrb[0].mxu0
        %v2662 = vadd.f32 0.0, %v2661
        %v2663 = vpop.f32.mrb[0].mxu0
        %v2664 = vadd.f32 0.0, %v2663
        %v2665 = vpop.f32.mrb[0].mxu0
        %v2666 = vadd.f32 0.0, %v2665
        %v2667 = vpop.f32.mrb[0].mxu0
        %v2668 = vadd.f32 0.0, %v2667
        %2669 = vdwg.mxu0
        %v2670 = vxor.u32 %v2503, 2147483648
        %v2671 = vxor.u32 %v2505, 2147483648
        %v2672 = vxor.u32 %v2507, 2147483648
        %v2673 = vxor.u32 %v2509, 2147483648
        %v2674 = vxor.u32 %v2513, 2147483648
        %v2675 = vxor.u32 %v2515, 2147483648
        %v2676 = vxor.u32 %v2517, 2147483648
        %v2677 = vxor.u32 %v2519, 2147483648
        %v2678 = vmul.f32 %v2670, 1.442695
        %v2679 = vpow.pop %v2678
        %v2680 = vmul.f32 %v2671, 1.442695
        %v2681 = vpow.pop %v2680
        %v2682 = vmul.f32 %v2672, 1.442695
        %v2683 = vpow.pop %v2682
        %v2684 = vmul.f32 %v2673, 1.442695
        %v2685 = vpow.pop %v2684
        %v2686 = vmul.f32 %v2674, 1.442695
        %v2687 = vpow.pop %v2686
        %v2688 = vmul.f32 %v2675, 1.442695
        %v2689 = vpow.pop %v2688
        %v2690 = vmul.f32 %v2676, 1.442695
        %v2691 = vpow.pop %v2690
        %v2692 = vmul.f32 %v2677, 1.442695
        %v2693 = vpow.pop %v2692
        %v2694 = vadd.f32 %v2679, 1.0
        %v2695 = vadd.f32 %v2681, 1.0
        %v2696 = vadd.f32 %v2683, 1.0
        %v2697 = vadd.f32 %v2685, 1.0
        %v2698 = vadd.f32 %v2687, 1.0
        %v2699 = vadd.f32 %v2689, 1.0
        %v2700 = vadd.f32 %v2691, 1.0
        %v2701 = vadd.f32 %v2693, 1.0
        %v2702 = vrcp.pop %v2694
        %v2703 = vmul.f32 1.0, %v2702
        %v2704 = vrcp.pop %v2695
        %v2705 = vmul.f32 1.0, %v2704
        %v2706 = vrcp.pop %v2696
        %v2707 = vmul.f32 1.0, %v2706
        %v2708 = vrcp.pop %v2697
        %v2709 = vmul.f32 1.0, %v2708
        %v2710 = vrcp.pop %v2698
        %v2711 = vmul.f32 1.0, %v2710
        %v2712 = vrcp.pop %v2699
        %v2713 = vmul.f32 1.0, %v2712
        %v2714 = vrcp.pop %v2700
        %v2715 = vmul.f32 1.0, %v2714
        %v2716 = vrcp.pop %v2701
        %v2717 = vmul.f32 1.0, %v2716
        %v2718 = vmul.f32 %v2503, %v2703
        %v2719 = vmul.f32 %v2505, %v2705
        %v2720 = vmul.f32 %v2507, %v2707
        %v2721 = vmul.f32 %v2509, %v2709
        %v2722 = vmul.f32 %v2513, %v2711
        %v2723 = vmul.f32 %v2515, %v2713
        %v2724 = vmul.f32 %v2517, %v2715
        %v2725 = vmul.f32 %v2519, %v2717
        %v2726 = vmul.f32 %v2718, %v2652
        %v2727 = vmul.f32 %v2719, %v2654
        %v2728 = vmul.f32 %v2720, %v2656
        %v2729 = vmul.f32 %v2721, %v2658
        %v2730 = vmul.f32 %v2722, %v2662
        %v2731 = vmul.f32 %v2723, %v2664
        %v2732 = vmul.f32 %v2724, %v2666
        %v2733 = vmul.f32 %v2725, %v2668
        %v2734 = vpack.c.bf16 %v2728, %v2726
        %v2735 = vpack.c.bf16 %v2729, %v2727
        %v2736 = vpack.c.bf16 %v2732, %v2730
        %v2737 = vpack.c.bf16 %v2733, %v2731
        %v2738 = vld [vmem:[%s781] sm:$0xf]
        %v2739 = vld [vmem:[%s781 + $0x4] sm:$0xf]
        %v2740 = vld [vmem:[%s781 + $0x8] sm:$0xf]
        %v2741 = vld [vmem:[%s781 + $0xc] sm:$0xf]
        %v2742 = vld [vmem:[%s781 + $0x10] sm:$0xf]
        %v2743 = vld [vmem:[%s781 + $0x14] sm:$0xf]
        %v2744 = vld [vmem:[%s781 + $0x18] sm:$0xf]
        %v2745 = vld [vmem:[%s781 + $0x1c] sm:$0xf]
        %v2746 = vld [vmem:[%s781 + $0x20] sm:$0xf]
        %v2747 = vld [vmem:[%s781 + $0x24] sm:$0xf]
        %v2748 = vld [vmem:[%s781 + $0x28] sm:$0xf]
        %v2749 = vld [vmem:[%s781 + $0x2c] sm:$0xf]
        %v2750 = vld [vmem:[%s781 + $0x30] sm:$0xf]
        %v2751 = vld [vmem:[%s781 + $0x34] sm:$0xf]
        %v2752 = vld [vmem:[%s781 + $0x38] sm:$0xf]
        %v2753 = vld [vmem:[%s781 + $0x3c] sm:$0xf]
        %v2754 = vld [vmem:[%s781 + $0x40] sm:$0xf]
        %v2755 = vld [vmem:[%s781 + $0x44] sm:$0xf]
        %v2756 = vld [vmem:[%s781 + $0x48] sm:$0xf]
        %v2757 = vld [vmem:[%s781 + $0x4c] sm:$0xf]
        %v2758 = vld [vmem:[%s781 + $0x50] sm:$0xf]
        %v2759 = vld [vmem:[%s781 + $0x54] sm:$0xf]
        %v2760 = vld [vmem:[%s781 + $0x58] sm:$0xf]
        %v2761 = vld [vmem:[%s781 + $0x5c] sm:$0xf]
        %v2762 = vld [vmem:[%s781 + $0x60] sm:$0xf]
        %v2763 = vld [vmem:[%s781 + $0x64] sm:$0xf]
        %v2764 = vld [vmem:[%s781 + $0x68] sm:$0xf]
        %v2765 = vld [vmem:[%s781 + $0x6c] sm:$0xf]
        %v2766 = vld [vmem:[%s781 + $0x70] sm:$0xf]
        %v2767 = vld [vmem:[%s781 + $0x74] sm:$0xf]
        %v2768 = vld [vmem:[%s781 + $0x78] sm:$0xf]
        %v2769 = vld [vmem:[%s781 + $0x7c] sm:$0xf]
        %v2802 = vunpack.c.l.b16 %v2738
        %v2803 = vunpack.c.l.b16 %v2739
        %v2804 = vunpack.c.l.b16 %v2740
        %v2805 = vunpack.c.l.b16 %v2741
        %v2806 = vunpack.c.l.b16 %v2742
        %v2807 = vunpack.c.l.b16 %v2743
        %v2808 = vunpack.c.l.b16 %v2744
        %v2809 = vunpack.c.l.b16 %v2745
        %v2810 = vunpack.c.l.b16 %v2746
        %v2811 = vunpack.c.l.b16 %v2747
        %v2812 = vunpack.c.l.b16 %v2748
        %v2813 = vunpack.c.l.b16 %v2749
        %v2814 = vunpack.c.l.b16 %v2750
        %v2815 = vunpack.c.l.b16 %v2751
        %v2816 = vunpack.c.l.b16 %v2752
        %v2817 = vunpack.c.l.b16 %v2753
        %v2818 = vunpack.c.l.b16 %v2754
        %v2819 = vunpack.c.l.b16 %v2755
        %v2820 = vunpack.c.l.b16 %v2756
        %v2821 = vunpack.c.l.b16 %v2757
        %v2822 = vunpack.c.l.b16 %v2758
        %v2823 = vunpack.c.l.b16 %v2759
        %v2824 = vunpack.c.l.b16 %v2760
        %v2825 = vunpack.c.l.b16 %v2761
        %v2826 = vunpack.c.l.b16 %v2762
        %v2827 = vunpack.c.l.b16 %v2763
        %v2828 = vunpack.c.l.b16 %v2764
        %v2829 = vunpack.c.l.b16 %v2765
        %v2830 = vunpack.c.l.b16 %v2766
        %v2831 = vunpack.c.l.b16 %v2767
        %v2832 = vunpack.c.l.b16 %v2768
        %v2833 = vunpack.c.l.b16 %v2769
        %v2834 = vpack.c.b16 %v2803, %v2802
        %v2835 = vpack.c.b16 %v2805, %v2804
        %v2836 = vpack.c.b16 %v2807, %v2806
        %v2837 = vpack.c.b16 %v2809, %v2808
        %v2838 = vpack.c.b16 %v2811, %v2810
        %v2839 = vpack.c.b16 %v2813, %v2812
        %v2840 = vpack.c.b16 %v2815, %v2814
        %v2841 = vpack.c.b16 %v2817, %v2816
        %v2842 = vpack.c.b16 %v2819, %v2818
        %v2843 = vpack.c.b16 %v2821, %v2820
        %v2844 = vpack.c.b16 %v2823, %v2822
        %v2845 = vpack.c.b16 %v2825, %v2824
        %v2846 = vpack.c.b16 %v2827, %v2826
        %v2847 = vpack.c.b16 %v2829, %v2828
        %v2848 = vpack.c.b16 %v2831, %v2830
        %v2849 = vpack.c.b16 %v2833, %v2832
        %2866 = vmatprep.subr.bf16.mxu0 0
        %2867 = vmatpush1.bf16.msra.mxu0 %v2834
        %2868 = vmatprep.subr.bf16.mxu0 0
        %2869 = vmatpush1.bf16.msra.mxu0 %v2835
        %2870 = vmatprep.subr.bf16.mxu0 0
        %2871 = vmatpush1.bf16.msra.mxu0 %v2836
        %2872 = vmatprep.subr.bf16.mxu0 0
        %2873 = vmatpush1.bf16.msra.mxu0 %v2837
        %2874 = vmatprep.subr.bf16.mxu0 0
        %2875 = vmatpush1.bf16.msra.mxu0 %v2838
        %2876 = vmatprep.subr.bf16.mxu0 0
        %2877 = vmatpush1.bf16.msra.mxu0 %v2839
        %2878 = vmatprep.subr.bf16.mxu0 0
        %2879 = vmatpush1.bf16.msra.mxu0 %v2840
        %2880 = vmatprep.subr.bf16.mxu0 0
        %2881 = vmatpush1.bf16.msra.mxu0 %v2841
        %2882 = vmatprep.subr.bf16.mxu0 0
        %2883 = vmatpush1.bf16.msra.mxu0 %v2842
        %2884 = vmatprep.subr.bf16.mxu0 0
        %2885 = vmatpush1.bf16.msra.mxu0 %v2843
        %2886 = vmatprep.subr.bf16.mxu0 0
        %2887 = vmatpush1.bf16.msra.mxu0 %v2844
        %2888 = vmatprep.subr.bf16.mxu0 0
        %2889 = vmatpush1.bf16.msra.mxu0 %v2845
        %2890 = vmatprep.subr.bf16.mxu0 0
        %2891 = vmatpush1.bf16.msra.mxu0 %v2846
        %2892 = vmatprep.subr.bf16.mxu0 0
        %2893 = vmatpush1.bf16.msra.mxu0 %v2847
        %2894 = vmatprep.subr.bf16.mxu0 0
        %2895 = vmatpush1.bf16.msra.mxu0 %v2848
        %2896 = vmatprep.subr.bf16.mxu0 0
        %2897 = vmatpush1.bf16.msra.mxu0 %v2849
        %2898 = vmatprep.mubr.bf16.mxu0 %v2735
        %2899 = vmatmul.mubr.bf16.gmra.mrb[0].mxu0 %v2734
        %v2900 = vpop.f32.mrb[0].mxu0
        %v2901 = vadd.f32 0.0, %v2900
        %v2902 = vpop.f32.mrb[0].mxu0
        %v2903 = vpop.f32.mrb[0].mxu0
        %v2904 = vadd.f32 0.0, %v2903
        %v2905 = vpop.f32.mrb[0].mxu0
        %2906 = vmatprep.mubr.bf16.mxu0 %v2737
        %2907 = vmatmul.mubr.bf16.gmra.mrb[0].mxu0 %v2736
        %v2908 = vpop.f32.mrb[0].mxu0
        %v2909 = vadd.f32 0.0, %v2908
        %v2910 = vpop.f32.mrb[0].mxu0
        %v2911 = vpop.f32.mrb[0].mxu0
        %v2912 = vadd.f32 0.0, %v2911
        %v2913 = vpop.f32.mrb[0].mxu0
        %2914 = vdwg.mxu0
        %v2915 = vadd.f32 %v2327, %v2901
        %v2916 = vadd.f32 %v2328, %v2904
        %v2917 = vadd.f32 %v2329, %v2909
        %v2918 = vadd.f32 %v2330, %v2912
        %2919 = vst [vmem:[#allocation2] sm:$0xff] %v2915
        %2920 = vst [vmem:[#allocation2 + $0x8] sm:$0xff] %v2916
        %2921 = vst [vmem:[#allocation2 + $0x10] sm:$0xff] %v2917
        %2922 = vst [vmem:[#allocation2 + $0x18] sm:$0xff] %v2918
        %p2923 = scmp.eq.s32.totalorder %s53, 1
        // Predicated region
        $region269: #{transformer_forward.1} parent=83 // pred_check
          %p2924 = pneg %p2923
        $region270: #{transformer_forward.1} parent=83 // pred_check_branch
          %2926 = sbr.rel (%p2924) target = $region272
        $region271: #{transformer_forward.1} parent=83 // pred_region
          %v2927 = vld [vmem:[#allocation24] sm:$0x1]
          %v2928 = vmul.f32 %v2915, %v2915
          %v2929 = vmul.f32 %v2916, %v2916
          %v2930 = vmul.f32 %v2917, %v2917
          %v2931 = vmul.f32 %v2918, %v2918
          %2932 = vadd.xlane.f32.xlu0 %v2928
          %v2933 = vpop.xlane.xlu0 %2932
          %2934 = vadd.xlane.f32.xlu0 %v2929
          %v2935 = vpop.xlane.xlu0 %2934
          %2936 = vadd.xlane.f32.xlu0 %v2930
          %v2937 = vpop.xlane.xlu0 %2936
          %2938 = vadd.xlane.f32.xlu0 %v2931
          %v2939 = vpop.xlane.xlu0 %2938
          %v2940 = vmul.f32 %v2933, %v1485
          %v2941 = vmul.f32 %v2935, %v1485
          %v2942 = vmul.f32 %v2937, %v1485
          %v2943 = vmul.f32 %v2939, %v1485
          %v2944 = vadd.f32 %v2940, 1e-05
          %v2945 = vadd.f32 %v2941, 1e-05
          %v2946 = vadd.f32 %v2942, 1e-05
          %v2947 = vadd.f32 %v2943, 1e-05
          %v2948 = vrsqrt.pop %v2944
          %v2949 = vrsqrt.pop %v2945
          %v2950 = vrsqrt.pop %v2946
          %v2951 = vrsqrt.pop %v2947
          %v2952 = vmul.f32 %v2915, %v2948
          %v2953 = vmul.f32 %v2916, %v2949
          %v2954 = vmul.f32 %v2917, %v2950
          %v2955 = vmul.f32 %v2918, %v2951
          %v2957 = vlaneseq
          %v2958 = vshrl.u32 %v2957, 7
          %v2959 = vsub.s32 0, %v2958
          %v2960 = vrot.slane %v2927, %v2959
          %v2962 = vmul.f32 %v2952, %v2960
          %v2963 = vmul.f32 %v2953, %v2960
          %v2964 = vmul.f32 %v2954, %v2960
          %v2965 = vmul.f32 %v2955, %v2960
          %v2966 = vpack.c.bf16 %v2963, %v2962
          %v2967 = vpack.c.bf16 %v2965, %v2964
          %v2968 = vld [vmem:[#allocation26] sm:$0xff]
          %v2969 = vld [vmem:[#allocation26 + $0x8] sm:$0xff]
          %v2970 = vld [vmem:[#allocation26 + $0x10] sm:$0xff]
          %v2971 = vld [vmem:[#allocation26 + $0x18] sm:$0xff]
          %v2972 = vld [vmem:[#allocation26 + $0x20] sm:$0xff]
          %v2973 = vld [vmem:[#allocation26 + $0x28] sm:$0xff]
          %v2974 = vld [vmem:[#allocation26 + $0x30] sm:$0xff]
          %v2975 = vld [vmem:[#allocation26 + $0x38] sm:$0xff]
          %v2976 = vld [vmem:[#allocation26 + $0x40] sm:$0xff]
          %v2977 = vld [vmem:[#allocation26 + $0x48] sm:$0xff]
          %v2978 = vld [vmem:[#allocation26 + $0x50] sm:$0xff]
          %v2979 = vld [vmem:[#allocation26 + $0x58] sm:$0xff]
          %v2980 = vld [vmem:[#allocation26 + $0x60] sm:$0xff]
          %v2981 = vld [vmem:[#allocation26 + $0x68] sm:$0xff]
          %v2982 = vld [vmem:[#allocation26 + $0x70] sm:$0xff]
          %v2983 = vld [vmem:[#allocation26 + $0x78] sm:$0xff]
          %v3000 = vunpack.c.l.b16 %v2968
          %v3001 = vunpack.c.h.b16 %v2968
          %v3002 = vunpack.c.l.b16 %v2969
          %v3003 = vunpack.c.h.b16 %v2969
          %v3004 = vunpack.c.l.b16 %v2970
          %v3005 = vunpack.c.h.b16 %v2970
          %v3006 = vunpack.c.l.b16 %v2971
          %v3007 = vunpack.c.h.b16 %v2971
          %v3008 = vunpack.c.l.b16 %v2972
          %v3009 = vunpack.c.h.b16 %v2972
          %v3010 = vunpack.c.l.b16 %v2973
          %v3011 = vunpack.c.h.b16 %v2973
          %v3012 = vunpack.c.l.b16 %v2974
          %v3013 = vunpack.c.h.b16 %v2974
          %v3014 = vunpack.c.l.b16 %v2975
          %v3015 = vunpack.c.h.b16 %v2975
          %v3016 = vunpack.c.l.b16 %v2976
          %v3017 = vunpack.c.h.b16 %v2976
          %v3018 = vunpack.c.l.b16 %v2977
          %v3019 = vunpack.c.h.b16 %v2977
          %v3020 = vunpack.c.l.b16 %v2978
          %v3021 = vunpack.c.h.b16 %v2978
          %v3022 = vunpack.c.l.b16 %v2979
          %v3023 = vunpack.c.h.b16 %v2979
          %v3024 = vunpack.c.l.b16 %v2980
          %v3025 = vunpack.c.h.b16 %v2980
          %v3026 = vunpack.c.l.b16 %v2981
          %v3027 = vunpack.c.h.b16 %v2981
          %v3028 = vunpack.c.l.b16 %v2982
          %v3029 = vunpack.c.h.b16 %v2982
          %v3030 = vunpack.c.l.b16 %v2983
          %v3031 = vunpack.c.h.b16 %v2983
          %v3032 = vpack.c.b16 %v3002, %v3000
          %v3033 = vpack.c.b16 %v3003, %v3001
          %v3034 = vpack.c.b16 %v3006, %v3004
          %v3035 = vpack.c.b16 %v3007, %v3005
          %v3036 = vpack.c.b16 %v3010, %v3008
          %v3037 = vpack.c.b16 %v3011, %v3009
          %v3038 = vpack.c.b16 %v3014, %v3012
          %v3039 = vpack.c.b16 %v3015, %v3013
          %v3040 = vpack.c.b16 %v3018, %v3016
          %v3041 = vpack.c.b16 %v3019, %v3017
          %v3042 = vpack.c.b16 %v3022, %v3020
          %v3043 = vpack.c.b16 %v3023, %v3021
          %v3044 = vpack.c.b16 %v3026, %v3024
          %v3045 = vpack.c.b16 %v3027, %v3025
          %v3046 = vpack.c.b16 %v3030, %v3028
          %v3047 = vpack.c.b16 %v3031, %v3029
          %3064 = vmatprep.subr.bf16.mxu0 %v3033
          %3065 = vmatpush1.bf16.msra.mxu0 %v3032
          %3066 = vmatprep.subr.bf16.mxu0 %v3035
          %3067 = vmatpush1.bf16.msra.mxu0 %v3034
          %3068 = vmatprep.subr.bf16.mxu0 %v3037
          %3069 = vmatpush1.bf16.msra.mxu0 %v3036
          %3070 = vmatprep.subr.bf16.mxu0 %v3039
          %3071 = vmatpush1.bf16.msra.mxu0 %v3038
          %3072 = vmatprep.subr.bf16.mxu0 %v3041
          %3073 = vmatpush1.bf16.msra.mxu0 %v3040
          %3074 = vmatprep.subr.bf16.mxu0 %v3043
          %3075 = vmatpush1.bf16.msra.mxu0 %v3042
          %3076 = vmatprep.subr.bf16.mxu0 %v3045
          %3077 = vmatpush1.bf16.msra.mxu0 %v3044
          %3078 = vmatprep.subr.bf16.mxu0 %v3047
          %3079 = vmatpush1.bf16.msra.mxu0 %v3046
          %3080 = vmatprep.subr.bf16.mxu0 0
          %3081 = vmatpush1.bf16.msra.mxu0 0
          %3082 = vmatprep.subr.bf16.mxu0 0
          %3083 = vmatpush1.bf16.msra.mxu0 0
          %3084 = vmatprep.subr.bf16.mxu0 0
          %3085 = vmatpush1.bf16.msra.mxu0 0
          %3086 = vmatprep.subr.bf16.mxu0 0
          %3087 = vmatpush1.bf16.msra.mxu0 0
          %3088 = vmatprep.subr.bf16.mxu0 0
          %3089 = vmatpush1.bf16.msra.mxu0 0
          %3090 = vmatprep.subr.bf16.mxu0 0
          %3091 = vmatpush1.bf16.msra.mxu0 0
          %3092 = vmatprep.subr.bf16.mxu0 0
          %3093 = vmatpush1.bf16.msra.mxu0 0
          %3094 = vmatprep.subr.bf16.mxu0 0
          %3095 = vmatpush1.bf16.msra.mxu0 0
          %3096 = vmatprep.mubr.bf16.mxu0 0
          %3097 = vmatmul.mubr.bf16.gmra.mrb[0].mxu0 %v2966
          %v3098 = vpop.f32.mrb[0].mxu0
          %v3099 = vadd.f32 0.0, %v3098
          %v3100 = vpop.f32.mrb[0].mxu0
          %v3101 = vadd.f32 0.0, %v3100
          %v3102 = vpop.f32.mrb[0].mxu0
          %v3103 = vadd.f32 0.0, %v3102
          %v3104 = vpop.f32.mrb[0].mxu0
          %v3105 = vadd.f32 0.0, %v3104
          %3106 = vmatprep.mubr.bf16.mxu0 0
          %3107 = vmatmul.mubr.bf16.gmra.mrb[0].mxu0 %v2967
          %v3108 = vpop.f32.mrb[0].mxu0
          %v3109 = vadd.f32 0.0, %v3108
          %v3110 = vpop.f32.mrb[0].mxu0
          %v3111 = vadd.f32 0.0, %v3110
          %v3112 = vpop.f32.mrb[0].mxu0
          %v3113 = vadd.f32 0.0, %v3112
          %v3114 = vpop.f32.mrb[0].mxu0
          %v3115 = vadd.f32 0.0, %v3114
          %3116 = vdwg.mxu0
          %3117 = vst [vmem:[#allocation27] sm:$0xff] %v3099
          %3118 = vst [vmem:[#allocation27 + $0x8] sm:$0xff] %v3101
          %3119 = vst [vmem:[#allocation27 + $0x10] sm:$0xff] %v3103
          %3120 = vst [vmem:[#allocation27 + $0x18] sm:$0xff] %v3105
          %3121 = vst [vmem:[#allocation27 + $0x20] sm:$0xff] %v3109
          %3122 = vst [vmem:[#allocation27 + $0x28] sm:$0xff] %v3111
          %3123 = vst [vmem:[#allocation27 + $0x30] sm:$0xff] %v3113
          %3124 = vst [vmem:[#allocation27 + $0x38] sm:$0xff] %v3115
        $region272: #{transformer_forward.1} parent=83 // pred_fallthru
          _
        // Predicated region
        $region273: #{transformer_forward.1} parent=83 // pred_check
          %p3125 = pneg %p447
        $region274: #{transformer_forward.1} parent=83 // pred_check_branch
          %3127 = sbr.rel (%p3125) target = $region276
        $region275: #{transformer_forward.1} parent=83 // pred_region
          %s3129 = ssub.s32 1024, 1024
          %3130 = vsyncadd [#allocation8], %s3129
          %s3131 = sshll.u32 [#allocation27], 4
          %s3132 = int_to_ptr.vmem [resolvable:$true] %s3131
          %3137 = dma.vmem_to_hbm [thread:$0]  %s3132, 1024, %s18, [#allocation8], 256, 256, 16
        $region276: #{transformer_forward.1} parent=83 // pred_fallthru
          _
        // Predicated region
        $region277: #{transformer_forward.1} parent=83 // pred_check
          %p3138 = pneg %p447
        $region278: #{transformer_forward.1} parent=83 // pred_check_branch
          %3140 = sbr.rel (%p3138) target = $region280
        $region279: #{transformer_forward.1} parent=83 // pred_region
          %3141 = dma.done [#allocation8], 1024
        $region280: #{transformer_forward.1} parent=83 // pred_fallthru
          _
      $region84: #{transformer_forward.1} parent=5 // pred_fallthru
        _
      %p3142 = scmp.le.s32.totalorder 2, %s48
      // Predicated region
      $region281: #{transformer_forward.1} parent=5 // pred_check
        %p3143 = pneg %p3142
      $region282: #{transformer_forward.1} parent=5 // pred_check_branch
        %3145 = sbr.rel (%p3143) target = $region284
      $region283: #{transformer_forward.1} parent=5 // pred_region
        %s3146 = ssub.s32 %s48, 2
      $region284: #{transformer_forward.1} parent=5 // pred_fallthru
        _
    $region6: #{transformer_forward.1} parent=1 // loop_footer
      %s52 = sadd.s32 1, %s48
    $region7: #{transformer_forward.1} parent=1 // loop_footer_branch
      %47 = sbr.rel target = $region3
    $region8: #{transformer_forward.1} parent=1 // loop_exit
      _
    %3147 = vsyncpa [#allocation7], 1
    %s3148 = scalar_lea.sflag [#allocation7], 1
    %3149 = vsyncpa %s3148, 1
    %3150 = vsyncpa [#allocation10], 1
    %s3151 = scalar_lea.sflag [#allocation10], 1
    %3152 = vsyncpa %s3151, 1
    %3153 = vsyncpa [#allocation13], 1
    %s3154 = scalar_lea.sflag [#allocation13], 1
    %3155 = vsyncpa %s3154, 1
    %3156 = vsyncpa [#allocation16], 1
    %s3157 = scalar_lea.sflag [#allocation16], 1
    %3158 = vsyncpa %s3157, 1
    %3159 = vsyncpa [#allocation19], 1
    %s3160 = scalar_lea.sflag [#allocation19], 1
    %3161 = vsyncpa %s3160, 1
    %3162 = vsyncpa [#allocation22], 1
    %3163 = vsyncpa [#allocation25], 1
    %3164 = vsyncpa [#allocation8], 1
    %s3165 = scalar_lea.sflag [#allocation8], 1
    %3166 = vsyncpa %s3165, 1
  %3167 = vsyncmov [#allocation3]
  %s3168 = vpop.sfrf %3167
  %p3169 = scmp.eq.s32.totalorder %s3168, 0
  %p3170 = pneg %p3169
  %3172 = shalt.err (%p3170)
  %s3173 = scalar_lea.sflag [#allocation3], 1
  %3174 = vsyncmov %s3173
  %s3175 = vpop.sfrf %3174
  %p3176 = scmp.eq.s32.totalorder %s3175, 0
  %p3177 = pneg %p3176
  %3179 = shalt.err (%p3177)
  %s3180 = scalar_lea.sflag [#allocation3], 2
  %3181 = vsyncmov %s3180
  %s3182 = vpop.sfrf %3181
  %p3183 = scmp.eq.s32.totalorder %s3182, 0
  %p3184 = pneg %p3183
  %3186 = shalt.err (%p3184)
  %s3187 = scalar_lea.sflag [#allocation3], 3
  %3188 = vsyncmov %s3187
  %s3189 = vpop.sfrf %3188
  %p3190 = scmp.eq.s32.totalorder %s3189, 0
  %p3191 = pneg %p3190
  %3193 = shalt.err (%p3191)
  %s3194 = scalar_lea.sflag [#allocation3], 4
  %3195 = vsyncmov %s3194
  %s3196 = vpop.sfrf %3195
  %p3197 = scmp.eq.s32.totalorder %s3196, 0
  %p3198 = pneg %p3197
  %3200 = shalt.err (%p3198)
  %s3201 = scalar_lea.sflag [#allocation3], 5
  %3202 = vsyncmov %s3201
  %s3203 = vpop.sfrf %3202
  %p3204 = scmp.eq.s32.totalorder %s3203, 0
  %p3205 = pneg %p3204
  %3207 = shalt.err (%p3205)
  %s3208 = scalar_lea.sflag [#allocation3], 6
  %3209 = vsyncmov %s3208
  %s3210 = vpop.sfrf %3209
  %p3211 = scmp.eq.s32.totalorder %s3210, 0
  %p3212 = pneg %p3211
  %3214 = shalt.err (%p3212)
  %s3215 = scalar_lea.sflag [#allocation3], 7
  %3216 = vsyncmov %s3215
  %s3217 = vpop.sfrf %3216
  %p3218 = scmp.eq.s32.totalorder %s3217, 0
  %p3219 = pneg %p3218
  %3221 = shalt.err (%p3219)
  %s3222 = scalar_lea.sflag [#allocation3], 8
  %3223 = vsyncmov %s3222
  %s3224 = vpop.sfrf %3223
  %p3225 = scmp.eq.s32.totalorder %s3224, 0
  %p3226 = pneg %p3225
  %3228 = shalt.err (%p3226)
  %s3229 = scalar_lea.sflag [#allocation3], 9
  %3230 = vsyncmov %s3229
  %s3231 = vpop.sfrf %3230
  %p3232 = scmp.eq.s32.totalorder %s3231, 0
  %p3233 = pneg %p3232
  %3235 = shalt.err (%p3233)
  %s3236 = scalar_lea.sflag [#allocation3], 10
  %3237 = vsyncmov %s3236
  %s3238 = vpop.sfrf %3237
  %p3239 = scmp.eq.s32.totalorder %s3238, 0
  %p3240 = pneg %p3239
  %3242 = shalt.err (%p3240)
  %s3243 = scalar_lea.sflag [#allocation3], 11
  %3244 = vsyncmov %s3243
  %s3245 = vpop.sfrf %3244
  %p3246 = scmp.eq.s32.totalorder %s3245, 0
  %p3247 = pneg %p3246
  %3249 = shalt.err (%p3247)
  %s3250 = scalar_lea.sflag [#allocation3], 12
  %3251 = vsyncmov %s3250
  %s3252 = vpop.sfrf %3251
  %p3253 = scmp.eq.s32.totalorder %s3252, 0
  %p3254 = pneg %p3253
  %3256 = shalt.err (%p3254)
  %s3257 = scalar_lea.sflag [#allocation3], 13
  %3258 = vsyncmov %s3257
  %s3259 = vpop.sfrf %3258
  %p3260 = scmp.eq.s32.totalorder %s3259, 0
  %p3261 = pneg %p3260
  %3263 = shalt.err (%p3261)
  %s3264 = scalar_lea.sflag [#allocation3], 14
  %3265 = vsyncmov %s3264
  %s3266 = vpop.sfrf %3265
  %p3267 = scmp.eq.s32.totalorder %s3266, 0
  %p3268 = pneg %p3267
  %3270 = shalt.err (%p3268)
  %s3271 = scalar_lea.sflag [#allocation3], 15
  %3272 = vsyncmov %s3271
  %s3273 = vpop.sfrf %3272
  %p3274 = scmp.eq.s32.totalorder %s3273, 0
  %p3275 = pneg %p3274
  %3277 = shalt.err (%p3275)
  %s3278 = scalar_lea.sflag [#allocation3], 16
  %3279 = vsyncmov %s3278
  %s3280 = vpop.sfrf %3279
  %p3281 = scmp.eq.s32.totalorder %s3280, 0
  %p3282 = pneg %p3281
  %3284 = shalt.err (%p3282)
  %s3285 = scalar_lea.sflag [#allocation3], 17
  %3286 = vsyncmov %s3285
  %s3287 = vpop.sfrf %3286
  %p3288 = scmp.eq.s32.totalorder %s3287, 0
  %p3289 = pneg %p3288
  %3291 = shalt.err (%p3289)
  %s3292 = scalar_lea.sflag [#allocation3], 18
  %3293 = vsyncmov %s3292
  %s3294 = vpop.sfrf %3293
  %p3295 = scmp.eq.s32.totalorder %s3294, 0
  %p3296 = pneg %p3295
  %3298 = shalt.err (%p3296)
  %s3299 = scalar_lea.sflag [#allocation3], 19
  %3300 = vsyncmov %s3299
  %s3301 = vpop.sfrf %3300
  %p3302 = scmp.eq.s32.totalorder %s3301, 0
  %p3303 = pneg %p3302
  %3305 = shalt.err (%p3303)
  %s3306 = scalar_lea.sflag [#allocation3], 20
  %3307 = vsyncmov %s3306
  %s3308 = vpop.sfrf %3307
  %p3309 = scmp.eq.s32.totalorder %s3308, 0
  %p3310 = pneg %p3309
  %3312 = shalt.err (%p3310)
  %s3313 = scalar_lea.sflag [#allocation3], 21
  %3314 = vsyncmov %s3313
  %s3315 = vpop.sfrf %3314
  %p3316 = scmp.eq.s32.totalorder %s3315, 0
  %p3317 = pneg %p3316
  %3319 = shalt.err (%p3317)
  %s3320 = scalar_lea.sflag [#allocation3], 22
  %3321 = vsyncmov %s3320
  %s3322 = vpop.sfrf %3321
  %p3323 = scmp.eq.s32.totalorder %s3322, 0
  %p3324 = pneg %p3323
  %3326 = shalt.err (%p3324)
  %s3327 = scalar_lea.sflag [#allocation3], 23
  %3328 = vsyncmov %s3327
  %s3329 = vpop.sfrf %3328
  %p3330 = scmp.eq.s32.totalorder %s3329, 0
  %p3331 = pneg %p3330
  %3333 = shalt.err (%p3331)
  %s3334 = scalar_lea.sflag [#allocation3], 24
  %3335 = vsyncmov %s3334
  %s3336 = vpop.sfrf %3335
  %p3337 = scmp.eq.s32.totalorder %s3336, 0
  %p3338 = pneg %p3337
  %3340 = shalt.err (%p3338)
  %s3341 = scalar_lea.sflag [#allocation3], 25
  %3342 = vsyncmov %s3341
  %s3343 = vpop.sfrf %3342
  %p3344 = scmp.eq.s32.totalorder %s3343, 0
  %p3345 = pneg %p3344
  %3347 = shalt.err (%p3345)
  %s3348 = scalar_lea.sflag [#allocation3], 26
  %3349 = vsyncmov %s3348
  %s3350 = vpop.sfrf %3349
  %p3351 = scmp.eq.s32.totalorder %s3350, 0
  %p3352 = pneg %p3351
  %3354 = shalt.err (%p3352)
  %s3355 = scalar_lea.sflag [#allocation3], 27
  %3356 = vsyncmov %s3355
  %s3357 = vpop.sfrf %3356
  %p3358 = scmp.eq.s32.totalorder %s3357, 0
  %p3359 = pneg %p3358
  %3361 = shalt.err (%p3359)
  %s3362 = scalar_lea.sflag [#allocation3], 28
  %3363 = vsyncmov %s3362
  %s3364 = vpop.sfrf %3363
  %p3365 = scmp.eq.s32.totalorder %s3364, 0
  %p3366 = pneg %p3365
  %3368 = shalt.err (%p3366)
  %s3369 = scalar_lea.sflag [#allocation3], 29
  %3370 = vsyncmov %s3369
  %s3371 = vpop.sfrf %3370
  %p3372 = scmp.eq.s32.totalorder %s3371, 0
  %p3373 = pneg %p3372
  %3375 = shalt.err (%p3373)
  %s3376 = scalar_lea.sflag [#allocation3], 30
  %3377 = vsyncmov %s3376
  %s3378 = vpop.sfrf %3377
  %p3379 = scmp.eq.s32.totalorder %s3378, 0
  %p3380 = pneg %p3379
  %3382 = shalt.err (%p3380)
  %s3383 = scalar_lea.sflag [#allocation3], 31
  %3384 = vsyncmov %s3383
  %s3385 = vpop.sfrf %3384
  %p3386 = scmp.eq.s32.totalorder %s3385, 0
  %p3387 = pneg %p3386
  %3389 = shalt.err (%p3387)

</llo_original>
